<compile_context>
chip_gen: v7x
topology: tpu7x:2x2x1
jax: 0.10.0
libtpu: 0.0.40
codegen_flags: <defaults>
</compile_context>

<pallas_src>
import math

import jax
import jax.numpy as jnp
from jax import lax
from jax.experimental import pallas as pl
from jax.experimental.pallas import tpu as pltpu

# ----------------------------------------------------------------------------
# Configuration (matches LieGroupLayer(subgroup_sizes, subspace_sizes, ...))
# ----------------------------------------------------------------------------
SUBGROUP_SIZES = (16, 16)      # each a perfect square -> mat_dim = 4
SUBSPACE_SIZES = (4, 4)
MAT_DIM = 4
LIE_ALG_INIT_SCALE = 1e-3
EXPM_SQUARINGS = 2             # scaling-and-squaring steps (basis ~1e-3 -> plenty)

IMG_SHAPE = (4, 16, 16)        # (C, H, W) of the synthetic input images
BATCH = 2

N_GROUPS = len(SUBGROUP_SIZES)
F_TOTAL = sum(SUBGROUP_SIZES)          # 32  (group feature size)
S_TOTAL = sum(SUBSPACE_SIZES)          # 8   (latent / subspace size)
H_TOTAL = 4 * F_TOTAL                  # 128 (total hidden width per head)

# small output slab layout (lane-padded to 128 so the block store is lane-dense)
SMALL_W = 128
H_OFF = 0
MU_OFF = F_TOTAL                       # 32
LV_OFF = F_TOTAL + S_TOTAL             # 40
GRP_OFF = F_TOTAL + 2 * S_TOTAL        # 48 .. 80

# packed f32 bias slab (all offsets 128-lane aligned)
BENC_OFF = 0                           # width F_TOTAL
B1_OFF = 128                           # width 2*H_TOTAL = 256
B2_OFF = 384                           # width 2*S_TOTAL = 16
BDEC_OFF = 512                         # width Din

MAX_TM = 512                           # batch tile: safe on v7x (64 MiB VMEM)


def _round_up(x, m):
    return (x + m - 1) // m * m


# ----------------------------------------------------------------------------
# In-kernel helpers: batched 4x4 matmul / expm with batch on the lane axis.
# ----------------------------------------------------------------------------
def _bmm4(a, b):
    """Batched 4x4 matmul, a/b: (4, 4, N) with batch on lanes (VPU only).

    c[i, j, :] = sum_k a[i, k, :] * b[k, j, :] -- only leading/sublane slices,
    no lane-axis slicing, so every multiply-add runs on full-width vregs.
    """
    c = a[:, 0:1, :] * b[0:1, :, :]
    c = c + a[:, 1:2, :] * b[1:2, :, :]
    c = c + a[:, 2:3, :] * b[2:3, :, :]
    c = c + a[:, 3:4, :] * b[3:4, :, :]
    return c


def _expm4(a):
    """exp(A) for (4,4,N): scaling-and-squaring + 4-term Taylor, f32, VPU only."""
    a = a * (1.0 / (2.0 ** EXPM_SQUARINGS))
    eye = (lax.broadcasted_iota(jnp.int32, a.shape, 0) ==
           lax.broadcasted_iota(jnp.int32, a.shape, 1)).astype(a.dtype)
    a2 = _bmm4(a, a)
    a3 = _bmm4(a2, a)
    a4 = _bmm4(a2, a2)
    r = eye + a + 0.5 * a2 + (1.0 / 6.0) * a3 + (1.0 / 24.0) * a4
    for _ in range(EXPM_SQUARINGS):
        r = _bmm4(r, r)
    return r
    # TODO(synk): fixed Taylor order is only accurate for small ||lie_alg||
    # (true at init scale 1e-3); a trained model may need more terms/squarings.


# ----------------------------------------------------------------------------
# The kernel (one batch tile per grid step)
# ----------------------------------------------------------------------------
def _lievae_kernel(x_ref, wenc_ref, w1_ref, w2_ref, basis_ref, wdec_ref,
                   bias_ref, small_ref, rec_ref, grp_t_ref):
    # static, lane-aligned views of the packed bias slab
    benc = bias_ref[:, BENC_OFF:BENC_OFF + F_TOTAL]
    b1 = bias_ref[:, B1_OFF:B1_OFF + 2 * H_TOTAL]
    b2 = bias_ref[:, B2_OFF:B2_OFF + 2 * S_TOTAL]
    bdec = bias_ref[:, BDEC_OFF:]

    # ---- encoder (synthetic Linear): bf16 inputs, f32 accumulation ----
    h = jnp.dot(x_ref[...], wenc_ref[...],
                preferred_element_type=jnp.float32) + benc              # (TM, 32)

    # ---- fused block-diagonal group mean/logvar heads (bf16 in, f32 acc) ----
    t1 = jnp.maximum(
        jnp.dot(h.astype(jnp.bfloat16), w1_ref[...],
                preferred_element_type=jnp.float32) + b1, 0.0)          # (TM, 256)
    t2 = jnp.dot(t1.astype(jnp.bfloat16), w2_ref[...],
                 preferred_element_type=jnp.float32) + b2               # (TM, 16)
    mu = t2[:, 0:S_TOTAL]                  # concatenated group means   (TM, 8)
    lv = t2[:, S_TOTAL:2 * S_TOTAL]        # concatenated group logvars (TM, 8)

    # eval-mode reparam: latents == mu
    # TODO(synk): training-mode reparameterization (randn noise) and the
    # np.random prob_forward branch are stochastic training-only paths; only
    # the deterministic eval forward is kernelized.

    # ---- lie algebra + matrix exponential with batch on lanes ----
    mu_t = jnp.transpose(mu)               # (S_TOTAL, TM) -- batch on lanes
    basis = basis_ref[...]                 # (S_TOTAL, 4, 4, 1) f32

    so = 0
    fo = 0
    for ssize, gsize in zip(SUBSPACE_SIZES, SUBGROUP_SIZES):
        la = None
        for s in range(ssize):
            r = so + s
            # outer product: basis matrix (4,4,1) x latent row (1,1,TM)
            term = basis[r] * mu_t[r:r + 1, :][None, :, :]              # (4,4,TM)
            la = term if la is None else la + term
        lg = _expm4(la)                                                 # (4,4,TM)
        # stage row-major flattened exp(A) (transposed: rows = matrix entries,
        # lanes = batch) via cheap sublane-slab stores -- no lane concats.
        for i in range(MAT_DIM):
            row = fo + i * MAT_DIM
            grp_t_ref[row:row + MAT_DIM, :] = lg[i]
        so += ssize
        fo += gsize

    # one 2-D transpose back to batch-major for the decoder + output slab
    grp = jnp.transpose(grp_t_ref[...])                                 # (TM, 32)

    # ---- decoder (synthetic Linear): single K=32 matmul, bf16/f32-acc ----
    rec = jnp.dot(grp.astype(jnp.bfloat16), wdec_ref[...],
                  preferred_element_type=jnp.float32) + bdec            # (TM, Din)

    # ---- outputs: static slice stores into the lane-padded small slab ----
    small_ref[:, H_OFF:H_OFF + F_TOTAL] = h
    small_ref[:, MU_OFF:MU_OFF + S_TOTAL] = mu
    small_ref[:, LV_OFF:LV_OFF + S_TOTAL] = lv
    small_ref[:, GRP_OFF:GRP_OFF + F_TOTAL] = grp
    rec_ref[...] = rec.astype(rec_ref.dtype)


# ----------------------------------------------------------------------------
# Wrapper
# ----------------------------------------------------------------------------
def lie_group_vae_forward(x, params, *, rec_dtype=jnp.bfloat16, max_tm=MAX_TM):
    B = x.shape[0]
    x_flat = x.reshape(B, -1).astype(jnp.bfloat16)
    din = x_flat.shape[1]

    # batch tile: multiple of 16 (bf16 sublane), capped for v7x VMEM headroom
    tm = min(max_tm, _round_up(B, 16))
    b_pad = _round_up(B, tm)
    if b_pad != B:
        x_flat = jnp.pad(x_flat, ((0, b_pad - B), (0, 0)))
    grid = (b_pad // tm,)

    const2 = lambda i: (0, 0)
    in_specs = [
        pl.BlockSpec((tm, din), lambda i: (i, 0)),                      # x tile
        pl.BlockSpec((din, F_TOTAL), const2),                           # wenc (resident)
        pl.BlockSpec((F_TOTAL, 2 * H_TOTAL), const2),                   # w1f
        pl.BlockSpec((2 * H_TOTAL, 2 * S_TOTAL), const2),               # w2f
        pl.BlockSpec((S_TOTAL, MAT_DIM, MAT_DIM, 1),
                     lambda i: (0, 0, 0, 0)),                           # lie basis
        pl.BlockSpec((F_TOTAL, din), const2),                           # wdec
        pl.BlockSpec((1, BDEC_OFF + din), const2),                      # packed biases
    ]
    out_specs = (
        pl.BlockSpec((tm, SMALL_W), lambda i: (i, 0)),
        pl.BlockSpec((tm, din), lambda i: (i, 0)),
    )
    out_shapes = (
        jax.ShapeDtypeStruct((b_pad, SMALL_W), jnp.float32),
        jax.ShapeDtypeStruct((b_pad, din), rec_dtype),
    )

    small, rec_flat = pl.pallas_call(
        _lievae_kernel,
        grid=grid,
        in_specs=in_specs,
        out_specs=out_specs,
        out_shape=out_shapes,
        scratch_shapes=[pltpu.VMEM((F_TOTAL, tm), jnp.float32)],
        compiler_params=pltpu.CompilerParams(
            dimension_semantics=("parallel",),      # shard batch across TCs (v7x)
            vmem_limit_bytes=64 * 1024 * 1024),
    )(x_flat, params["wenc"], params["w1f"], params["w2f"],
      params["basis"], params["wdec"], params["bias"])

    h = small[:B, H_OFF:H_OFF + F_TOTAL]
    mu = small[:B, MU_OFF:MU_OFF + S_TOTAL]
    logvar = small[:B, LV_OFF:LV_OFF + S_TOTAL]
    group = small[:B, GRP_OFF:GRP_OFF + F_TOTAL]

    recons = rec_flat[:B].reshape(x.shape)               # bf16 reconstruction
    latents = mu                                         # eval-mode reparam -> mu
    latent = (h, latents, group)                         # (features, latents, lie_group)
    g_params = (mu, logvar, params["lie_basis_list"])    # (mu, logvar, lie_basis)
    return recons, latent, g_params


# ----------------------------------------------------------------------------
# Deterministic parameter init (mirrors shapes of the PyTorch __init__),
# with host-side block-diagonal fusion of the per-group heads and a packed
# lane-aligned bias slab.
# ----------------------------------------------------------------------------
def init_params(key, din):
    n_keys = 2 + 4 * N_GROUPS + S_TOTAL
    keys = list(jax.random.split(key, n_keys))
    kit = iter(keys)

    def linear(k, fan_in, fan_out):
        kw, kb = jax.random.split(k)
        bound = 1.0 / math.sqrt(fan_in)
        w = jax.random.uniform(kw, (fan_in, fan_out), jnp.float32, -bound, bound)
        b = jax.random.uniform(kb, (1, fan_out), jnp.float32, -bound, bound)
        return w, b

    wenc, benc = linear(next(kit), din, F_TOTAL)
    wdec, bdec = linear(next(kit), F_TOTAL, din)

    w1f = jnp.zeros((F_TOTAL, 2 * H_TOTAL), jnp.float32)      # (32, 256)
    b1f = jnp.zeros((1, 2 * H_TOTAL), jnp.float32)
    w2f = jnp.zeros((2 * H_TOTAL, 2 * S_TOTAL), jnp.float32)  # (256, 16)
    b2f = jnp.zeros((1, 2 * S_TOTAL), jnp.float32)
    basis_rows = []
    lie_basis_list = []

    fo = ho = so = 0
    for gsize, ssize in zip(SUBGROUP_SIZES, SUBSPACE_SIZES):
        mat_dim = int(math.sqrt(gsize))
        assert mat_dim * mat_dim == gsize and mat_dim == MAT_DIM
        hdim = 4 * gsize
        wm1, bm1 = linear(next(kit), gsize, hdim)
        wm2, bm2 = linear(next(kit), hdim, ssize)
        wv1, bv1 = linear(next(kit), gsize, hdim)
        wv2, bv2 = linear(next(kit), hdim, ssize)
        for _ in range(ssize):
            bmat = LIE_ALG_INIT_SCALE * jax.random.normal(
                next(kit), (1, mat_dim, mat_dim), jnp.float32)
            basis_rows.append(bmat)
            lie_basis_list.append(bmat)

        # mean head: hidden cols [ho:ho+hdim], latent cols [so:so+ssize];
        # logvar head: [H_TOTAL+ho:...], [S_TOTAL+so:...].
        w1f = w1f.at[fo:fo + gsize, ho:ho + hdim].set(wm1)
        w1f = w1f.at[fo:fo + gsize, H_TOTAL + ho:H_TOTAL + ho + hdim].set(wv1)
        b1f = b1f.at[:, ho:ho + hdim].set(bm1)
        b1f = b1f.at[:, H_TOTAL + ho:H_TOTAL + ho + hdim].set(bv1)
        w2f = w2f.at[ho:ho + hdim, so:so + ssize].set(wm2)
        w2f = w2f.at[H_TOTAL + ho:H_TOTAL + ho + hdim,
                     S_TOTAL + so:S_TOTAL + so + ssize].set(wv2)
        b2f = b2f.at[:, so:so + ssize].set(bm2)
        b2f = b2f.at[:, S_TOTAL + so:S_TOTAL + so + ssize].set(bv2)

        fo += gsize
        ho += hdim
        so += ssize

    # stacked lie basis with a trailing unit lane dim -> (S_TOTAL, 4, 4, 1)
    basis = jnp.concatenate(basis_rows, axis=0)[..., None].astype(jnp.float32)

    # packed, lane-aligned bias slab: benc | b1f | b2f | bdec
    bias = jnp.zeros((1, BDEC_OFF + din), jnp.float32)
    bias = bias.at[:, BENC_OFF:BENC_OFF + F_TOTAL].set(benc)
    bias = bias.at[:, B1_OFF:B1_OFF + 2 * H_TOTAL].set(b1f)
    bias = bias.at[:, B2_OFF:B2_OFF + 2 * S_TOTAL].set(b2f)
    bias = bias.at[:, BDEC_OFF:].set(bdec)

    return dict(
        wenc=wenc.astype(jnp.bfloat16),
        wdec=wdec.astype(jnp.bfloat16),
        w1f=w1f.astype(jnp.bfloat16),
        w2f=w2f.astype(jnp.bfloat16),
        basis=basis,
        bias=bias,
        lie_basis_list=lie_basis_list,
    )


# ----------------------------------------------------------------------------
if __name__ == "__main__":
    key = jax.random.PRNGKey(0)
    kx, kp = jax.random.split(key)
    x = jax.random.normal(kx, (BATCH,) + IMG_SHAPE, jnp.float32)     # NCHW
    din = IMG_SHAPE[0] * IMG_SHAPE[1] * IMG_SHAPE[2]
    params = init_params(kp, din)

    recons, latent, g_params = lie_group_vae_forward(x, params)
    jax.block_until_ready((recons, latent, g_params[0], g_params[1]))

    assert recons.shape == x.shape
    assert latent[0].shape == (BATCH, F_TOTAL)
    assert latent[1].shape == (BATCH, S_TOTAL)
    assert latent[2].shape == (BATCH, F_TOTAL)
    print("KERNEL_OK")
</pallas_src>

<mosaic_0001>
module attributes {stable_mosaic.version = 11 : i64} {
  func.func @_lievae_kernel(%arg0: i32, %arg1: memref<16x1024xbf16, #tpu.memory_space<vmem>>, %arg2: memref<1024x32xbf16, #tpu.memory_space<vmem>>, %arg3: memref<32x256xbf16, #tpu.memory_space<vmem>>, %arg4: memref<256x16xbf16, #tpu.memory_space<vmem>>, %arg5: memref<8x4x4x1xf32, #tpu.memory_space<vmem>>, %arg6: memref<32x1024xbf16, #tpu.memory_space<vmem>>, %arg7: memref<1x1536xf32, #tpu.memory_space<vmem>>, %arg8: memref<16x128xf32, #tpu.memory_space<vmem>>, %arg9: memref<16x1024xbf16, #tpu.memory_space<vmem>>, %arg10: memref<32x16xf32, #tpu.memory_space<vmem>>) attributes {dimension_semantics = [#tpu.dimension_semantics<parallel>], iteration_bounds = array<i64: 1>, scalar_prefetch = 0 : i64, scratch_operands = 1 : i64, tpu.core_type = #tpu.core_type<tc>, window_params = [{transform_indices = @transform_0, window_bounds = array<i64: 16, 1024>}, {pipeline_mode = #tpu.pipeline_mode<synchronous>, transform_indices = @transform_1, window_bounds = array<i64: 1024, 32>}, {pipeline_mode = #tpu.pipeline_mode<synchronous>, transform_indices = @transform_2, window_bounds = array<i64: 32, 256>}, {pipeline_mode = #tpu.pipeline_mode<synchronous>, transform_indices = @transform_3, window_bounds = array<i64: 256, 16>}, {pipeline_mode = #tpu.pipeline_mode<synchronous>, transform_indices = @transform_4, window_bounds = array<i64: 8, 4, 4, 1>}, {pipeline_mode = #tpu.pipeline_mode<synchronous>, transform_indices = @transform_5, window_bounds = array<i64: 32, 1024>}, {pipeline_mode = #tpu.pipeline_mode<synchronous>, transform_indices = @transform_6, window_bounds = array<i64: 1, 1536>}, {transform_indices = @transform_7, window_bounds = array<i64: 16, 128>}, {transform_indices = @transform_8, window_bounds = array<i64: 16, 1024>}]} {
    %c0 = arith.constant 0 : index
    %c0_0 = arith.constant 0 : index
    %0 = vector.load %arg7[%c0, %c0_0] : memref<1x1536xf32, #tpu.memory_space<vmem>>, vector<1x32xf32>
    %c0_1 = arith.constant 0 : index
    %c128 = arith.constant 128 : index
    %1 = vector.load %arg7[%c0_1, %c128] : memref<1x1536xf32, #tpu.memory_space<vmem>>, vector<1x256xf32>
    %c0_2 = arith.constant 0 : index
    %c384 = arith.constant 384 : index
    %2 = vector.load %arg7[%c0_2, %c384] : memref<1x1536xf32, #tpu.memory_space<vmem>>, vector<1x16xf32>
    %c0_3 = arith.constant 0 : index
    %c512 = arith.constant 512 : index
    %3 = vector.load %arg7[%c0_3, %c512] : memref<1x1536xf32, #tpu.memory_space<vmem>>, vector<1x1024xf32>
    %c0_4 = arith.constant 0 : index
    %c0_5 = arith.constant 0 : index
    %4 = vector.load %arg1[%c0_4, %c0_5] : memref<16x1024xbf16, #tpu.memory_space<vmem>>, vector<16x1024xbf16>
    %c0_6 = arith.constant 0 : index
    %c0_7 = arith.constant 0 : index
    %5 = vector.load %arg2[%c0_6, %c0_7] : memref<1024x32xbf16, #tpu.memory_space<vmem>>, vector<1024x32xbf16>
    %cst = arith.constant dense<0.000000e+00> : vector<16x32xf32>
    %6 = tpu.matmul %4, %5, %cst {dimension_numbers = #tpu.dot_dimension_numbers<[1], [0], [0], [1], [0, 0, 1, 1], [], []>} : vector<16x1024xbf16>, vector<1024x32xbf16>, vector<16x32xf32> -> vector<16x32xf32>
    %7 = vector.broadcast %0 : vector<1x32xf32> to vector<16x32xf32>
    %8 = arith.addf %6, %7 : vector<16x32xf32>
    %9 = arith.truncf %8 : vector<16x32xf32> to vector<16x32xbf16>
    %c0_8 = arith.constant 0 : index
    %c0_9 = arith.constant 0 : index
    %10 = vector.load %arg3[%c0_8, %c0_9] : memref<32x256xbf16, #tpu.memory_space<vmem>>, vector<32x256xbf16>
    %cst_10 = arith.constant dense<0.000000e+00> : vector<16x256xf32>
    %11 = tpu.matmul %9, %10, %cst_10 {dimension_numbers = #tpu.dot_dimension_numbers<[1], [0], [0], [1], [0, 0, 1, 1], [], []>} : vector<16x32xbf16>, vector<32x256xbf16>, vector<16x256xf32> -> vector<16x256xf32>
    %12 = vector.broadcast %1 : vector<1x256xf32> to vector<16x256xf32>
    %13 = arith.addf %11, %12 : vector<16x256xf32>
    %cst_11 = arith.constant 0.000000e+00 : f32
    %14 = vector.broadcast %cst_11 : f32 to vector<16x256xf32>
    %15 = arith.maximumf %13, %14 : vector<16x256xf32>
    %16 = arith.truncf %15 : vector<16x256xf32> to vector<16x256xbf16>
    %c0_12 = arith.constant 0 : index
    %c0_13 = arith.constant 0 : index
    %17 = vector.load %arg4[%c0_12, %c0_13] : memref<256x16xbf16, #tpu.memory_space<vmem>>, vector<256x16xbf16>
    %cst_14 = arith.constant dense<0.000000e+00> : vector<16x16xf32>
    %18 = tpu.matmul %16, %17, %cst_14 {dimension_numbers = #tpu.dot_dimension_numbers<[1], [0], [0], [1], [0, 0, 1, 1], [], []>} : vector<16x256xbf16>, vector<256x16xbf16>, vector<16x16xf32> -> vector<16x16xf32>
    %19 = vector.broadcast %2 : vector<1x16xf32> to vector<16x16xf32>
    %20 = arith.addf %18, %19 : vector<16x16xf32>
    %21 = vector.extract_strided_slice %20 {offsets = [0, 0], sizes = [16, 8], strides = [1, 1]} : vector<16x16xf32> to vector<16x8xf32>
    %22 = vector.extract_strided_slice %20 {offsets = [0, 8], sizes = [16, 8], strides = [1, 1]} : vector<16x16xf32> to vector<16x8xf32>
    %23 = tpu.transpose %21, [1, 0] : vector<16x8xf32> -> vector<8x16xf32>
    %c0_15 = arith.constant 0 : index
    %c0_16 = arith.constant 0 : index
    %c0_17 = arith.constant 0 : index
    %c0_18 = arith.constant 0 : index
    %24 = vector.load %arg5[%c0_15, %c0_16, %c0_17, %c0_18] : memref<8x4x4x1xf32, #tpu.memory_space<vmem>>, vector<8x4x4x1xf32>
    %25 = vector.extract_strided_slice %24 {offsets = [0, 0, 0, 0], sizes = [1, 4, 4, 1], strides = [1, 1, 1, 1]} : vector<8x4x4x1xf32> to vector<1x4x4x1xf32>
    %26 = vector.shape_cast %25 : vector<1x4x4x1xf32> to vector<4x4x1xf32>
    %27 = vector.extract_strided_slice %23 {offsets = [0, 0], sizes = [1, 16], strides = [1, 1]} : vector<8x16xf32> to vector<1x16xf32>
    %28 = vector.shape_cast %27 : vector<1x16xf32> to vector<1x1x16xf32>
    %29 = vector.broadcast %26 : vector<4x4x1xf32> to vector<4x4x16xf32>
    %30 = vector.broadcast %28 : vector<1x1x16xf32> to vector<4x4x16xf32>
    %31 = arith.mulf %29, %30 : vector<4x4x16xf32>
    %32 = vector.extract_strided_slice %24 {offsets = [1, 0, 0, 0], sizes = [1, 4, 4, 1], strides = [1, 1, 1, 1]} : vector<8x4x4x1xf32> to vector<1x4x4x1xf32>
    %33 = vector.shape_cast %32 : vector<1x4x4x1xf32> to vector<4x4x1xf32>
    %34 = vector.extract_strided_slice %23 {offsets = [1, 0], sizes = [1, 16], strides = [1, 1]} : vector<8x16xf32> to vector<1x16xf32>
    %35 = vector.shape_cast %34 : vector<1x16xf32> to vector<1x1x16xf32>
    %36 = vector.broadcast %33 : vector<4x4x1xf32> to vector<4x4x16xf32>
    %37 = vector.broadcast %35 : vector<1x1x16xf32> to vector<4x4x16xf32>
    %38 = arith.mulf %36, %37 : vector<4x4x16xf32>
    %39 = arith.addf %31, %38 : vector<4x4x16xf32>
    %40 = vector.extract_strided_slice %24 {offsets = [2, 0, 0, 0], sizes = [1, 4, 4, 1], strides = [1, 1, 1, 1]} : vector<8x4x4x1xf32> to vector<1x4x4x1xf32>
    %41 = vector.shape_cast %40 : vector<1x4x4x1xf32> to vector<4x4x1xf32>
    %42 = vector.extract_strided_slice %23 {offsets = [2, 0], sizes = [1, 16], strides = [1, 1]} : vector<8x16xf32> to vector<1x16xf32>
    %43 = vector.shape_cast %42 : vector<1x16xf32> to vector<1x1x16xf32>
    %44 = vector.broadcast %41 : vector<4x4x1xf32> to vector<4x4x16xf32>
    %45 = vector.broadcast %43 : vector<1x1x16xf32> to vector<4x4x16xf32>
    %46 = arith.mulf %44, %45 : vector<4x4x16xf32>
    %47 = arith.addf %39, %46 : vector<4x4x16xf32>
    %48 = vector.extract_strided_slice %24 {offsets = [3, 0, 0, 0], sizes = [1, 4, 4, 1], strides = [1, 1, 1, 1]} : vector<8x4x4x1xf32> to vector<1x4x4x1xf32>
    %49 = vector.shape_cast %48 : vector<1x4x4x1xf32> to vector<4x4x1xf32>
    %50 = vector.extract_strided_slice %23 {offsets = [3, 0], sizes = [1, 16], strides = [1, 1]} : vector<8x16xf32> to vector<1x16xf32>
    %51 = vector.shape_cast %50 : vector<1x16xf32> to vector<1x1x16xf32>
    %52 = vector.broadcast %49 : vector<4x4x1xf32> to vector<4x4x16xf32>
    %53 = vector.broadcast %51 : vector<1x1x16xf32> to vector<4x4x16xf32>
    %54 = arith.mulf %52, %53 : vector<4x4x16xf32>
    %55 = arith.addf %47, %54 : vector<4x4x16xf32>
    %cst_19 = arith.constant 2.500000e-01 : f32
    %56 = vector.broadcast %cst_19 : f32 to vector<4x4x16xf32>
    %57 = arith.mulf %55, %56 : vector<4x4x16xf32>
    %58 = tpu.iota {dimensions = array<i32: 0>} : vector<4x4x16xi32>
    %59 = tpu.iota {dimensions = array<i32: 1>} : vector<4x4x16xi32>
    %60 = arith.cmpi eq, %58, %59 : vector<4x4x16xi32>
    %61 = arith.extui %60 : vector<4x4x16xi1> to vector<4x4x16xi32>
    %62 = arith.sitofp %61 : vector<4x4x16xi32> to vector<4x4x16xf32>
    %63 = vector.extract_strided_slice %57 {offsets = [0, 0, 0], sizes = [4, 1, 16], strides = [1, 1, 1]} : vector<4x4x16xf32> to vector<4x1x16xf32>
    %64 = vector.extract_strided_slice %57 {offsets = [0, 0, 0], sizes = [1, 4, 16], strides = [1, 1, 1]} : vector<4x4x16xf32> to vector<1x4x16xf32>
    %65 = vector.broadcast %63 : vector<4x1x16xf32> to vector<4x4x16xf32>
    %66 = vector.broadcast %64 : vector<1x4x16xf32> to vector<4x4x16xf32>
    %67 = arith.mulf %65, %66 : vector<4x4x16xf32>
    %68 = vector.extract_strided_slice %57 {offsets = [0, 1, 0], sizes = [4, 1, 16], strides = [1, 1, 1]} : vector<4x4x16xf32> to vector<4x1x16xf32>
    %69 = vector.extract_strided_slice %57 {offsets = [1, 0, 0], sizes = [1, 4, 16], strides = [1, 1, 1]} : vector<4x4x16xf32> to vector<1x4x16xf32>
    %70 = vector.broadcast %68 : vector<4x1x16xf32> to vector<4x4x16xf32>
    %71 = vector.broadcast %69 : vector<1x4x16xf32> to vector<4x4x16xf32>
    %72 = arith.mulf %70, %71 : vector<4x4x16xf32>
    %73 = arith.addf %67, %72 : vector<4x4x16xf32>
    %74 = vector.extract_strided_slice %57 {offsets = [0, 2, 0], sizes = [4, 1, 16], strides = [1, 1, 1]} : vector<4x4x16xf32> to vector<4x1x16xf32>
    %75 = vector.extract_strided_slice %57 {offsets = [2, 0, 0], sizes = [1, 4, 16], strides = [1, 1, 1]} : vector<4x4x16xf32> to vector<1x4x16xf32>
    %76 = vector.broadcast %74 : vector<4x1x16xf32> to vector<4x4x16xf32>
    %77 = vector.broadcast %75 : vector<1x4x16xf32> to vector<4x4x16xf32>
    %78 = arith.mulf %76, %77 : vector<4x4x16xf32>
    %79 = arith.addf %73, %78 : vector<4x4x16xf32>
    %80 = vector.extract_strided_slice %57 {offsets = [0, 3, 0], sizes = [4, 1, 16], strides = [1, 1, 1]} : vector<4x4x16xf32> to vector<4x1x16xf32>
    %81 = vector.extract_strided_slice %57 {offsets = [3, 0, 0], sizes = [1, 4, 16], strides = [1, 1, 1]} : vector<4x4x16xf32> to vector<1x4x16xf32>
    %82 = vector.broadcast %80 : vector<4x1x16xf32> to vector<4x4x16xf32>
    %83 = vector.broadcast %81 : vector<1x4x16xf32> to vector<4x4x16xf32>
    %84 = arith.mulf %82, %83 : vector<4x4x16xf32>
    %85 = arith.addf %79, %84 : vector<4x4x16xf32>
    %86 = vector.extract_strided_slice %85 {offsets = [0, 0, 0], sizes = [4, 1, 16], strides = [1, 1, 1]} : vector<4x4x16xf32> to vector<4x1x16xf32>
    %87 = vector.extract_strided_slice %57 {offsets = [0, 0, 0], sizes = [1, 4, 16], strides = [1, 1, 1]} : vector<4x4x16xf32> to vector<1x4x16xf32>
    %88 = vector.broadcast %86 : vector<4x1x16xf32> to vector<4x4x16xf32>
    %89 = vector.broadcast %87 : vector<1x4x16xf32> to vector<4x4x16xf32>
    %90 = arith.mulf %88, %89 : vector<4x4x16xf32>
    %91 = vector.extract_strided_slice %85 {offsets = [0, 1, 0], sizes = [4, 1, 16], strides = [1, 1, 1]} : vector<4x4x16xf32> to vector<4x1x16xf32>
    %92 = vector.extract_strided_slice %57 {offsets = [1, 0, 0], sizes = [1, 4, 16], strides = [1, 1, 1]} : vector<4x4x16xf32> to vector<1x4x16xf32>
    %93 = vector.broadcast %91 : vector<4x1x16xf32> to vector<4x4x16xf32>
    %94 = vector.broadcast %92 : vector<1x4x16xf32> to vector<4x4x16xf32>
    %95 = arith.mulf %93, %94 : vector<4x4x16xf32>
    %96 = arith.addf %90, %95 : vector<4x4x16xf32>
    %97 = vector.extract_strided_slice %85 {offsets = [0, 2, 0], sizes = [4, 1, 16], strides = [1, 1, 1]} : vector<4x4x16xf32> to vector<4x1x16xf32>
    %98 = vector.extract_strided_slice %57 {offsets = [2, 0, 0], sizes = [1, 4, 16], strides = [1, 1, 1]} : vector<4x4x16xf32> to vector<1x4x16xf32>
    %99 = vector.broadcast %97 : vector<4x1x16xf32> to vector<4x4x16xf32>
    %100 = vector.broadcast %98 : vector<1x4x16xf32> to vector<4x4x16xf32>
    %101 = arith.mulf %99, %100 : vector<4x4x16xf32>
    %102 = arith.addf %96, %101 : vector<4x4x16xf32>
    %103 = vector.extract_strided_slice %85 {offsets = [0, 3, 0], sizes = [4, 1, 16], strides = [1, 1, 1]} : vector<4x4x16xf32> to vector<4x1x16xf32>
    %104 = vector.extract_strided_slice %57 {offsets = [3, 0, 0], sizes = [1, 4, 16], strides = [1, 1, 1]} : vector<4x4x16xf32> to vector<1x4x16xf32>
    %105 = vector.broadcast %103 : vector<4x1x16xf32> to vector<4x4x16xf32>
    %106 = vector.broadcast %104 : vector<1x4x16xf32> to vector<4x4x16xf32>
    %107 = arith.mulf %105, %106 : vector<4x4x16xf32>
    %108 = arith.addf %102, %107 : vector<4x4x16xf32>
    %109 = vector.extract_strided_slice %85 {offsets = [0, 0, 0], sizes = [4, 1, 16], strides = [1, 1, 1]} : vector<4x4x16xf32> to vector<4x1x16xf32>
    %110 = vector.extract_strided_slice %85 {offsets = [0, 0, 0], sizes = [1, 4, 16], strides = [1, 1, 1]} : vector<4x4x16xf32> to vector<1x4x16xf32>
    %111 = vector.broadcast %109 : vector<4x1x16xf32> to vector<4x4x16xf32>
    %112 = vector.broadcast %110 : vector<1x4x16xf32> to vector<4x4x16xf32>
    %113 = arith.mulf %111, %112 : vector<4x4x16xf32>
    %114 = vector.extract_strided_slice %85 {offsets = [0, 1, 0], sizes = [4, 1, 16], strides = [1, 1, 1]} : vector<4x4x16xf32> to vector<4x1x16xf32>
    %115 = vector.extract_strided_slice %85 {offsets = [1, 0, 0], sizes = [1, 4, 16], strides = [1, 1, 1]} : vector<4x4x16xf32> to vector<1x4x16xf32>
    %116 = vector.broadcast %114 : vector<4x1x16xf32> to vector<4x4x16xf32>
    %117 = vector.broadcast %115 : vector<1x4x16xf32> to vector<4x4x16xf32>
    %118 = arith.mulf %116, %117 : vector<4x4x16xf32>
    %119 = arith.addf %113, %118 : vector<4x4x16xf32>
    %120 = vector.extract_strided_slice %85 {offsets = [0, 2, 0], sizes = [4, 1, 16], strides = [1, 1, 1]} : vector<4x4x16xf32> to vector<4x1x16xf32>
    %121 = vector.extract_strided_slice %85 {offsets = [2, 0, 0], sizes = [1, 4, 16], strides = [1, 1, 1]} : vector<4x4x16xf32> to vector<1x4x16xf32>
    %122 = vector.broadcast %120 : vector<4x1x16xf32> to vector<4x4x16xf32>
    %123 = vector.broadcast %121 : vector<1x4x16xf32> to vector<4x4x16xf32>
    %124 = arith.mulf %122, %123 : vector<4x4x16xf32>
    %125 = arith.addf %119, %124 : vector<4x4x16xf32>
    %126 = vector.extract_strided_slice %85 {offsets = [0, 3, 0], sizes = [4, 1, 16], strides = [1, 1, 1]} : vector<4x4x16xf32> to vector<4x1x16xf32>
    %127 = vector.extract_strided_slice %85 {offsets = [3, 0, 0], sizes = [1, 4, 16], strides = [1, 1, 1]} : vector<4x4x16xf32> to vector<1x4x16xf32>
    %128 = vector.broadcast %126 : vector<4x1x16xf32> to vector<4x4x16xf32>
    %129 = vector.broadcast %127 : vector<1x4x16xf32> to vector<4x4x16xf32>
    %130 = arith.mulf %128, %129 : vector<4x4x16xf32>
    %131 = arith.addf %125, %130 : vector<4x4x16xf32>
    %132 = arith.addf %62, %57 : vector<4x4x16xf32>
    %cst_20 = arith.constant 5.000000e-01 : f32
    %133 = vector.broadcast %cst_20 : f32 to vector<4x4x16xf32>
    %134 = arith.mulf %133, %85 : vector<4x4x16xf32>
    %135 = arith.addf %132, %134 : vector<4x4x16xf32>
    %cst_21 = arith.constant 0.166666672 : f32
    %136 = vector.broadcast %cst_21 : f32 to vector<4x4x16xf32>
    %137 = arith.mulf %136, %108 : vector<4x4x16xf32>
    %138 = arith.addf %135, %137 : vector<4x4x16xf32>
    %cst_22 = arith.constant 0.0416666679 : f32
    %139 = vector.broadcast %cst_22 : f32 to vector<4x4x16xf32>
    %140 = arith.mulf %139, %131 : vector<4x4x16xf32>
    %141 = arith.addf %138, %140 : vector<4x4x16xf32>
    %142 = vector.extract_strided_slice %141 {offsets = [0, 0, 0], sizes = [4, 1, 16], strides = [1, 1, 1]} : vector<4x4x16xf32> to vector<4x1x16xf32>
    %143 = vector.extract_strided_slice %141 {offsets = [0, 0, 0], sizes = [1, 4, 16], strides = [1, 1, 1]} : vector<4x4x16xf32> to vector<1x4x16xf32>
    %144 = vector.broadcast %142 : vector<4x1x16xf32> to vector<4x4x16xf32>
    %145 = vector.broadcast %143 : vector<1x4x16xf32> to vector<4x4x16xf32>
    %146 = arith.mulf %144, %145 : vector<4x4x16xf32>
    %147 = vector.extract_strided_slice %141 {offsets = [0, 1, 0], sizes = [4, 1, 16], strides = [1, 1, 1]} : vector<4x4x16xf32> to vector<4x1x16xf32>
    %148 = vector.extract_strided_slice %141 {offsets = [1, 0, 0], sizes = [1, 4, 16], strides = [1, 1, 1]} : vector<4x4x16xf32> to vector<1x4x16xf32>
    %149 = vector.broadcast %147 : vector<4x1x16xf32> to vector<4x4x16xf32>
    %150 = vector.broadcast %148 : vector<1x4x16xf32> to vector<4x4x16xf32>
    %151 = arith.mulf %149, %150 : vector<4x4x16xf32>
    %152 = arith.addf %146, %151 : vector<4x4x16xf32>
    %153 = vector.extract_strided_slice %141 {offsets = [0, 2, 0], sizes = [4, 1, 16], strides = [1, 1, 1]} : vector<4x4x16xf32> to vector<4x1x16xf32>
    %154 = vector.extract_strided_slice %141 {offsets = [2, 0, 0], sizes = [1, 4, 16], strides = [1, 1, 1]} : vector<4x4x16xf32> to vector<1x4x16xf32>
    %155 = vector.broadcast %153 : vector<4x1x16xf32> to vector<4x4x16xf32>
    %156 = vector.broadcast %154 : vector<1x4x16xf32> to vector<4x4x16xf32>
    %157 = arith.mulf %155, %156 : vector<4x4x16xf32>
    %158 = arith.addf %152, %157 : vector<4x4x16xf32>
    %159 = vector.extract_strided_slice %141 {offsets = [0, 3, 0], sizes = [4, 1, 16], strides = [1, 1, 1]} : vector<4x4x16xf32> to vector<4x1x16xf32>
    %160 = vector.extract_strided_slice %141 {offsets = [3, 0, 0], sizes = [1, 4, 16], strides = [1, 1, 1]} : vector<4x4x16xf32> to vector<1x4x16xf32>
    %161 = vector.broadcast %159 : vector<4x1x16xf32> to vector<4x4x16xf32>
    %162 = vector.broadcast %160 : vector<1x4x16xf32> to vector<4x4x16xf32>
    %163 = arith.mulf %161, %162 : vector<4x4x16xf32>
    %164 = arith.addf %158, %163 : vector<4x4x16xf32>
    %165 = vector.extract_strided_slice %164 {offsets = [0, 0, 0], sizes = [4, 1, 16], strides = [1, 1, 1]} : vector<4x4x16xf32> to vector<4x1x16xf32>
    %166 = vector.extract_strided_slice %164 {offsets = [0, 0, 0], sizes = [1, 4, 16], strides = [1, 1, 1]} : vector<4x4x16xf32> to vector<1x4x16xf32>
    %167 = vector.broadcast %165 : vector<4x1x16xf32> to vector<4x4x16xf32>
    %168 = vector.broadcast %166 : vector<1x4x16xf32> to vector<4x4x16xf32>
    %169 = arith.mulf %167, %168 : vector<4x4x16xf32>
    %170 = vector.extract_strided_slice %164 {offsets = [0, 1, 0], sizes = [4, 1, 16], strides = [1, 1, 1]} : vector<4x4x16xf32> to vector<4x1x16xf32>
    %171 = vector.extract_strided_slice %164 {offsets = [1, 0, 0], sizes = [1, 4, 16], strides = [1, 1, 1]} : vector<4x4x16xf32> to vector<1x4x16xf32>
    %172 = vector.broadcast %170 : vector<4x1x16xf32> to vector<4x4x16xf32>
    %173 = vector.broadcast %171 : vector<1x4x16xf32> to vector<4x4x16xf32>
    %174 = arith.mulf %172, %173 : vector<4x4x16xf32>
    %175 = arith.addf %169, %174 : vector<4x4x16xf32>
    %176 = vector.extract_strided_slice %164 {offsets = [0, 2, 0], sizes = [4, 1, 16], strides = [1, 1, 1]} : vector<4x4x16xf32> to vector<4x1x16xf32>
    %177 = vector.extract_strided_slice %164 {offsets = [2, 0, 0], sizes = [1, 4, 16], strides = [1, 1, 1]} : vector<4x4x16xf32> to vector<1x4x16xf32>
    %178 = vector.broadcast %176 : vector<4x1x16xf32> to vector<4x4x16xf32>
    %179 = vector.broadcast %177 : vector<1x4x16xf32> to vector<4x4x16xf32>
    %180 = arith.mulf %178, %179 : vector<4x4x16xf32>
    %181 = arith.addf %175, %180 : vector<4x4x16xf32>
    %182 = vector.extract_strided_slice %164 {offsets = [0, 3, 0], sizes = [4, 1, 16], strides = [1, 1, 1]} : vector<4x4x16xf32> to vector<4x1x16xf32>
    %183 = vector.extract_strided_slice %164 {offsets = [3, 0, 0], sizes = [1, 4, 16], strides = [1, 1, 1]} : vector<4x4x16xf32> to vector<1x4x16xf32>
    %184 = vector.broadcast %182 : vector<4x1x16xf32> to vector<4x4x16xf32>
    %185 = vector.broadcast %183 : vector<1x4x16xf32> to vector<4x4x16xf32>
    %186 = arith.mulf %184, %185 : vector<4x4x16xf32>
    %187 = arith.addf %181, %186 : vector<4x4x16xf32>
    %188 = vector.extract_strided_slice %187 {offsets = [0, 0, 0], sizes = [1, 4, 16], strides = [1, 1, 1]} : vector<4x4x16xf32> to vector<1x4x16xf32>
    %189 = vector.shape_cast %188 : vector<1x4x16xf32> to vector<4x16xf32>
    %c0_23 = arith.constant 0 : index
    %c0_24 = arith.constant 0 : index
    %190 = vector.load %arg10[%c0_23, %c0_24] : memref<32x16xf32, #tpu.memory_space<vmem>>, vector<4x16xf32>
    tpu.vector_store %arg10[%c0_23, %c0_24], %189 {strides = array<i32>} : memref<32x16xf32, #tpu.memory_space<vmem>>, vector<4x16xf32>,
    %191 = vector.extract_strided_slice %187 {offsets = [1, 0, 0], sizes = [1, 4, 16], strides = [1, 1, 1]} : vector<4x4x16xf32> to vector<1x4x16xf32>
    %192 = vector.shape_cast %191 : vector<1x4x16xf32> to vector<4x16xf32>
    %c4 = arith.constant 4 : index
    %c0_25 = arith.constant 0 : index
    %193 = vector.load %arg10[%c4, %c0_25] : memref<32x16xf32, #tpu.memory_space<vmem>>, vector<4x16xf32>
    tpu.vector_store %arg10[%c4, %c0_25], %192 {strides = array<i32>} : memref<32x16xf32, #tpu.memory_space<vmem>>, vector<4x16xf32>,
    %194 = vector.extract_strided_slice %187 {offsets = [2, 0, 0], sizes = [1, 4, 16], strides = [1, 1, 1]} : vector<4x4x16xf32> to vector<1x4x16xf32>
    %195 = vector.shape_cast %194 : vector<1x4x16xf32> to vector<4x16xf32>
    %c8 = arith.constant 8 : index
    %c0_26 = arith.constant 0 : index
    %196 = vector.load %arg10[%c8, %c0_26] : memref<32x16xf32, #tpu.memory_space<vmem>>, vector<4x16xf32>
    tpu.vector_store %arg10[%c8, %c0_26], %195 {strides = array<i32>} : memref<32x16xf32, #tpu.memory_space<vmem>>, vector<4x16xf32>,
    %197 = vector.extract_strided_slice %187 {offsets = [3, 0, 0], sizes = [1, 4, 16], strides = [1, 1, 1]} : vector<4x4x16xf32> to vector<1x4x16xf32>
    %198 = vector.shape_cast %197 : vector<1x4x16xf32> to vector<4x16xf32>
    %c12 = arith.constant 12 : index
    %c0_27 = arith.constant 0 : index
    %199 = vector.load %arg10[%c12, %c0_27] : memref<32x16xf32, #tpu.memory_space<vmem>>, vector<4x16xf32>
    tpu.vector_store %arg10[%c12, %c0_27], %198 {strides = array<i32>} : memref<32x16xf32, #tpu.memory_space<vmem>>, vector<4x16xf32>,
    %200 = vector.extract_strided_slice %24 {offsets = [4, 0, 0, 0], sizes = [1, 4, 4, 1], strides = [1, 1, 1, 1]} : vector<8x4x4x1xf32> to vector<1x4x4x1xf32>
    %201 = vector.shape_cast %200 : vector<1x4x4x1xf32> to vector<4x4x1xf32>
    %202 = vector.extract_strided_slice %23 {offsets = [4, 0], sizes = [1, 16], strides = [1, 1]} : vector<8x16xf32> to vector<1x16xf32>
    %203 = vector.shape_cast %202 : vector<1x16xf32> to vector<1x1x16xf32>
    %204 = vector.broadcast %201 : vector<4x4x1xf32> to vector<4x4x16xf32>
    %205 = vector.broadcast %203 : vector<1x1x16xf32> to vector<4x4x16xf32>
    %206 = arith.mulf %204, %205 : vector<4x4x16xf32>
    %207 = vector.extract_strided_slice %24 {offsets = [5, 0, 0, 0], sizes = [1, 4, 4, 1], strides = [1, 1, 1, 1]} : vector<8x4x4x1xf32> to vector<1x4x4x1xf32>
    %208 = vector.shape_cast %207 : vector<1x4x4x1xf32> to vector<4x4x1xf32>
    %209 = vector.extract_strided_slice %23 {offsets = [5, 0], sizes = [1, 16], strides = [1, 1]} : vector<8x16xf32> to vector<1x16xf32>
    %210 = vector.shape_cast %209 : vector<1x16xf32> to vector<1x1x16xf32>
    %211 = vector.broadcast %208 : vector<4x4x1xf32> to vector<4x4x16xf32>
    %212 = vector.broadcast %210 : vector<1x1x16xf32> to vector<4x4x16xf32>
    %213 = arith.mulf %211, %212 : vector<4x4x16xf32>
    %214 = arith.addf %206, %213 : vector<4x4x16xf32>
    %215 = vector.extract_strided_slice %24 {offsets = [6, 0, 0, 0], sizes = [1, 4, 4, 1], strides = [1, 1, 1, 1]} : vector<8x4x4x1xf32> to vector<1x4x4x1xf32>
    %216 = vector.shape_cast %215 : vector<1x4x4x1xf32> to vector<4x4x1xf32>
    %217 = vector.extract_strided_slice %23 {offsets = [6, 0], sizes = [1, 16], strides = [1, 1]} : vector<8x16xf32> to vector<1x16xf32>
    %218 = vector.shape_cast %217 : vector<1x16xf32> to vector<1x1x16xf32>
    %219 = vector.broadcast %216 : vector<4x4x1xf32> to vector<4x4x16xf32>
    %220 = vector.broadcast %218 : vector<1x1x16xf32> to vector<4x4x16xf32>
    %221 = arith.mulf %219, %220 : vector<4x4x16xf32>
    %222 = arith.addf %214, %221 : vector<4x4x16xf32>
    %223 = vector.extract_strided_slice %24 {offsets = [7, 0, 0, 0], sizes = [1, 4, 4, 1], strides = [1, 1, 1, 1]} : vector<8x4x4x1xf32> to vector<1x4x4x1xf32>
    %224 = vector.shape_cast %223 : vector<1x4x4x1xf32> to vector<4x4x1xf32>
    %225 = vector.extract_strided_slice %23 {offsets = [7, 0], sizes = [1, 16], strides = [1, 1]} : vector<8x16xf32> to vector<1x16xf32>
    %226 = vector.shape_cast %225 : vector<1x16xf32> to vector<1x1x16xf32>
    %227 = vector.broadcast %224 : vector<4x4x1xf32> to vector<4x4x16xf32>
    %228 = vector.broadcast %226 : vector<1x1x16xf32> to vector<4x4x16xf32>
    %229 = arith.mulf %227, %228 : vector<4x4x16xf32>
    %230 = arith.addf %222, %229 : vector<4x4x16xf32>
    %cst_28 = arith.constant 2.500000e-01 : f32
    %231 = vector.broadcast %cst_28 : f32 to vector<4x4x16xf32>
    %232 = arith.mulf %230, %231 : vector<4x4x16xf32>
    %233 = tpu.iota {dimensions = array<i32: 0>} : vector<4x4x16xi32>
    %234 = tpu.iota {dimensions = array<i32: 1>} : vector<4x4x16xi32>
    %235 = arith.cmpi eq, %233, %234 : vector<4x4x16xi32>
    %236 = arith.extui %235 : vector<4x4x16xi1> to vector<4x4x16xi32>
    %237 = arith.sitofp %236 : vector<4x4x16xi32> to vector<4x4x16xf32>
    %238 = vector.extract_strided_slice %232 {offsets = [0, 0, 0], sizes = [4, 1, 16], strides = [1, 1, 1]} : vector<4x4x16xf32> to vector<4x1x16xf32>
    %239 = vector.extract_strided_slice %232 {offsets = [0, 0, 0], sizes = [1, 4, 16], strides = [1, 1, 1]} : vector<4x4x16xf32> to vector<1x4x16xf32>
    %240 = vector.broadcast %238 : vector<4x1x16xf32> to vector<4x4x16xf32>
    %241 = vector.broadcast %239 : vector<1x4x16xf32> to vector<4x4x16xf32>
    %242 = arith.mulf %240, %241 : vector<4x4x16xf32>
    %243 = vector.extract_strided_slice %232 {offsets = [0, 1, 0], sizes = [4, 1, 16], strides = [1, 1, 1]} : vector<4x4x16xf32> to vector<4x1x16xf32>
    %244 = vector.extract_strided_slice %232 {offsets = [1, 0, 0], sizes = [1, 4, 16], strides = [1, 1, 1]} : vector<4x4x16xf32> to vector<1x4x16xf32>
    %245 = vector.broadcast %243 : vector<4x1x16xf32> to vector<4x4x16xf32>
    %246 = vector.broadcast %244 : vector<1x4x16xf32> to vector<4x4x16xf32>
    %247 = arith.mulf %245, %246 : vector<4x4x16xf32>
    %248 = arith.addf %242, %247 : vector<4x4x16xf32>
    %249 = vector.extract_strided_slice %232 {offsets = [0, 2, 0], sizes = [4, 1, 16], strides = [1, 1, 1]} : vector<4x4x16xf32> to vector<4x1x16xf32>
    %250 = vector.extract_strided_slice %232 {offsets = [2, 0, 0], sizes = [1, 4, 16], strides = [1, 1, 1]} : vector<4x4x16xf32> to vector<1x4x16xf32>
    %251 = vector.broadcast %249 : vector<4x1x16xf32> to vector<4x4x16xf32>
    %252 = vector.broadcast %250 : vector<1x4x16xf32> to vector<4x4x16xf32>
    %253 = arith.mulf %251, %252 : vector<4x4x16xf32>
    %254 = arith.addf %248, %253 : vector<4x4x16xf32>
    %255 = vector.extract_strided_slice %232 {offsets = [0, 3, 0], sizes = [4, 1, 16], strides = [1, 1, 1]} : vector<4x4x16xf32> to vector<4x1x16xf32>
    %256 = vector.extract_strided_slice %232 {offsets = [3, 0, 0], sizes = [1, 4, 16], strides = [1, 1, 1]} : vector<4x4x16xf32> to vector<1x4x16xf32>
    %257 = vector.broadcast %255 : vector<4x1x16xf32> to vector<4x4x16xf32>
    %258 = vector.broadcast %256 : vector<1x4x16xf32> to vector<4x4x16xf32>
    %259 = arith.mulf %257, %258 : vector<4x4x16xf32>
    %260 = arith.addf %254, %259 : vector<4x4x16xf32>
    %261 = vector.extract_strided_slice %260 {offsets = [0, 0, 0], sizes = [4, 1, 16], strides = [1, 1, 1]} : vector<4x4x16xf32> to vector<4x1x16xf32>
    %262 = vector.extract_strided_slice %232 {offsets = [0, 0, 0], sizes = [1, 4, 16], strides = [1, 1, 1]} : vector<4x4x16xf32> to vector<1x4x16xf32>
    %263 = vector.broadcast %261 : vector<4x1x16xf32> to vector<4x4x16xf32>
    %264 = vector.broadcast %262 : vector<1x4x16xf32> to vector<4x4x16xf32>
    %265 = arith.mulf %263, %264 : vector<4x4x16xf32>
    %266 = vector.extract_strided_slice %260 {offsets = [0, 1, 0], sizes = [4, 1, 16], strides = [1, 1, 1]} : vector<4x4x16xf32> to vector<4x1x16xf32>
    %267 = vector.extract_strided_slice %232 {offsets = [1, 0, 0], sizes = [1, 4, 16], strides = [1, 1, 1]} : vector<4x4x16xf32> to vector<1x4x16xf32>
    %268 = vector.broadcast %266 : vector<4x1x16xf32> to vector<4x4x16xf32>
    %269 = vector.broadcast %267 : vector<1x4x16xf32> to vector<4x4x16xf32>
    %270 = arith.mulf %268, %269 : vector<4x4x16xf32>
    %271 = arith.addf %265, %270 : vector<4x4x16xf32>
    %272 = vector.extract_strided_slice %260 {offsets = [0, 2, 0], sizes = [4, 1, 16], strides = [1, 1, 1]} : vector<4x4x16xf32> to vector<4x1x16xf32>
    %273 = vector.extract_strided_slice %232 {offsets = [2, 0, 0], sizes = [1, 4, 16], strides = [1, 1, 1]} : vector<4x4x16xf32> to vector<1x4x16xf32>
    %274 = vector.broadcast %272 : vector<4x1x16xf32> to vector<4x4x16xf32>
    %275 = vector.broadcast %273 : vector<1x4x16xf32> to vector<4x4x16xf32>
    %276 = arith.mulf %274, %275 : vector<4x4x16xf32>
    %277 = arith.addf %271, %276 : vector<4x4x16xf32>
    %278 = vector.extract_strided_slice %260 {offsets = [0, 3, 0], sizes = [4, 1, 16], strides = [1, 1, 1]} : vector<4x4x16xf32> to vector<4x1x16xf32>
    %279 = vector.extract_strided_slice %232 {offsets = [3, 0, 0], sizes = [1, 4, 16], strides = [1, 1, 1]} : vector<4x4x16xf32> to vector<1x4x16xf32>
    %280 = vector.broadcast %278 : vector<4x1x16xf32> to vector<4x4x16xf32>
    %281 = vector.broadcast %279 : vector<1x4x16xf32> to vector<4x4x16xf32>
    %282 = arith.mulf %280, %281 : vector<4x4x16xf32>
    %283 = arith.addf %277, %282 : vector<4x4x16xf32>
    %284 = vector.extract_strided_slice %260 {offsets = [0, 0, 0], sizes = [4, 1, 16], strides = [1, 1, 1]} : vector<4x4x16xf32> to vector<4x1x16xf32>
    %285 = vector.extract_strided_slice %260 {offsets = [0, 0, 0], sizes = [1, 4, 16], strides = [1, 1, 1]} : vector<4x4x16xf32> to vector<1x4x16xf32>
    %286 = vector.broadcast %284 : vector<4x1x16xf32> to vector<4x4x16xf32>
    %287 = vector.broadcast %285 : vector<1x4x16xf32> to vector<4x4x16xf32>
    %288 = arith.mulf %286, %287 : vector<4x4x16xf32>
    %289 = vector.extract_strided_slice %260 {offsets = [0, 1, 0], sizes = [4, 1, 16], strides = [1, 1, 1]} : vector<4x4x16xf32> to vector<4x1x16xf32>
    %290 = vector.extract_strided_slice %260 {offsets = [1, 0, 0], sizes = [1, 4, 16], strides = [1, 1, 1]} : vector<4x4x16xf32> to vector<1x4x16xf32>
    %291 = vector.broadcast %289 : vector<4x1x16xf32> to vector<4x4x16xf32>
    %292 = vector.broadcast %290 : vector<1x4x16xf32> to vector<4x4x16xf32>
    %293 = arith.mulf %291, %292 : vector<4x4x16xf32>
    %294 = arith.addf %288, %293 : vector<4x4x16xf32>
    %295 = vector.extract_strided_slice %260 {offsets = [0, 2, 0], sizes = [4, 1, 16], strides = [1, 1, 1]} : vector<4x4x16xf32> to vector<4x1x16xf32>
    %296 = vector.extract_strided_slice %260 {offsets = [2, 0, 0], sizes = [1, 4, 16], strides = [1, 1, 1]} : vector<4x4x16xf32> to vector<1x4x16xf32>
    %297 = vector.broadcast %295 : vector<4x1x16xf32> to vector<4x4x16xf32>
    %298 = vector.broadcast %296 : vector<1x4x16xf32> to vector<4x4x16xf32>
    %299 = arith.mulf %297, %298 : vector<4x4x16xf32>
    %300 = arith.addf %294, %299 : vector<4x4x16xf32>
    %301 = vector.extract_strided_slice %260 {offsets = [0, 3, 0], sizes = [4, 1, 16], strides = [1, 1, 1]} : vector<4x4x16xf32> to vector<4x1x16xf32>
    %302 = vector.extract_strided_slice %260 {offsets = [3, 0, 0], sizes = [1, 4, 16], strides = [1, 1, 1]} : vector<4x4x16xf32> to vector<1x4x16xf32>
    %303 = vector.broadcast %301 : vector<4x1x16xf32> to vector<4x4x16xf32>
    %304 = vector.broadcast %302 : vector<1x4x16xf32> to vector<4x4x16xf32>
    %305 = arith.mulf %303, %304 : vector<4x4x16xf32>
    %306 = arith.addf %300, %305 : vector<4x4x16xf32>
    %307 = arith.addf %237, %232 : vector<4x4x16xf32>
    %cst_29 = arith.constant 5.000000e-01 : f32
    %308 = vector.broadcast %cst_29 : f32 to vector<4x4x16xf32>
    %309 = arith.mulf %308, %260 : vector<4x4x16xf32>
    %310 = arith.addf %307, %309 : vector<4x4x16xf32>
    %cst_30 = arith.constant 0.166666672 : f32
    %311 = vector.broadcast %cst_30 : f32 to vector<4x4x16xf32>
    %312 = arith.mulf %311, %283 : vector<4x4x16xf32>
    %313 = arith.addf %310, %312 : vector<4x4x16xf32>
    %cst_31 = arith.constant 0.0416666679 : f32
    %314 = vector.broadcast %cst_31 : f32 to vector<4x4x16xf32>
    %315 = arith.mulf %314, %306 : vector<4x4x16xf32>
    %316 = arith.addf %313, %315 : vector<4x4x16xf32>
    %317 = vector.extract_strided_slice %316 {offsets = [0, 0, 0], sizes = [4, 1, 16], strides = [1, 1, 1]} : vector<4x4x16xf32> to vector<4x1x16xf32>
    %318 = vector.extract_strided_slice %316 {offsets = [0, 0, 0], sizes = [1, 4, 16], strides = [1, 1, 1]} : vector<4x4x16xf32> to vector<1x4x16xf32>
    %319 = vector.broadcast %317 : vector<4x1x16xf32> to vector<4x4x16xf32>
    %320 = vector.broadcast %318 : vector<1x4x16xf32> to vector<4x4x16xf32>
    %321 = arith.mulf %319, %320 : vector<4x4x16xf32>
    %322 = vector.extract_strided_slice %316 {offsets = [0, 1, 0], sizes = [4, 1, 16], strides = [1, 1, 1]} : vector<4x4x16xf32> to vector<4x1x16xf32>
    %323 = vector.extract_strided_slice %316 {offsets = [1, 0, 0], sizes = [1, 4, 16], strides = [1, 1, 1]} : vector<4x4x16xf32> to vector<1x4x16xf32>
    %324 = vector.broadcast %322 : vector<4x1x16xf32> to vector<4x4x16xf32>
    %325 = vector.broadcast %323 : vector<1x4x16xf32> to vector<4x4x16xf32>
    %326 = arith.mulf %324, %325 : vector<4x4x16xf32>
    %327 = arith.addf %321, %326 : vector<4x4x16xf32>
    %328 = vector.extract_strided_slice %316 {offsets = [0, 2, 0], sizes = [4, 1, 16], strides = [1, 1, 1]} : vector<4x4x16xf32> to vector<4x1x16xf32>
    %329 = vector.extract_strided_slice %316 {offsets = [2, 0, 0], sizes = [1, 4, 16], strides = [1, 1, 1]} : vector<4x4x16xf32> to vector<1x4x16xf32>
    %330 = vector.broadcast %328 : vector<4x1x16xf32> to vector<4x4x16xf32>
    %331 = vector.broadcast %329 : vector<1x4x16xf32> to vector<4x4x16xf32>
    %332 = arith.mulf %330, %331 : vector<4x4x16xf32>
    %333 = arith.addf %327, %332 : vector<4x4x16xf32>
    %334 = vector.extract_strided_slice %316 {offsets = [0, 3, 0], sizes = [4, 1, 16], strides = [1, 1, 1]} : vector<4x4x16xf32> to vector<4x1x16xf32>
    %335 = vector.extract_strided_slice %316 {offsets = [3, 0, 0], sizes = [1, 4, 16], strides = [1, 1, 1]} : vector<4x4x16xf32> to vector<1x4x16xf32>
    %336 = vector.broadcast %334 : vector<4x1x16xf32> to vector<4x4x16xf32>
    %337 = vector.broadcast %335 : vector<1x4x16xf32> to vector<4x4x16xf32>
    %338 = arith.mulf %336, %337 : vector<4x4x16xf32>
    %339 = arith.addf %333, %338 : vector<4x4x16xf32>
    %340 = vector.extract_strided_slice %339 {offsets = [0, 0, 0], sizes = [4, 1, 16], strides = [1, 1, 1]} : vector<4x4x16xf32> to vector<4x1x16xf32>
    %341 = vector.extract_strided_slice %339 {offsets = [0, 0, 0], sizes = [1, 4, 16], strides = [1, 1, 1]} : vector<4x4x16xf32> to vector<1x4x16xf32>
    %342 = vector.broadcast %340 : vector<4x1x16xf32> to vector<4x4x16xf32>
    %343 = vector.broadcast %341 : vector<1x4x16xf32> to vector<4x4x16xf32>
    %344 = arith.mulf %342, %343 : vector<4x4x16xf32>
    %345 = vector.extract_strided_slice %339 {offsets = [0, 1, 0], sizes = [4, 1, 16], strides = [1, 1, 1]} : vector<4x4x16xf32> to vector<4x1x16xf32>
    %346 = vector.extract_strided_slice %339 {offsets = [1, 0, 0], sizes = [1, 4, 16], strides = [1, 1, 1]} : vector<4x4x16xf32> to vector<1x4x16xf32>
    %347 = vector.broadcast %345 : vector<4x1x16xf32> to vector<4x4x16xf32>
    %348 = vector.broadcast %346 : vector<1x4x16xf32> to vector<4x4x16xf32>
    %349 = arith.mulf %347, %348 : vector<4x4x16xf32>
    %350 = arith.addf %344, %349 : vector<4x4x16xf32>
    %351 = vector.extract_strided_slice %339 {offsets = [0, 2, 0], sizes = [4, 1, 16], strides = [1, 1, 1]} : vector<4x4x16xf32> to vector<4x1x16xf32>
    %352 = vector.extract_strided_slice %339 {offsets = [2, 0, 0], sizes = [1, 4, 16], strides = [1, 1, 1]} : vector<4x4x16xf32> to vector<1x4x16xf32>
    %353 = vector.broadcast %351 : vector<4x1x16xf32> to vector<4x4x16xf32>
    %354 = vector.broadcast %352 : vector<1x4x16xf32> to vector<4x4x16xf32>
    %355 = arith.mulf %353, %354 : vector<4x4x16xf32>
    %356 = arith.addf %350, %355 : vector<4x4x16xf32>
    %357 = vector.extract_strided_slice %339 {offsets = [0, 3, 0], sizes = [4, 1, 16], strides = [1, 1, 1]} : vector<4x4x16xf32> to vector<4x1x16xf32>
    %358 = vector.extract_strided_slice %339 {offsets = [3, 0, 0], sizes = [1, 4, 16], strides = [1, 1, 1]} : vector<4x4x16xf32> to vector<1x4x16xf32>
    %359 = vector.broadcast %357 : vector<4x1x16xf32> to vector<4x4x16xf32>
    %360 = vector.broadcast %358 : vector<1x4x16xf32> to vector<4x4x16xf32>
    %361 = arith.mulf %359, %360 : vector<4x4x16xf32>
    %362 = arith.addf %356, %361 : vector<4x4x16xf32>
    %363 = vector.extract_strided_slice %362 {offsets = [0, 0, 0], sizes = [1, 4, 16], strides = [1, 1, 1]} : vector<4x4x16xf32> to vector<1x4x16xf32>
    %364 = vector.shape_cast %363 : vector<1x4x16xf32> to vector<4x16xf32>
    %c16 = arith.constant 16 : index
    %c0_32 = arith.constant 0 : index
    %365 = vector.load %arg10[%c16, %c0_32] : memref<32x16xf32, #tpu.memory_space<vmem>>, vector<4x16xf32>
    tpu.vector_store %arg10[%c16, %c0_32], %364 {strides = array<i32>} : memref<32x16xf32, #tpu.memory_space<vmem>>, vector<4x16xf32>,
    %366 = vector.extract_strided_slice %362 {offsets = [1, 0, 0], sizes = [1, 4, 16], strides = [1, 1, 1]} : vector<4x4x16xf32> to vector<1x4x16xf32>
    %367 = vector.shape_cast %366 : vector<1x4x16xf32> to vector<4x16xf32>
    %c20 = arith.constant 20 : index
    %c0_33 = arith.constant 0 : index
    %368 = vector.load %arg10[%c20, %c0_33] : memref<32x16xf32, #tpu.memory_space<vmem>>, vector<4x16xf32>
    tpu.vector_store %arg10[%c20, %c0_33], %367 {strides = array<i32>} : memref<32x16xf32, #tpu.memory_space<vmem>>, vector<4x16xf32>,
    %369 = vector.extract_strided_slice %362 {offsets = [2, 0, 0], sizes = [1, 4, 16], strides = [1, 1, 1]} : vector<4x4x16xf32> to vector<1x4x16xf32>
    %370 = vector.shape_cast %369 : vector<1x4x16xf32> to vector<4x16xf32>
    %c24 = arith.constant 24 : index
    %c0_34 = arith.constant 0 : index
    %371 = vector.load %arg10[%c24, %c0_34] : memref<32x16xf32, #tpu.memory_space<vmem>>, vector<4x16xf32>
    tpu.vector_store %arg10[%c24, %c0_34], %370 {strides = array<i32>} : memref<32x16xf32, #tpu.memory_space<vmem>>, vector<4x16xf32>,
    %372 = vector.extract_strided_slice %362 {offsets = [3, 0, 0], sizes = [1, 4, 16], strides = [1, 1, 1]} : vector<4x4x16xf32> to vector<1x4x16xf32>
    %373 = vector.shape_cast %372 : vector<1x4x16xf32> to vector<4x16xf32>
    %c28 = arith.constant 28 : index
    %c0_35 = arith.constant 0 : index
    %374 = vector.load %arg10[%c28, %c0_35] : memref<32x16xf32, #tpu.memory_space<vmem>>, vector<4x16xf32>
    tpu.vector_store %arg10[%c28, %c0_35], %373 {strides = array<i32>} : memref<32x16xf32, #tpu.memory_space<vmem>>, vector<4x16xf32>,
    %c0_36 = arith.constant 0 : index
    %c0_37 = arith.constant 0 : index
    %375 = vector.load %arg10[%c0_36, %c0_37] : memref<32x16xf32, #tpu.memory_space<vmem>>, vector<32x16xf32>
    %376 = tpu.transpose %375, [1, 0] : vector<32x16xf32> -> vector<16x32xf32>
    %377 = arith.truncf %376 : vector<16x32xf32> to vector<16x32xbf16>
    %c0_38 = arith.constant 0 : index
    %c0_39 = arith.constant 0 : index
    %378 = vector.load %arg6[%c0_38, %c0_39] : memref<32x1024xbf16, #tpu.memory_space<vmem>>, vector<32x1024xbf16>
    %cst_40 = arith.constant dense<0.000000e+00> : vector<16x1024xf32>
    %379 = tpu.matmul %377, %378, %cst_40 {dimension_numbers = #tpu.dot_dimension_numbers<[1], [0], [0], [1], [0, 0, 1, 1], [], []>} : vector<16x32xbf16>, vector<32x1024xbf16>, vector<16x1024xf32> -> vector<16x1024xf32>
    %380 = vector.broadcast %3 : vector<1x1024xf32> to vector<16x1024xf32>
    %381 = arith.addf %379, %380 : vector<16x1024xf32>
    %c0_41 = arith.constant 0 : index
    %c0_42 = arith.constant 0 : index
    %382 = vector.load %arg8[%c0_41, %c0_42] : memref<16x128xf32, #tpu.memory_space<vmem>>, vector<16x32xf32>
    tpu.vector_store %arg8[%c0_41, %c0_42], %8 {strides = array<i32>} : memref<16x128xf32, #tpu.memory_space<vmem>>, vector<16x32xf32>,
    %c0_43 = arith.constant 0 : index
    %c32 = arith.constant 32 : index
    %383 = vector.load %arg8[%c0_43, %c32] : memref<16x128xf32, #tpu.memory_space<vmem>>, vector<16x8xf32>
    tpu.vector_store %arg8[%c0_43, %c32], %21 {strides = array<i32>} : memref<16x128xf32, #tpu.memory_space<vmem>>, vector<16x8xf32>,
    %c0_44 = arith.constant 0 : index
    %c40 = arith.constant 40 : index
    %384 = vector.load %arg8[%c0_44, %c40] : memref<16x128xf32, #tpu.memory_space<vmem>>, vector<16x8xf32>
    tpu.vector_store %arg8[%c0_44, %c40], %22 {strides = array<i32>} : memref<16x128xf32, #tpu.memory_space<vmem>>, vector<16x8xf32>,
    %c0_45 = arith.constant 0 : index
    %c48 = arith.constant 48 : index
    %385 = vector.load %arg8[%c0_45, %c48] : memref<16x128xf32, #tpu.memory_space<vmem>>, vector<16x32xf32>
    tpu.vector_store %arg8[%c0_45, %c48], %376 {strides = array<i32>} : memref<16x128xf32, #tpu.memory_space<vmem>>, vector<16x32xf32>,
    %386 = arith.truncf %381 : vector<16x1024xf32> to vector<16x1024xbf16>
    %c0_46 = arith.constant 0 : index
    %c0_47 = arith.constant 0 : index
    %387 = vector.load %arg9[%c0_46, %c0_47] : memref<16x1024xbf16, #tpu.memory_space<vmem>>, vector<16x1024xbf16>
    tpu.vector_store %arg9[%c0_46, %c0_47], %386 {strides = array<i32>} : memref<16x1024xbf16, #tpu.memory_space<vmem>>, vector<16x1024xbf16>,
    return
  }
  func.func @transform_0(%arg0: i32) -> (i32, i32) {
    %c0_i32 = arith.constant 0 : i32
    %c0_i32_0 = arith.constant 0 : i32
    return %arg0, %c0_i32 : i32, i32
  }
  func.func @transform_1(%arg0: i32) -> (i32, i32) {
    %c0_i32 = arith.constant 0 : i32
    %c0_i32_0 = arith.constant 0 : i32
    %c0_i32_1 = arith.constant 0 : i32
    return %c0_i32, %c0_i32_0 : i32, i32
  }
  func.func @transform_2(%arg0: i32) -> (i32, i32) {
    %c0_i32 = arith.constant 0 : i32
    %c0_i32_0 = arith.constant 0 : i32
    %c0_i32_1 = arith.constant 0 : i32
    return %c0_i32, %c0_i32_0 : i32, i32
  }
  func.func @transform_3(%arg0: i32) -> (i32, i32) {
    %c0_i32 = arith.constant 0 : i32
    %c0_i32_0 = arith.constant 0 : i32
    %c0_i32_1 = arith.constant 0 : i32
    return %c0_i32, %c0_i32_0 : i32, i32
  }
  func.func @transform_4(%arg0: i32) -> (i32, i32, i32, i32) {
    %c0_i32 = arith.constant 0 : i32
    %c0_i32_0 = arith.constant 0 : i32
    %c0_i32_1 = arith.constant 0 : i32
    %c0_i32_2 = arith.constant 0 : i32
    %c0_i32_3 = arith.constant 0 : i32
    return %c0_i32, %c0_i32_0, %c0_i32_1, %c0_i32_2 : i32, i32, i32, i32
  }
  func.func @transform_5(%arg0: i32) -> (i32, i32) {
    %c0_i32 = arith.constant 0 : i32
    %c0_i32_0 = arith.constant 0 : i32
    %c0_i32_1 = arith.constant 0 : i32
    return %c0_i32, %c0_i32_0 : i32, i32
  }
  func.func @transform_6(%arg0: i32) -> (i32, i32) {
    %c0_i32 = arith.constant 0 : i32
    %c0_i32_0 = arith.constant 0 : i32
    %c0_i32_1 = arith.constant 0 : i32
    return %c0_i32, %c0_i32_0 : i32, i32
  }
  func.func @transform_7(%arg0: i32) -> (i32, i32) {
    %c0_i32 = arith.constant 0 : i32
    %c0_i32_0 = arith.constant 0 : i32
    return %arg0, %c0_i32 : i32, i32
  }
  func.func @transform_8(%arg0: i32) -> (i32, i32) {
    %c0_i32 = arith.constant 0 : i32
    %c0_i32_0 = arith.constant 0 : i32
    return %arg0, %c0_i32 : i32, i32
  }
}

</mosaic_0001>

<llo_original>
// kernel: tpu_custom_call.1
$region0: #{tpu_custom_call.1}
  #allocation0 [shape = 'u32[]', space=smem, size = 0x4, offset = 0x4, fixed_abs, tag = 'smem constant byte address 0x4 - core index']
  #allocation1 [shape = 'u32[144,128]{1,0:T(1,128)}', space=vmem, size = 0x12000, scoped, tag = 'internal scratch']
  #allocation2 [shape = 'f32[32,16]{1,0:T(8,128)}', space=vmem, size = 0x4000, scoped, tag = 'scratch operand']
  %s0 = inlined_call_operand.hbm [shape: bf16[16,1024], index: 0, kind: input, shape index: {}]
  %s1 = inlined_call_operand.hbm [shape: bf16[1024,32], index: 1, kind: input, shape index: {}]
  %s2 = inlined_call_operand.hbm [shape: bf16[32,256], index: 2, kind: input, shape index: {}]
  %s3 = inlined_call_operand.hbm [shape: bf16[256,16], index: 3, kind: input, shape index: {}]
  %s4 = inlined_call_operand.hbm [shape: f32[8,4,4,1], index: 4, kind: input, shape index: {}]
  %s5 = inlined_call_operand.hbm [shape: bf16[32,1024], index: 5, kind: input, shape index: {}]
  %s6 = inlined_call_operand.hbm [shape: f32[1,1536], index: 6, kind: input, shape index: {}]
  %s7 = inlined_call_operand.hbm [shape: f32[16,128], index: 7, kind: output, shape index: {0}]
  %s8 = inlined_call_operand.hbm [shape: bf16[16,1024], index: 8, kind: output, shape index: {1}]
  %9 = xla_tuple %s7, %s8
  %s10 = sld [smem:[#allocation0]]
  $region74: #{tpu_custom_call.1} parent=0
    _
  %s12 = ssub.s32 1, %s10
  %s13 = scalar_select 0, %s12, %s10
  $region1: #{tpu_custom_call.1} parent=0
    #allocation3 [shape = 'u8[32768]{0}', space=vmem, size = 0x8000, scoped, tag = 'input window, operand 0, single buffered']
    #allocation4 [shape = 's32[1]{0}', space=sflag, size = 0x4, scoped, tag = 'scoped memory for tpu_custom_call.1']
    #allocation5 [shape = 's32[1]{0}', space=sflag, size = 0x4, scoped, tag = 'scoped memory for tpu_custom_call.1']
    #allocation6 [shape = 'u8[262144]{0}', space=vmem, size = 0x40000, scoped, tag = 'input window, operand 1, single buffered']
    #allocation7 [shape = 's32[1]{0}', space=sflag, size = 0x4, scoped, tag = 'scoped memory for tpu_custom_call.1']
    #allocation8 [shape = 'u8[16384]{0}', space=vmem, size = 0x4000, scoped, tag = 'input window, operand 2, single buffered']
    #allocation9 [shape = 'u8[65536]{0}', space=vmem, size = 0x10000, scoped, tag = 'input window, operand 3, single buffered']
    #allocation10 [shape = 's32[1]{0}', space=sflag, size = 0x4, scoped, tag = 'scoped memory for tpu_custom_call.1']
    #allocation11 [shape = 'u8[65536]{0}', space=vmem, size = 0x10000, scoped, tag = 'input window, operand 4, single buffered']
    #allocation12 [shape = 'u8[65536]{0}', space=vmem, size = 0x10000, scoped, tag = 'input window, operand 5, single buffered']
    #allocation13 [shape = 's32[1]{0}', space=sflag, size = 0x4, scoped, tag = 'scoped memory for tpu_custom_call.1']
    #allocation14 [shape = 'u8[6144]{0}', space=vmem, size = 0x1800, scoped, tag = 'input window, operand 6, single buffered']
    #allocation15 [shape = 'u8[8192]{0}', space=vmem, size = 0x2000, scoped, tag = 'output window, operand 0, single buffered']
    #allocation16 [shape = 'u8[32768]{0}', space=vmem, size = 0x8000, scoped, tag = 'output window, operand 1, single buffered']
    #allocation17 [shape = 's32[1]{0}', space=sflag, size = 0x4, scoped, tag = 'scoped memory for tpu_custom_call.1']
    %14 = vsyncpa [#allocation4], 0
    %15 = vsyncpa [#allocation7], 0
    %16 = vsyncpa [#allocation10], 0
    %17 = vsyncpa [#allocation13], 0
    %18 = vsyncpa [#allocation5], 0
    %19 = vsyncpa [#allocation17], 0
    // Predicated region
    $region2: #{tpu_custom_call.1} parent=1 // pred_check
      _
    $region3: #{tpu_custom_call.1} parent=1 // pred_check_branch
      %21 = sbr.rel (0) target = $region5
    $region4: #{tpu_custom_call.1} parent=1 // pred_region
      %s23 = ssub.s32 1024, 1024
      %24 = vsyncadd [#allocation4], %s23
      %s25 = sshll.u32 [#allocation3], 4
      %s26 = int_to_ptr.vmem [resolvable:$true] %s25
      %31 = dma.hbm_to_vmem [thread:$0]  %s0, 1024, %s26, [#allocation4], 512, 512, 32
    $region5: #{tpu_custom_call.1} parent=1 // pred_fallthru
      _
    // Predicated region
    $region6: #{tpu_custom_call.1} parent=1 // pred_check
      _
    $region7: #{tpu_custom_call.1} parent=1 // pred_check_branch
      %33 = sbr.rel (0) target = $region9
    $region8: #{tpu_custom_call.1} parent=1 // pred_region
      %s35 = ssub.s32 8192, 8192
      %36 = vsyncadd [#allocation7], %s35
      %s37 = sshll.u32 [#allocation6], 4
      %s38 = int_to_ptr.vmem [resolvable:$true] %s37
      %43 = dma.hbm_to_vmem [thread:$0]  %s1, 8192, %s38, [#allocation7], 64, 64, 4
    $region9: #{tpu_custom_call.1} parent=1 // pred_fallthru
      _
    // Predicated region
    $region10: #{tpu_custom_call.1} parent=1 // pred_check
      _
    $region11: #{tpu_custom_call.1} parent=1 // pred_check_branch
      %45 = sbr.rel (0) target = $region13
    $region12: #{tpu_custom_call.1} parent=1 // pred_region
      %s47 = ssub.s32 512, 512
      %48 = vsyncadd [#allocation7], %s47
      %s49 = sshll.u32 [#allocation8], 4
      %s50 = int_to_ptr.vmem [resolvable:$true] %s49
      %55 = dma.hbm_to_vmem [thread:$0]  %s2, 512, %s50, [#allocation7], 128, 128, 8
    $region13: #{tpu_custom_call.1} parent=1 // pred_fallthru
      _
    // Predicated region
    $region14: #{tpu_custom_call.1} parent=1 // pred_check
      _
    $region15: #{tpu_custom_call.1} parent=1 // pred_check_branch
      %57 = sbr.rel (0) target = $region17
    $region16: #{tpu_custom_call.1} parent=1 // pred_region
      %s59 = ssub.s32 2048, 2048
      %60 = vsyncadd [#allocation10], %s59
      %s61 = sshll.u32 [#allocation9], 4
      %s62 = int_to_ptr.vmem [resolvable:$true] %s61
      %67 = dma.hbm_to_vmem [thread:$0]  %s3, 2048, %s62, [#allocation10], 64, 64, 4
    $region17: #{tpu_custom_call.1} parent=1 // pred_fallthru
      _
    // Predicated region
    $region18: #{tpu_custom_call.1} parent=1 // pred_check
      _
    $region19: #{tpu_custom_call.1} parent=1 // pred_check_branch
      %69 = sbr.rel (0) target = $region21
    $region20: #{tpu_custom_call.1} parent=1 // pred_region
      %s71 = ssub.s32 2048, 2048
      %72 = vsyncadd [#allocation10], %s71
      %s73 = sshll.u32 [#allocation11], 4
      %s74 = int_to_ptr.vmem [resolvable:$true] %s73
      %79 = dma.hbm_to_vmem [thread:$0]  %s4, 2048, %s74, [#allocation10], 64, 64, 4
    $region21: #{tpu_custom_call.1} parent=1 // pred_fallthru
      _
    // Predicated region
    $region22: #{tpu_custom_call.1} parent=1 // pred_check
      _
    $region23: #{tpu_custom_call.1} parent=1 // pred_check_branch
      %81 = sbr.rel (0) target = $region25
    $region24: #{tpu_custom_call.1} parent=1 // pred_region
      %s83 = ssub.s32 2048, 2048
      %84 = vsyncadd [#allocation13], %s83
      %s85 = sshll.u32 [#allocation12], 4
      %s86 = int_to_ptr.vmem [resolvable:$true] %s85
      %91 = dma.hbm_to_vmem [thread:$0]  %s5, 2048, %s86, [#allocation13], 512, 512, 32
    $region25: #{tpu_custom_call.1} parent=1 // pred_fallthru
      _
    // Predicated region
    $region26: #{tpu_custom_call.1} parent=1 // pred_check
      _
    $region27: #{tpu_custom_call.1} parent=1 // pred_check_branch
      %93 = sbr.rel (0) target = $region29
    $region28: #{tpu_custom_call.1} parent=1 // pred_region
      %s95 = ssub.s32 192, 192
      %96 = vsyncadd [#allocation13], %s95
      %s98 = sshll.u32 [#allocation14], 4
      %s99 = int_to_ptr.vmem [resolvable:$true] %s98
      %101 = dma.hbm_to_vmem [thread:$0]  %s6, 192, %s99, [#allocation13]
    $region29: #{tpu_custom_call.1} parent=1 // pred_fallthru
      _
    // Predicated region
    $region30: #{tpu_custom_call.1} parent=1 // pred_check
      _
    $region31: #{tpu_custom_call.1} parent=1 // pred_check_branch
      %103 = sbr.rel (0) target = $region33
    $region32: #{tpu_custom_call.1} parent=1 // pred_region
      %104 = dma.done [#allocation4], 1024
    $region33: #{tpu_custom_call.1} parent=1 // pred_fallthru
      _
    // Predicated region
    $region34: #{tpu_custom_call.1} parent=1 // pred_check
      _
    $region35: #{tpu_custom_call.1} parent=1 // pred_check_branch
      %106 = sbr.rel (0) target = $region37
    $region36: #{tpu_custom_call.1} parent=1 // pred_region
      %107 = dma.done [#allocation7], 8192
    $region37: #{tpu_custom_call.1} parent=1 // pred_fallthru
      _
    // Predicated region
    $region38: #{tpu_custom_call.1} parent=1 // pred_check
      _
    $region39: #{tpu_custom_call.1} parent=1 // pred_check_branch
      %109 = sbr.rel (0) target = $region41
    $region40: #{tpu_custom_call.1} parent=1 // pred_region
      %110 = dma.done [#allocation7], 512
    $region41: #{tpu_custom_call.1} parent=1 // pred_fallthru
      _
    // Predicated region
    $region42: #{tpu_custom_call.1} parent=1 // pred_check
      _
    $region43: #{tpu_custom_call.1} parent=1 // pred_check_branch
      %112 = sbr.rel (0) target = $region45
    $region44: #{tpu_custom_call.1} parent=1 // pred_region
      %113 = dma.done [#allocation10], 2048
    $region45: #{tpu_custom_call.1} parent=1 // pred_fallthru
      _
    // Predicated region
    $region46: #{tpu_custom_call.1} parent=1 // pred_check
      _
    $region47: #{tpu_custom_call.1} parent=1 // pred_check_branch
      %115 = sbr.rel (0) target = $region49
    $region48: #{tpu_custom_call.1} parent=1 // pred_region
      %116 = dma.done [#allocation10], 2048
    $region49: #{tpu_custom_call.1} parent=1 // pred_fallthru
      _
    // Predicated region
    $region50: #{tpu_custom_call.1} parent=1 // pred_check
      _
    $region51: #{tpu_custom_call.1} parent=1 // pred_check_branch
      %118 = sbr.rel (0) target = $region53
    $region52: #{tpu_custom_call.1} parent=1 // pred_region
      %119 = dma.done [#allocation13], 2048
    $region53: #{tpu_custom_call.1} parent=1 // pred_fallthru
      _
    // Predicated region
    $region54: #{tpu_custom_call.1} parent=1 // pred_check
      _
    $region55: #{tpu_custom_call.1} parent=1 // pred_check_branch
      %121 = sbr.rel (0) target = $region57
    $region56: #{tpu_custom_call.1} parent=1 // pred_region
      %122 = dma.done [#allocation13], 192
    $region57: #{tpu_custom_call.1} parent=1 // pred_fallthru
      _
    %v124 = vld [vmem:[#allocation14] sm:$0x1]
    %v125 = vld [vmem:[#allocation14 + $0x1] sm:$0x3]
    %v126 = vld [vmem:[#allocation14 + $0x3] sm:$0x1]
    %v127 = vld [vmem:[#allocation14 + $0x4] sm:$0xff]
    %v128 = vld [vmem:[#allocation3] sm:$0xff]
    %v129 = vld [vmem:[#allocation3 + $0x8] sm:$0xff]
    %v130 = vld [vmem:[#allocation3 + $0x10] sm:$0xff]
    %v131 = vld [vmem:[#allocation3 + $0x18] sm:$0xff]
    %v132 = vld [vmem:[#allocation3 + $0x20] sm:$0xff]
    %v133 = vld [vmem:[#allocation3 + $0x28] sm:$0xff]
    %v134 = vld [vmem:[#allocation3 + $0x30] sm:$0xff]
    %v135 = vld [vmem:[#allocation3 + $0x38] sm:$0xff]
    %v136 = vld [vmem:[#allocation6] sm:$0xf]
    %v137 = vld [vmem:[#allocation6 + $0x4] sm:$0xf]
    %v138 = vld [vmem:[#allocation6 + $0x8] sm:$0xf]
    %v139 = vld [vmem:[#allocation6 + $0xc] sm:$0xf]
    %v140 = vld [vmem:[#allocation6 + $0x10] sm:$0xf]
    %v141 = vld [vmem:[#allocation6 + $0x14] sm:$0xf]
    %v142 = vld [vmem:[#allocation6 + $0x18] sm:$0xf]
    %v143 = vld [vmem:[#allocation6 + $0x1c] sm:$0xf]
    %v144 = vld [vmem:[#allocation6 + $0x20] sm:$0xf]
    %v145 = vld [vmem:[#allocation6 + $0x24] sm:$0xf]
    %v146 = vld [vmem:[#allocation6 + $0x28] sm:$0xf]
    %v147 = vld [vmem:[#allocation6 + $0x2c] sm:$0xf]
    %v148 = vld [vmem:[#allocation6 + $0x30] sm:$0xf]
    %v149 = vld [vmem:[#allocation6 + $0x34] sm:$0xf]
    %v150 = vld [vmem:[#allocation6 + $0x38] sm:$0xf]
    %v151 = vld [vmem:[#allocation6 + $0x3c] sm:$0xf]
    %v152 = vld [vmem:[#allocation6 + $0x40] sm:$0xf]
    %v153 = vld [vmem:[#allocation6 + $0x44] sm:$0xf]
    %v154 = vld [vmem:[#allocation6 + $0x48] sm:$0xf]
    %v155 = vld [vmem:[#allocation6 + $0x4c] sm:$0xf]
    %v156 = vld [vmem:[#allocation6 + $0x50] sm:$0xf]
    %v157 = vld [vmem:[#allocation6 + $0x54] sm:$0xf]
    %v158 = vld [vmem:[#allocation6 + $0x58] sm:$0xf]
    %v159 = vld [vmem:[#allocation6 + $0x5c] sm:$0xf]
    %v160 = vld [vmem:[#allocation6 + $0x60] sm:$0xf]
    %v161 = vld [vmem:[#allocation6 + $0x64] sm:$0xf]
    %v162 = vld [vmem:[#allocation6 + $0x68] sm:$0xf]
    %v163 = vld [vmem:[#allocation6 + $0x6c] sm:$0xf]
    %v164 = vld [vmem:[#allocation6 + $0x70] sm:$0xf]
    %v165 = vld [vmem:[#allocation6 + $0x74] sm:$0xf]
    %v166 = vld [vmem:[#allocation6 + $0x78] sm:$0xf]
    %v167 = vld [vmem:[#allocation6 + $0x7c] sm:$0xf]
    %v168 = vld [vmem:[#allocation6 + $0x80] sm:$0xf]
    %v169 = vld [vmem:[#allocation6 + $0x84] sm:$0xf]
    %v170 = vld [vmem:[#allocation6 + $0x88] sm:$0xf]
    %v171 = vld [vmem:[#allocation6 + $0x8c] sm:$0xf]
    %v172 = vld [vmem:[#allocation6 + $0x90] sm:$0xf]
    %v173 = vld [vmem:[#allocation6 + $0x94] sm:$0xf]
    %v174 = vld [vmem:[#allocation6 + $0x98] sm:$0xf]
    %v175 = vld [vmem:[#allocation6 + $0x9c] sm:$0xf]
    %v176 = vld [vmem:[#allocation6 + $0xa0] sm:$0xf]
    %v177 = vld [vmem:[#allocation6 + $0xa4] sm:$0xf]
    %v178 = vld [vmem:[#allocation6 + $0xa8] sm:$0xf]
    %v179 = vld [vmem:[#allocation6 + $0xac] sm:$0xf]
    %v180 = vld [vmem:[#allocation6 + $0xb0] sm:$0xf]
    %v181 = vld [vmem:[#allocation6 + $0xb4] sm:$0xf]
    %v182 = vld [vmem:[#allocation6 + $0xb8] sm:$0xf]
    %v183 = vld [vmem:[#allocation6 + $0xbc] sm:$0xf]
    %v184 = vld [vmem:[#allocation6 + $0xc0] sm:$0xf]
    %v185 = vld [vmem:[#allocation6 + $0xc4] sm:$0xf]
    %v186 = vld [vmem:[#allocation6 + $0xc8] sm:$0xf]
    %v187 = vld [vmem:[#allocation6 + $0xcc] sm:$0xf]
    %v188 = vld [vmem:[#allocation6 + $0xd0] sm:$0xf]
    %v189 = vld [vmem:[#allocation6 + $0xd4] sm:$0xf]
    %v190 = vld [vmem:[#allocation6 + $0xd8] sm:$0xf]
    %v191 = vld [vmem:[#allocation6 + $0xdc] sm:$0xf]
    %v192 = vld [vmem:[#allocation6 + $0xe0] sm:$0xf]
    %v193 = vld [vmem:[#allocation6 + $0xe4] sm:$0xf]
    %v194 = vld [vmem:[#allocation6 + $0xe8] sm:$0xf]
    %v195 = vld [vmem:[#allocation6 + $0xec] sm:$0xf]
    %v196 = vld [vmem:[#allocation6 + $0xf0] sm:$0xf]
    %v197 = vld [vmem:[#allocation6 + $0xf4] sm:$0xf]
    %v198 = vld [vmem:[#allocation6 + $0xf8] sm:$0xf]
    %v199 = vld [vmem:[#allocation6 + $0xfc] sm:$0xf]
    %v200 = vld [vmem:[#allocation6 + $0x100] sm:$0xf]
    %v201 = vld [vmem:[#allocation6 + $0x104] sm:$0xf]
    %v202 = vld [vmem:[#allocation6 + $0x108] sm:$0xf]
    %v203 = vld [vmem:[#allocation6 + $0x10c] sm:$0xf]
    %v204 = vld [vmem:[#allocation6 + $0x110] sm:$0xf]
    %v205 = vld [vmem:[#allocation6 + $0x114] sm:$0xf]
    %v206 = vld [vmem:[#allocation6 + $0x118] sm:$0xf]
    %v207 = vld [vmem:[#allocation6 + $0x11c] sm:$0xf]
    %v208 = vld [vmem:[#allocation6 + $0x120] sm:$0xf]
    %v209 = vld [vmem:[#allocation6 + $0x124] sm:$0xf]
    %v210 = vld [vmem:[#allocation6 + $0x128] sm:$0xf]
    %v211 = vld [vmem:[#allocation6 + $0x12c] sm:$0xf]
    %v212 = vld [vmem:[#allocation6 + $0x130] sm:$0xf]
    %v213 = vld [vmem:[#allocation6 + $0x134] sm:$0xf]
    %v214 = vld [vmem:[#allocation6 + $0x138] sm:$0xf]
    %v215 = vld [vmem:[#allocation6 + $0x13c] sm:$0xf]
    %v216 = vld [vmem:[#allocation6 + $0x140] sm:$0xf]
    %v217 = vld [vmem:[#allocation6 + $0x144] sm:$0xf]
    %v218 = vld [vmem:[#allocation6 + $0x148] sm:$0xf]
    %v219 = vld [vmem:[#allocation6 + $0x14c] sm:$0xf]
    %v220 = vld [vmem:[#allocation6 + $0x150] sm:$0xf]
    %v221 = vld [vmem:[#allocation6 + $0x154] sm:$0xf]
    %v222 = vld [vmem:[#allocation6 + $0x158] sm:$0xf]
    %v223 = vld [vmem:[#allocation6 + $0x15c] sm:$0xf]
    %v224 = vld [vmem:[#allocation6 + $0x160] sm:$0xf]
    %v225 = vld [vmem:[#allocation6 + $0x164] sm:$0xf]
    %v226 = vld [vmem:[#allocation6 + $0x168] sm:$0xf]
    %v227 = vld [vmem:[#allocation6 + $0x16c] sm:$0xf]
    %v228 = vld [vmem:[#allocation6 + $0x170] sm:$0xf]
    %v229 = vld [vmem:[#allocation6 + $0x174] sm:$0xf]
    %v230 = vld [vmem:[#allocation6 + $0x178] sm:$0xf]
    %v231 = vld [vmem:[#allocation6 + $0x17c] sm:$0xf]
    %v232 = vld [vmem:[#allocation6 + $0x180] sm:$0xf]
    %v233 = vld [vmem:[#allocation6 + $0x184] sm:$0xf]
    %v234 = vld [vmem:[#allocation6 + $0x188] sm:$0xf]
    %v235 = vld [vmem:[#allocation6 + $0x18c] sm:$0xf]
    %v236 = vld [vmem:[#allocation6 + $0x190] sm:$0xf]
    %v237 = vld [vmem:[#allocation6 + $0x194] sm:$0xf]
    %v238 = vld [vmem:[#allocation6 + $0x198] sm:$0xf]
    %v239 = vld [vmem:[#allocation6 + $0x19c] sm:$0xf]
    %v240 = vld [vmem:[#allocation6 + $0x1a0] sm:$0xf]
    %v241 = vld [vmem:[#allocation6 + $0x1a4] sm:$0xf]
    %v242 = vld [vmem:[#allocation6 + $0x1a8] sm:$0xf]
    %v243 = vld [vmem:[#allocation6 + $0x1ac] sm:$0xf]
    %v244 = vld [vmem:[#allocation6 + $0x1b0] sm:$0xf]
    %v245 = vld [vmem:[#allocation6 + $0x1b4] sm:$0xf]
    %v246 = vld [vmem:[#allocation6 + $0x1b8] sm:$0xf]
    %v247 = vld [vmem:[#allocation6 + $0x1bc] sm:$0xf]
    %v248 = vld [vmem:[#allocation6 + $0x1c0] sm:$0xf]
    %v249 = vld [vmem:[#allocation6 + $0x1c4] sm:$0xf]
    %v250 = vld [vmem:[#allocation6 + $0x1c8] sm:$0xf]
    %v251 = vld [vmem:[#allocation6 + $0x1cc] sm:$0xf]
    %v252 = vld [vmem:[#allocation6 + $0x1d0] sm:$0xf]
    %v253 = vld [vmem:[#allocation6 + $0x1d4] sm:$0xf]
    %v254 = vld [vmem:[#allocation6 + $0x1d8] sm:$0xf]
    %v255 = vld [vmem:[#allocation6 + $0x1dc] sm:$0xf]
    %v256 = vld [vmem:[#allocation6 + $0x1e0] sm:$0xf]
    %v257 = vld [vmem:[#allocation6 + $0x1e4] sm:$0xf]
    %v258 = vld [vmem:[#allocation6 + $0x1e8] sm:$0xf]
    %v259 = vld [vmem:[#allocation6 + $0x1ec] sm:$0xf]
    %v260 = vld [vmem:[#allocation6 + $0x1f0] sm:$0xf]
    %v261 = vld [vmem:[#allocation6 + $0x1f4] sm:$0xf]
    %v262 = vld [vmem:[#allocation6 + $0x1f8] sm:$0xf]
    %v263 = vld [vmem:[#allocation6 + $0x1fc] sm:$0xf]
    %v265 = vlaneseq
    %v266 = vshrl.u32 %v265, 7
    %v267 = vsub.s32 0, %v266
    %v268 = vrot.slane %v124, %v267
    %v278 = vunpack.c.l.b16 %v128
    %v279 = vunpack.c.h.b16 %v128
    %v280 = vunpack.c.l.b16 %v129
    %v281 = vunpack.c.h.b16 %v129
    %v282 = vunpack.c.l.b16 %v130
    %v283 = vunpack.c.h.b16 %v130
    %v284 = vunpack.c.l.b16 %v131
    %v285 = vunpack.c.h.b16 %v131
    %v286 = vunpack.c.l.b16 %v132
    %v287 = vunpack.c.h.b16 %v132
    %v288 = vunpack.c.l.b16 %v133
    %v289 = vunpack.c.h.b16 %v133
    %v290 = vunpack.c.l.b16 %v134
    %v291 = vunpack.c.h.b16 %v134
    %v292 = vunpack.c.l.b16 %v135
    %v293 = vunpack.c.h.b16 %v135
    %v294 = vpack.c.b16 %v286, %v278
    %v295 = vpack.c.b16 %v287, %v279
    %v296 = vpack.c.b16 %v288, %v280
    %v297 = vpack.c.b16 %v289, %v281
    %v298 = vpack.c.b16 %v290, %v282
    %v299 = vpack.c.b16 %v291, %v283
    %v300 = vpack.c.b16 %v292, %v284
    %v301 = vpack.c.b16 %v293, %v285
    %v438 = vunpack.c.l.b16 %v136
    %v439 = vunpack.c.l.b16 %v137
    %v440 = vunpack.c.l.b16 %v138
    %v441 = vunpack.c.l.b16 %v139
    %v442 = vunpack.c.l.b16 %v140
    %v443 = vunpack.c.l.b16 %v141
    %v444 = vunpack.c.l.b16 %v142
    %v445 = vunpack.c.l.b16 %v143
    %v446 = vunpack.c.l.b16 %v144
    %v447 = vunpack.c.l.b16 %v145
    %v448 = vunpack.c.l.b16 %v146
    %v449 = vunpack.c.l.b16 %v147
    %v450 = vunpack.c.l.b16 %v148
    %v451 = vunpack.c.l.b16 %v149
    %v452 = vunpack.c.l.b16 %v150
    %v453 = vunpack.c.l.b16 %v151
    %v454 = vunpack.c.l.b16 %v152
    %v455 = vunpack.c.l.b16 %v153
    %v456 = vunpack.c.l.b16 %v154
    %v457 = vunpack.c.l.b16 %v155
    %v458 = vunpack.c.l.b16 %v156
    %v459 = vunpack.c.l.b16 %v157
    %v460 = vunpack.c.l.b16 %v158
    %v461 = vunpack.c.l.b16 %v159
    %v462 = vunpack.c.l.b16 %v160
    %v463 = vunpack.c.l.b16 %v161
    %v464 = vunpack.c.l.b16 %v162
    %v465 = vunpack.c.l.b16 %v163
    %v466 = vunpack.c.l.b16 %v164
    %v467 = vunpack.c.l.b16 %v165
    %v468 = vunpack.c.l.b16 %v166
    %v469 = vunpack.c.l.b16 %v167
    %v470 = vunpack.c.l.b16 %v168
    %v471 = vunpack.c.l.b16 %v169
    %v472 = vunpack.c.l.b16 %v170
    %v473 = vunpack.c.l.b16 %v171
    %v474 = vunpack.c.l.b16 %v172
    %v475 = vunpack.c.l.b16 %v173
    %v476 = vunpack.c.l.b16 %v174
    %v477 = vunpack.c.l.b16 %v175
    %v478 = vunpack.c.l.b16 %v176
    %v479 = vunpack.c.l.b16 %v177
    %v480 = vunpack.c.l.b16 %v178
    %v481 = vunpack.c.l.b16 %v179
    %v482 = vunpack.c.l.b16 %v180
    %v483 = vunpack.c.l.b16 %v181
    %v484 = vunpack.c.l.b16 %v182
    %v485 = vunpack.c.l.b16 %v183
    %v486 = vunpack.c.l.b16 %v184
    %v487 = vunpack.c.l.b16 %v185
    %v488 = vunpack.c.l.b16 %v186
    %v489 = vunpack.c.l.b16 %v187
    %v490 = vunpack.c.l.b16 %v188
    %v491 = vunpack.c.l.b16 %v189
    %v492 = vunpack.c.l.b16 %v190
    %v493 = vunpack.c.l.b16 %v191
    %v494 = vunpack.c.l.b16 %v192
    %v495 = vunpack.c.l.b16 %v193
    %v496 = vunpack.c.l.b16 %v194
    %v497 = vunpack.c.l.b16 %v195
    %v498 = vunpack.c.l.b16 %v196
    %v499 = vunpack.c.l.b16 %v197
    %v500 = vunpack.c.l.b16 %v198
    %v501 = vunpack.c.l.b16 %v199
    %v502 = vunpack.c.l.b16 %v200
    %v503 = vunpack.c.l.b16 %v201
    %v504 = vunpack.c.l.b16 %v202
    %v505 = vunpack.c.l.b16 %v203
    %v506 = vunpack.c.l.b16 %v204
    %v507 = vunpack.c.l.b16 %v205
    %v508 = vunpack.c.l.b16 %v206
    %v509 = vunpack.c.l.b16 %v207
    %v510 = vunpack.c.l.b16 %v208
    %v511 = vunpack.c.l.b16 %v209
    %v512 = vunpack.c.l.b16 %v210
    %v513 = vunpack.c.l.b16 %v211
    %v514 = vunpack.c.l.b16 %v212
    %v515 = vunpack.c.l.b16 %v213
    %v516 = vunpack.c.l.b16 %v214
    %v517 = vunpack.c.l.b16 %v215
    %v518 = vunpack.c.l.b16 %v216
    %v519 = vunpack.c.l.b16 %v217
    %v520 = vunpack.c.l.b16 %v218
    %v521 = vunpack.c.l.b16 %v219
    %v522 = vunpack.c.l.b16 %v220
    %v523 = vunpack.c.l.b16 %v221
    %v524 = vunpack.c.l.b16 %v222
    %v525 = vunpack.c.l.b16 %v223
    %v526 = vunpack.c.l.b16 %v224
    %v527 = vunpack.c.l.b16 %v225
    %v528 = vunpack.c.l.b16 %v226
    %v529 = vunpack.c.l.b16 %v227
    %v530 = vunpack.c.l.b16 %v228
    %v531 = vunpack.c.l.b16 %v229
    %v532 = vunpack.c.l.b16 %v230
    %v533 = vunpack.c.l.b16 %v231
    %v534 = vunpack.c.l.b16 %v232
    %v535 = vunpack.c.l.b16 %v233
    %v536 = vunpack.c.l.b16 %v234
    %v537 = vunpack.c.l.b16 %v235
    %v538 = vunpack.c.l.b16 %v236
    %v539 = vunpack.c.l.b16 %v237
    %v540 = vunpack.c.l.b16 %v238
    %v541 = vunpack.c.l.b16 %v239
    %v542 = vunpack.c.l.b16 %v240
    %v543 = vunpack.c.l.b16 %v241
    %v544 = vunpack.c.l.b16 %v242
    %v545 = vunpack.c.l.b16 %v243
    %v546 = vunpack.c.l.b16 %v244
    %v547 = vunpack.c.l.b16 %v245
    %v548 = vunpack.c.l.b16 %v246
    %v549 = vunpack.c.l.b16 %v247
    %v550 = vunpack.c.l.b16 %v248
    %v551 = vunpack.c.l.b16 %v249
    %v552 = vunpack.c.l.b16 %v250
    %v553 = vunpack.c.l.b16 %v251
    %v554 = vunpack.c.l.b16 %v252
    %v555 = vunpack.c.l.b16 %v253
    %v556 = vunpack.c.l.b16 %v254
    %v557 = vunpack.c.l.b16 %v255
    %v558 = vunpack.c.l.b16 %v256
    %v559 = vunpack.c.l.b16 %v257
    %v560 = vunpack.c.l.b16 %v258
    %v561 = vunpack.c.l.b16 %v259
    %v562 = vunpack.c.l.b16 %v260
    %v563 = vunpack.c.l.b16 %v261
    %v564 = vunpack.c.l.b16 %v262
    %v565 = vunpack.c.l.b16 %v263
    %v566 = vpack.c.b16 %v439, %v438
    %v567 = vpack.c.b16 %v441, %v440
    %v568 = vpack.c.b16 %v443, %v442
    %v569 = vpack.c.b16 %v445, %v444
    %v570 = vpack.c.b16 %v447, %v446
    %v571 = vpack.c.b16 %v449, %v448
    %v572 = vpack.c.b16 %v451, %v450
    %v573 = vpack.c.b16 %v453, %v452
    %v574 = vpack.c.b16 %v455, %v454
    %v575 = vpack.c.b16 %v457, %v456
    %v576 = vpack.c.b16 %v459, %v458
    %v577 = vpack.c.b16 %v461, %v460
    %v578 = vpack.c.b16 %v463, %v462
    %v579 = vpack.c.b16 %v465, %v464
    %v580 = vpack.c.b16 %v467, %v466
    %v581 = vpack.c.b16 %v469, %v468
    %v582 = vpack.c.b16 %v471, %v470
    %v583 = vpack.c.b16 %v473, %v472
    %v584 = vpack.c.b16 %v475, %v474
    %v585 = vpack.c.b16 %v477, %v476
    %v586 = vpack.c.b16 %v479, %v478
    %v587 = vpack.c.b16 %v481, %v480
    %v588 = vpack.c.b16 %v483, %v482
    %v589 = vpack.c.b16 %v485, %v484
    %v590 = vpack.c.b16 %v487, %v486
    %v591 = vpack.c.b16 %v489, %v488
    %v592 = vpack.c.b16 %v491, %v490
    %v593 = vpack.c.b16 %v493, %v492
    %v594 = vpack.c.b16 %v495, %v494
    %v595 = vpack.c.b16 %v497, %v496
    %v596 = vpack.c.b16 %v499, %v498
    %v597 = vpack.c.b16 %v501, %v500
    %v598 = vpack.c.b16 %v503, %v502
    %v599 = vpack.c.b16 %v505, %v504
    %v600 = vpack.c.b16 %v507, %v506
    %v601 = vpack.c.b16 %v509, %v508
    %v602 = vpack.c.b16 %v511, %v510
    %v603 = vpack.c.b16 %v513, %v512
    %v604 = vpack.c.b16 %v515, %v514
    %v605 = vpack.c.b16 %v517, %v516
    %v606 = vpack.c.b16 %v519, %v518
    %v607 = vpack.c.b16 %v521, %v520
    %v608 = vpack.c.b16 %v523, %v522
    %v609 = vpack.c.b16 %v525, %v524
    %v610 = vpack.c.b16 %v527, %v526
    %v611 = vpack.c.b16 %v529, %v528
    %v612 = vpack.c.b16 %v531, %v530
    %v613 = vpack.c.b16 %v533, %v532
    %v614 = vpack.c.b16 %v535, %v534
    %v615 = vpack.c.b16 %v537, %v536
    %v616 = vpack.c.b16 %v539, %v538
    %v617 = vpack.c.b16 %v541, %v540
    %v618 = vpack.c.b16 %v543, %v542
    %v619 = vpack.c.b16 %v545, %v544
    %v620 = vpack.c.b16 %v547, %v546
    %v621 = vpack.c.b16 %v549, %v548
    %v622 = vpack.c.b16 %v551, %v550
    %v623 = vpack.c.b16 %v553, %v552
    %v624 = vpack.c.b16 %v555, %v554
    %v625 = vpack.c.b16 %v557, %v556
    %v626 = vpack.c.b16 %v559, %v558
    %v627 = vpack.c.b16 %v561, %v560
    %v628 = vpack.c.b16 %v563, %v562
    %v629 = vpack.c.b16 %v565, %v564
    %694 = vmatprep.subr.bf16.mxu0 0
    %695 = vmatpush1.bf16.msra.mxu0 %v566
    %696 = vmatprep.subr.bf16.mxu0 0
    %697 = vmatpush1.bf16.msra.mxu0 %v567
    %698 = vmatprep.subr.bf16.mxu0 0
    %699 = vmatpush1.bf16.msra.mxu0 %v568
    %700 = vmatprep.subr.bf16.mxu0 0
    %701 = vmatpush1.bf16.msra.mxu0 %v569
    %702 = vmatprep.subr.bf16.mxu0 0
    %703 = vmatpush1.bf16.msra.mxu0 %v570
    %704 = vmatprep.subr.bf16.mxu0 0
    %705 = vmatpush1.bf16.msra.mxu0 %v571
    %706 = vmatprep.subr.bf16.mxu0 0
    %707 = vmatpush1.bf16.msra.mxu0 %v572
    %708 = vmatprep.subr.bf16.mxu0 0
    %709 = vmatpush1.bf16.msra.mxu0 %v573
    %710 = vmatprep.subr.bf16.mxu0 0
    %711 = vmatpush1.bf16.msra.mxu0 %v574
    %712 = vmatprep.subr.bf16.mxu0 0
    %713 = vmatpush1.bf16.msra.mxu0 %v575
    %714 = vmatprep.subr.bf16.mxu0 0
    %715 = vmatpush1.bf16.msra.mxu0 %v576
    %716 = vmatprep.subr.bf16.mxu0 0
    %717 = vmatpush1.bf16.msra.mxu0 %v577
    %718 = vmatprep.subr.bf16.mxu0 0
    %719 = vmatpush1.bf16.msra.mxu0 %v578
    %720 = vmatprep.subr.bf16.mxu0 0
    %721 = vmatpush1.bf16.msra.mxu0 %v579
    %722 = vmatprep.subr.bf16.mxu0 0
    %723 = vmatpush1.bf16.msra.mxu0 %v580
    %724 = vmatprep.subr.bf16.mxu0 0
    %725 = vmatpush1.bf16.msra.mxu0 %v581
    %726 = vmatprep.mubr.bf16.mxu0 %v295
    %727 = vmatmul.mubr.bf16.gmra.mrb[0].mxu0 %v294
    %v728 = vpop.f32.mrb[0].mxu0
    %v729 = vadd.f32 %v268, %v728
    %v730 = vpop.f32.mrb[0].mxu0
    %v731 = vpop.f32.mrb[0].mxu0
    %v732 = vadd.f32 %v268, %v731
    %v733 = vpop.f32.mrb[0].mxu0
    %734 = vdwg.mxu0
    %735 = vmatprep.subr.bf16.mxu0 0
    %736 = vmatpush1.bf16.msra.mxu0 %v582
    %737 = vmatprep.subr.bf16.mxu0 0
    %738 = vmatpush1.bf16.msra.mxu0 %v583
    %739 = vmatprep.subr.bf16.mxu0 0
    %740 = vmatpush1.bf16.msra.mxu0 %v584
    %741 = vmatprep.subr.bf16.mxu0 0
    %742 = vmatpush1.bf16.msra.mxu0 %v585
    %743 = vmatprep.subr.bf16.mxu0 0
    %744 = vmatpush1.bf16.msra.mxu0 %v586
    %745 = vmatprep.subr.bf16.mxu0 0
    %746 = vmatpush1.bf16.msra.mxu0 %v587
    %747 = vmatprep.subr.bf16.mxu0 0
    %748 = vmatpush1.bf16.msra.mxu0 %v588
    %749 = vmatprep.subr.bf16.mxu0 0
    %750 = vmatpush1.bf16.msra.mxu0 %v589
    %751 = vmatprep.subr.bf16.mxu0 0
    %752 = vmatpush1.bf16.msra.mxu0 %v590
    %753 = vmatprep.subr.bf16.mxu0 0
    %754 = vmatpush1.bf16.msra.mxu0 %v591
    %755 = vmatprep.subr.bf16.mxu0 0
    %756 = vmatpush1.bf16.msra.mxu0 %v592
    %757 = vmatprep.subr.bf16.mxu0 0
    %758 = vmatpush1.bf16.msra.mxu0 %v593
    %759 = vmatprep.subr.bf16.mxu0 0
    %760 = vmatpush1.bf16.msra.mxu0 %v594
    %761 = vmatprep.subr.bf16.mxu0 0
    %762 = vmatpush1.bf16.msra.mxu0 %v595
    %763 = vmatprep.subr.bf16.mxu0 0
    %764 = vmatpush1.bf16.msra.mxu0 %v596
    %765 = vmatprep.subr.bf16.mxu0 0
    %766 = vmatpush1.bf16.msra.mxu0 %v597
    %767 = vmatprep.mubr.bf16.mxu0 %v297
    %768 = vmatmul.mubr.bf16.gmra.mrb[0].mxu0 %v296
    %v769 = vpop.f32.mrb[0].mxu0
    %v770 = vadd.f32 %v729, %v769
    %v771 = vpop.f32.mrb[0].mxu0
    %v772 = vpop.f32.mrb[0].mxu0
    %v773 = vadd.f32 %v732, %v772
    %v774 = vpop.f32.mrb[0].mxu0
    %775 = vdwg.mxu0
    %776 = vmatprep.subr.bf16.mxu0 0
    %777 = vmatpush1.bf16.msra.mxu0 %v598
    %778 = vmatprep.subr.bf16.mxu0 0
    %779 = vmatpush1.bf16.msra.mxu0 %v599
    %780 = vmatprep.subr.bf16.mxu0 0
    %781 = vmatpush1.bf16.msra.mxu0 %v600
    %782 = vmatprep.subr.bf16.mxu0 0
    %783 = vmatpush1.bf16.msra.mxu0 %v601
    %784 = vmatprep.subr.bf16.mxu0 0
    %785 = vmatpush1.bf16.msra.mxu0 %v602
    %786 = vmatprep.subr.bf16.mxu0 0
    %787 = vmatpush1.bf16.msra.mxu0 %v603
    %788 = vmatprep.subr.bf16.mxu0 0
    %789 = vmatpush1.bf16.msra.mxu0 %v604
    %790 = vmatprep.subr.bf16.mxu0 0
    %791 = vmatpush1.bf16.msra.mxu0 %v605
    %792 = vmatprep.subr.bf16.mxu0 0
    %793 = vmatpush1.bf16.msra.mxu0 %v606
    %794 = vmatprep.subr.bf16.mxu0 0
    %795 = vmatpush1.bf16.msra.mxu0 %v607
    %796 = vmatprep.subr.bf16.mxu0 0
    %797 = vmatpush1.bf16.msra.mxu0 %v608
    %798 = vmatprep.subr.bf16.mxu0 0
    %799 = vmatpush1.bf16.msra.mxu0 %v609
    %800 = vmatprep.subr.bf16.mxu0 0
    %801 = vmatpush1.bf16.msra.mxu0 %v610
    %802 = vmatprep.subr.bf16.mxu0 0
    %803 = vmatpush1.bf16.msra.mxu0 %v611
    %804 = vmatprep.subr.bf16.mxu0 0
    %805 = vmatpush1.bf16.msra.mxu0 %v612
    %806 = vmatprep.subr.bf16.mxu0 0
    %807 = vmatpush1.bf16.msra.mxu0 %v613
    %808 = vmatprep.mubr.bf16.mxu0 %v299
    %809 = vmatmul.mubr.bf16.gmra.mrb[0].mxu0 %v298
    %v810 = vpop.f32.mrb[0].mxu0
    %v811 = vadd.f32 %v770, %v810
    %v812 = vpop.f32.mrb[0].mxu0
    %v813 = vpop.f32.mrb[0].mxu0
    %v814 = vadd.f32 %v773, %v813
    %v815 = vpop.f32.mrb[0].mxu0
    %816 = vdwg.mxu0
    %817 = vmatprep.subr.bf16.mxu0 0
    %818 = vmatpush1.bf16.msra.mxu0 %v614
    %819 = vmatprep.subr.bf16.mxu0 0
    %820 = vmatpush1.bf16.msra.mxu0 %v615
    %821 = vmatprep.subr.bf16.mxu0 0
    %822 = vmatpush1.bf16.msra.mxu0 %v616
    %823 = vmatprep.subr.bf16.mxu0 0
    %824 = vmatpush1.bf16.msra.mxu0 %v617
    %825 = vmatprep.subr.bf16.mxu0 0
    %826 = vmatpush1.bf16.msra.mxu0 %v618
    %827 = vmatprep.subr.bf16.mxu0 0
    %828 = vmatpush1.bf16.msra.mxu0 %v619
    %829 = vmatprep.subr.bf16.mxu0 0
    %830 = vmatpush1.bf16.msra.mxu0 %v620
    %831 = vmatprep.subr.bf16.mxu0 0
    %832 = vmatpush1.bf16.msra.mxu0 %v621
    %833 = vmatprep.subr.bf16.mxu0 0
    %834 = vmatpush1.bf16.msra.mxu0 %v622
    %835 = vmatprep.subr.bf16.mxu0 0
    %836 = vmatpush1.bf16.msra.mxu0 %v623
    %837 = vmatprep.subr.bf16.mxu0 0
    %838 = vmatpush1.bf16.msra.mxu0 %v624
    %839 = vmatprep.subr.bf16.mxu0 0
    %840 = vmatpush1.bf16.msra.mxu0 %v625
    %841 = vmatprep.subr.bf16.mxu0 0
    %842 = vmatpush1.bf16.msra.mxu0 %v626
    %843 = vmatprep.subr.bf16.mxu0 0
    %844 = vmatpush1.bf16.msra.mxu0 %v627
    %845 = vmatprep.subr.bf16.mxu0 0
    %846 = vmatpush1.bf16.msra.mxu0 %v628
    %847 = vmatprep.subr.bf16.mxu0 0
    %848 = vmatpush1.bf16.msra.mxu0 %v629
    %849 = vmatprep.mubr.bf16.mxu0 %v301
    %850 = vmatmul.mubr.bf16.gmra.mrb[0].mxu0 %v300
    %v851 = vpop.f32.mrb[0].mxu0
    %v852 = vadd.f32 %v811, %v851
    %v853 = vpop.f32.mrb[0].mxu0
    %v854 = vpop.f32.mrb[0].mxu0
    %v855 = vadd.f32 %v814, %v854
    %v856 = vpop.f32.mrb[0].mxu0
    %857 = vdwg.mxu0
    %v858 = vpack.c.bf16 %v855, %v852
    %v859 = vld [vmem:[#allocation8] sm:$0xff]
    %v860 = vld [vmem:[#allocation8 + $0x8] sm:$0xff]
    %v861 = vld [vmem:[#allocation8 + $0x10] sm:$0xff]
    %v862 = vld [vmem:[#allocation8 + $0x18] sm:$0xff]
    %v864 = vlaneseq
    %v865 = vshrl.u32 %v864, 7
    %v866 = vsub.s32 0, %v865
    %v867 = vrot.slane %v125, %v866
    %v868 = vlaneseq
    %v869 = vshrl.u32 %v868, 7
    %v870 = vsub.s32 1, %v869
    %v871 = vrot.slane %v125, %v870
    %v878 = vunpack.c.l.b16 %v859
    %v879 = vunpack.c.h.b16 %v859
    %v880 = vunpack.c.l.b16 %v860
    %v881 = vunpack.c.h.b16 %v860
    %v882 = vunpack.c.l.b16 %v861
    %v883 = vunpack.c.h.b16 %v861
    %v884 = vunpack.c.l.b16 %v862
    %v885 = vunpack.c.h.b16 %v862
    %v886 = vpack.c.b16 %v880, %v878
    %v887 = vpack.c.b16 %v881, %v879
    %v888 = vpack.c.b16 %v884, %v882
    %v889 = vpack.c.b16 %v885, %v883
    %vm894 = vcmask 261120
    %v896 = vsel %vm894, %v858, 0
    %898 = vmatprep.subr.bf16.mxu0 %v887
    %899 = vmatpush1.bf16.msra.mxu0 %v886
    %900 = vmatprep.subr.bf16.mxu0 %v889
    %901 = vmatpush1.bf16.msra.mxu0 %v888
    %902 = vmatprep.subr.bf16.mxu0 0
    %903 = vmatpush1.bf16.msra.mxu0 0
    %904 = vmatprep.subr.bf16.mxu0 0
    %905 = vmatpush1.bf16.msra.mxu0 0
    %906 = vmatprep.subr.bf16.mxu0 0
    %907 = vmatpush1.bf16.msra.mxu0 0
    %908 = vmatprep.subr.bf16.mxu0 0
    %909 = vmatpush1.bf16.msra.mxu0 0
    %910 = vmatprep.subr.bf16.mxu0 0
    %911 = vmatpush1.bf16.msra.mxu0 0
    %912 = vmatprep.subr.bf16.mxu0 0
    %913 = vmatpush1.bf16.msra.mxu0 0
    %914 = vmatprep.subr.bf16.mxu0 0
    %915 = vmatpush1.bf16.msra.mxu0 0
    %916 = vmatprep.subr.bf16.mxu0 0
    %917 = vmatpush1.bf16.msra.mxu0 0
    %918 = vmatprep.subr.bf16.mxu0 0
    %919 = vmatpush1.bf16.msra.mxu0 0
    %920 = vmatprep.subr.bf16.mxu0 0
    %921 = vmatpush1.bf16.msra.mxu0 0
    %922 = vmatprep.subr.bf16.mxu0 0
    %923 = vmatpush1.bf16.msra.mxu0 0
    %924 = vmatprep.subr.bf16.mxu0 0
    %925 = vmatpush1.bf16.msra.mxu0 0
    %926 = vmatprep.subr.bf16.mxu0 0
    %927 = vmatpush1.bf16.msra.mxu0 0
    %928 = vmatprep.subr.bf16.mxu0 0
    %929 = vmatpush1.bf16.msra.mxu0 0
    %930 = vmatprep.mubr.bf16.mxu0 0
    %931 = vmatmul.mubr.bf16.gmra.mrb[0].mxu0 %v896
    %v932 = vpop.f32.mrb[0].mxu0
    %v933 = vadd.f32 %v867, %v932
    %v934 = vpop.f32.mrb[0].mxu0
    %v935 = vadd.f32 %v871, %v934
    %v936 = vpop.f32.mrb[0].mxu0
    %v937 = vadd.f32 %v867, %v936
    %v938 = vpop.f32.mrb[0].mxu0
    %v939 = vadd.f32 %v871, %v938
    %940 = vdwg.mxu0
    %v941 = vmax.f32 %v933, 0.0
    %v942 = vmax.f32 %v935, 0.0
    %v943 = vmax.f32 %v937, 0.0
    %v944 = vmax.f32 %v939, 0.0
    %v945 = vpack.c.bf16 %v943, %v941
    %v946 = vpack.c.bf16 %v944, %v942
    %v947 = vld [vmem:[#allocation9] sm:$0xf]
    %v948 = vld [vmem:[#allocation9 + $0x4] sm:$0xf]
    %v949 = vld [vmem:[#allocation9 + $0x8] sm:$0xf]
    %v950 = vld [vmem:[#allocation9 + $0xc] sm:$0xf]
    %v951 = vld [vmem:[#allocation9 + $0x10] sm:$0xf]
    %v952 = vld [vmem:[#allocation9 + $0x14] sm:$0xf]
    %v953 = vld [vmem:[#allocation9 + $0x18] sm:$0xf]
    %v954 = vld [vmem:[#allocation9 + $0x1c] sm:$0xf]
    %v955 = vld [vmem:[#allocation9 + $0x20] sm:$0xf]
    %v956 = vld [vmem:[#allocation9 + $0x24] sm:$0xf]
    %v957 = vld [vmem:[#allocation9 + $0x28] sm:$0xf]
    %v958 = vld [vmem:[#allocation9 + $0x2c] sm:$0xf]
    %v959 = vld [vmem:[#allocation9 + $0x30] sm:$0xf]
    %v960 = vld [vmem:[#allocation9 + $0x34] sm:$0xf]
    %v961 = vld [vmem:[#allocation9 + $0x38] sm:$0xf]
    %v962 = vld [vmem:[#allocation9 + $0x3c] sm:$0xf]
    %v963 = vld [vmem:[#allocation9 + $0x40] sm:$0xf]
    %v964 = vld [vmem:[#allocation9 + $0x44] sm:$0xf]
    %v965 = vld [vmem:[#allocation9 + $0x48] sm:$0xf]
    %v966 = vld [vmem:[#allocation9 + $0x4c] sm:$0xf]
    %v967 = vld [vmem:[#allocation9 + $0x50] sm:$0xf]
    %v968 = vld [vmem:[#allocation9 + $0x54] sm:$0xf]
    %v969 = vld [vmem:[#allocation9 + $0x58] sm:$0xf]
    %v970 = vld [vmem:[#allocation9 + $0x5c] sm:$0xf]
    %v971 = vld [vmem:[#allocation9 + $0x60] sm:$0xf]
    %v972 = vld [vmem:[#allocation9 + $0x64] sm:$0xf]
    %v973 = vld [vmem:[#allocation9 + $0x68] sm:$0xf]
    %v974 = vld [vmem:[#allocation9 + $0x6c] sm:$0xf]
    %v975 = vld [vmem:[#allocation9 + $0x70] sm:$0xf]
    %v976 = vld [vmem:[#allocation9 + $0x74] sm:$0xf]
    %v977 = vld [vmem:[#allocation9 + $0x78] sm:$0xf]
    %v978 = vld [vmem:[#allocation9 + $0x7c] sm:$0xf]
    %v980 = vlaneseq
    %v981 = vshrl.u32 %v980, 7
    %v982 = vsub.s32 0, %v981
    %v983 = vrot.slane %v126, %v982
    %v1017 = vunpack.c.l.b16 %v947
    %v1018 = vunpack.c.l.b16 %v948
    %v1019 = vunpack.c.l.b16 %v949
    %v1020 = vunpack.c.l.b16 %v950
    %v1021 = vunpack.c.l.b16 %v951
    %v1022 = vunpack.c.l.b16 %v952
    %v1023 = vunpack.c.l.b16 %v953
    %v1024 = vunpack.c.l.b16 %v954
    %v1025 = vunpack.c.l.b16 %v955
    %v1026 = vunpack.c.l.b16 %v956
    %v1027 = vunpack.c.l.b16 %v957
    %v1028 = vunpack.c.l.b16 %v958
    %v1029 = vunpack.c.l.b16 %v959
    %v1030 = vunpack.c.l.b16 %v960
    %v1031 = vunpack.c.l.b16 %v961
    %v1032 = vunpack.c.l.b16 %v962
    %v1033 = vunpack.c.l.b16 %v963
    %v1034 = vunpack.c.l.b16 %v964
    %v1035 = vunpack.c.l.b16 %v965
    %v1036 = vunpack.c.l.b16 %v966
    %v1037 = vunpack.c.l.b16 %v967
    %v1038 = vunpack.c.l.b16 %v968
    %v1039 = vunpack.c.l.b16 %v969
    %v1040 = vunpack.c.l.b16 %v970
    %v1041 = vunpack.c.l.b16 %v971
    %v1042 = vunpack.c.l.b16 %v972
    %v1043 = vunpack.c.l.b16 %v973
    %v1044 = vunpack.c.l.b16 %v974
    %v1045 = vunpack.c.l.b16 %v975
    %v1046 = vunpack.c.l.b16 %v976
    %v1047 = vunpack.c.l.b16 %v977
    %v1048 = vunpack.c.l.b16 %v978
    %v1049 = vpack.c.b16 %v1018, %v1017
    %v1050 = vpack.c.b16 %v1020, %v1019
    %v1051 = vpack.c.b16 %v1022, %v1021
    %v1052 = vpack.c.b16 %v1024, %v1023
    %v1053 = vpack.c.b16 %v1026, %v1025
    %v1054 = vpack.c.b16 %v1028, %v1027
    %v1055 = vpack.c.b16 %v1030, %v1029
    %v1056 = vpack.c.b16 %v1032, %v1031
    %v1057 = vpack.c.b16 %v1034, %v1033
    %v1058 = vpack.c.b16 %v1036, %v1035
    %v1059 = vpack.c.b16 %v1038, %v1037
    %v1060 = vpack.c.b16 %v1040, %v1039
    %v1061 = vpack.c.b16 %v1042, %v1041
    %v1062 = vpack.c.b16 %v1044, %v1043
    %v1063 = vpack.c.b16 %v1046, %v1045
    %v1064 = vpack.c.b16 %v1048, %v1047
    %1081 = vmatprep.subr.bf16.mxu0 0
    %1082 = vmatpush1.bf16.msra.mxu0 %v1049
    %1083 = vmatprep.subr.bf16.mxu0 0
    %1084 = vmatpush1.bf16.msra.mxu0 %v1050
    %1085 = vmatprep.subr.bf16.mxu0 0
    %1086 = vmatpush1.bf16.msra.mxu0 %v1051
    %1087 = vmatprep.subr.bf16.mxu0 0
    %1088 = vmatpush1.bf16.msra.mxu0 %v1052
    %1089 = vmatprep.subr.bf16.mxu0 0
    %1090 = vmatpush1.bf16.msra.mxu0 %v1053
    %1091 = vmatprep.subr.bf16.mxu0 0
    %1092 = vmatpush1.bf16.msra.mxu0 %v1054
    %1093 = vmatprep.subr.bf16.mxu0 0
    %1094 = vmatpush1.bf16.msra.mxu0 %v1055
    %1095 = vmatprep.subr.bf16.mxu0 0
    %1096 = vmatpush1.bf16.msra.mxu0 %v1056
    %1097 = vmatprep.subr.bf16.mxu0 0
    %1098 = vmatpush1.bf16.msra.mxu0 %v1057
    %1099 = vmatprep.subr.bf16.mxu0 0
    %1100 = vmatpush1.bf16.msra.mxu0 %v1058
    %1101 = vmatprep.subr.bf16.mxu0 0
    %1102 = vmatpush1.bf16.msra.mxu0 %v1059
    %1103 = vmatprep.subr.bf16.mxu0 0
    %1104 = vmatpush1.bf16.msra.mxu0 %v1060
    %1105 = vmatprep.subr.bf16.mxu0 0
    %1106 = vmatpush1.bf16.msra.mxu0 %v1061
    %1107 = vmatprep.subr.bf16.mxu0 0
    %1108 = vmatpush1.bf16.msra.mxu0 %v1062
    %1109 = vmatprep.subr.bf16.mxu0 0
    %1110 = vmatpush1.bf16.msra.mxu0 %v1063
    %1111 = vmatprep.subr.bf16.mxu0 0
    %1112 = vmatpush1.bf16.msra.mxu0 %v1064
    %1113 = vmatprep.mubr.bf16.mxu0 %v946
    %1114 = vmatmul.mubr.bf16.gmra.mrb[0].mxu0 %v945
    %v1115 = vpop.f32.mrb[0].mxu0
    %v1116 = vadd.f32 %v983, %v1115
    %v1117 = vpop.f32.mrb[0].mxu0
    %v1118 = vpop.f32.mrb[0].mxu0
    %v1119 = vadd.f32 %v983, %v1118
    %v1120 = vpop.f32.mrb[0].mxu0
    %1121 = vdwg.mxu0
    %1122 = vxpose.xlu0.b32.start [1/16] %v1116, 128
    %1123 = vxpose.xlu0.b32.cont [2/16] %v1119, 128
    %1124 = vxpose.xlu0.b32.cont [3/16] 0.0, 128
    %1125 = vxpose.xlu0.b32.cont [4/16] 0.0, 128
    %1126 = vxpose.xlu0.b32.cont [5/16] 0.0, 128
    %1127 = vxpose.xlu0.b32.cont [6/16] 0.0, 128
    %1128 = vxpose.xlu0.b32.cont [7/16] 0.0, 128
    %1129 = vxpose.xlu0.b32.cont [8/16] 0.0, 128
    %1130 = vxpose.xlu0.b32.cont [9/16] 0.0, 128
    %1131 = vxpose.xlu0.b32.cont [10/16] 0.0, 128
    %1132 = vxpose.xlu0.b32.cont [11/16] 0.0, 128
    %1133 = vxpose.xlu0.b32.cont [12/16] 0.0, 128
    %1134 = vxpose.xlu0.b32.cont [13/16] 0.0, 128
    %1135 = vxpose.xlu0.b32.cont [14/16] 0.0, 128
    %1136 = vxpose.xlu0.b32.cont [15/16] 0.0, 128
    %1137 = vxpose.xlu0.b32.end [16/16] 0.0, 128
    %v1138 = vpop.trf.xlu0
    %v1139 = vpop.trf.xlu0
    %v1140 = vpop.trf.xlu0
    %v1141 = vpop.trf.xlu0
    %v1142 = vpop.trf.xlu0
    %v1143 = vpop.trf.xlu0
    %v1144 = vpop.trf.xlu0
    %v1145 = vpop.trf.xlu0
    %v1146 = vpop.trf.xlu0
    %v1147 = vpop.trf.xlu0
    %v1148 = vpop.trf.xlu0
    %v1149 = vpop.trf.xlu0
    %v1150 = vpop.trf.xlu0
    %v1151 = vpop.trf.xlu0
    %v1152 = vpop.trf.xlu0
    %v1153 = vpop.trf.xlu0
    %v1154 = vld [vmem:[#allocation11] sm:$0xf]
    %v1155 = vld [vmem:[#allocation11 + $0x4] sm:$0xf]
    %v1156 = vld [vmem:[#allocation11 + $0x8] sm:$0xf]
    %v1157 = vld [vmem:[#allocation11 + $0xc] sm:$0xf]
    %v1158 = vld [vmem:[#allocation11 + $0x10] sm:$0xf]
    %v1159 = vld [vmem:[#allocation11 + $0x14] sm:$0xf]
    %v1160 = vld [vmem:[#allocation11 + $0x18] sm:$0xf]
    %v1161 = vld [vmem:[#allocation11 + $0x1c] sm:$0xf]
    %v1162 = vld [vmem:[#allocation11 + $0x20] sm:$0xf]
    %v1163 = vld [vmem:[#allocation11 + $0x24] sm:$0xf]
    %v1164 = vld [vmem:[#allocation11 + $0x28] sm:$0xf]
    %v1165 = vld [vmem:[#allocation11 + $0x2c] sm:$0xf]
    %v1166 = vld [vmem:[#allocation11 + $0x30] sm:$0xf]
    %v1167 = vld [vmem:[#allocation11 + $0x34] sm:$0xf]
    %v1168 = vld [vmem:[#allocation11 + $0x38] sm:$0xf]
    %v1169 = vld [vmem:[#allocation11 + $0x3c] sm:$0xf]
    %v1170 = vld [vmem:[#allocation11 + $0x40] sm:$0xf]
    %v1171 = vld [vmem:[#allocation11 + $0x44] sm:$0xf]
    %v1172 = vld [vmem:[#allocation11 + $0x48] sm:$0xf]
    %v1173 = vld [vmem:[#allocation11 + $0x4c] sm:$0xf]
    %v1174 = vld [vmem:[#allocation11 + $0x50] sm:$0xf]
    %v1175 = vld [vmem:[#allocation11 + $0x54] sm:$0xf]
    %v1176 = vld [vmem:[#allocation11 + $0x58] sm:$0xf]
    %v1177 = vld [vmem:[#allocation11 + $0x5c] sm:$0xf]
    %v1178 = vld [vmem:[#allocation11 + $0x60] sm:$0xf]
    %v1179 = vld [vmem:[#allocation11 + $0x64] sm:$0xf]
    %v1180 = vld [vmem:[#allocation11 + $0x68] sm:$0xf]
    %v1181 = vld [vmem:[#allocation11 + $0x6c] sm:$0xf]
    %v1182 = vld [vmem:[#allocation11 + $0x70] sm:$0xf]
    %v1183 = vld [vmem:[#allocation11 + $0x74] sm:$0xf]
    %v1184 = vld [vmem:[#allocation11 + $0x78] sm:$0xf]
    %v1185 = vld [vmem:[#allocation11 + $0x7c] sm:$0xf]
    %1187 = vset.pattern.permute.xlu0 0
    %1188 = vperm.xlu0 %1187, %v1154
    %v1189 = vpop.permute.xlu0 %1188
    %1192 = vset.pattern.permute.xlu0 0
    %1193 = vperm.xlu0 %1192, %v1155
    %v1194 = vpop.permute.xlu0 %1193
    %1197 = vset.pattern.permute.xlu0 0
    %1198 = vperm.xlu0 %1197, %v1156
    %v1199 = vpop.permute.xlu0 %1198
    %1202 = vset.pattern.permute.xlu0 0
    %1203 = vperm.xlu0 %1202, %v1157
    %v1204 = vpop.permute.xlu0 %1203
    %v1206 = vlaneseq
    %v1207 = vshrl.u32 %v1206, 7
    %v1208 = vsub.s32 0, %v1207
    %v1209 = vrot.slane %v1138, %v1208
    %v1210 = vmul.f32 %v1189, %v1209
    %v1211 = vmul.f32 %v1194, %v1209
    %v1212 = vmul.f32 %v1199, %v1209
    %v1213 = vmul.f32 %v1204, %v1209
    %1215 = vset.pattern.permute.xlu0 0
    %1216 = vperm.xlu0 %1215, %v1158
    %v1217 = vpop.permute.xlu0 %1216
    %1220 = vset.pattern.permute.xlu0 0
    %1221 = vperm.xlu0 %1220, %v1159
    %v1222 = vpop.permute.xlu0 %1221
    %1225 = vset.pattern.permute.xlu0 0
    %1226 = vperm.xlu0 %1225, %v1160
    %v1227 = vpop.permute.xlu0 %1226
    %1230 = vset.pattern.permute.xlu0 0
    %1231 = vperm.xlu0 %1230, %v1161
    %v1232 = vpop.permute.xlu0 %1231
    %v1234 = vlaneseq
    %v1235 = vshrl.u32 %v1234, 7
    %v1236 = vsub.s32 1, %v1235
    %v1237 = vrot.slane %v1138, %v1236
    %v1238 = vmul.f32 %v1217, %v1237
    %v1239 = vmul.f32 %v1222, %v1237
    %v1240 = vmul.f32 %v1227, %v1237
    %v1241 = vmul.f32 %v1232, %v1237
    %v1242 = vadd.f32 %v1210, %v1238
    %v1243 = vadd.f32 %v1211, %v1239
    %v1244 = vadd.f32 %v1212, %v1240
    %v1245 = vadd.f32 %v1213, %v1241
    %1247 = vset.pattern.permute.xlu0 0
    %1248 = vperm.xlu0 %1247, %v1162
    %v1249 = vpop.permute.xlu0 %1248
    %1252 = vset.pattern.permute.xlu0 0
    %1253 = vperm.xlu0 %1252, %v1163
    %v1254 = vpop.permute.xlu0 %1253
    %1257 = vset.pattern.permute.xlu0 0
    %1258 = vperm.xlu0 %1257, %v1164
    %v1259 = vpop.permute.xlu0 %1258
    %1262 = vset.pattern.permute.xlu0 0
    %1263 = vperm.xlu0 %1262, %v1165
    %v1264 = vpop.permute.xlu0 %1263
    %v1266 = vlaneseq
    %v1267 = vshrl.u32 %v1266, 7
    %v1268 = vsub.s32 2, %v1267
    %v1269 = vrot.slane %v1138, %v1268
    %v1270 = vmul.f32 %v1249, %v1269
    %v1271 = vmul.f32 %v1254, %v1269
    %v1272 = vmul.f32 %v1259, %v1269
    %v1273 = vmul.f32 %v1264, %v1269
    %v1274 = vadd.f32 %v1242, %v1270
    %v1275 = vadd.f32 %v1243, %v1271
    %v1276 = vadd.f32 %v1244, %v1272
    %v1277 = vadd.f32 %v1245, %v1273
    %1279 = vset.pattern.permute.xlu0 0
    %1280 = vperm.xlu0 %1279, %v1166
    %v1281 = vpop.permute.xlu0 %1280
    %1284 = vset.pattern.permute.xlu0 0
    %1285 = vperm.xlu0 %1284, %v1167
    %v1286 = vpop.permute.xlu0 %1285
    %1289 = vset.pattern.permute.xlu0 0
    %1290 = vperm.xlu0 %1289, %v1168
    %v1291 = vpop.permute.xlu0 %1290
    %1294 = vset.pattern.permute.xlu0 0
    %1295 = vperm.xlu0 %1294, %v1169
    %v1296 = vpop.permute.xlu0 %1295
    %v1298 = vlaneseq
    %v1299 = vshrl.u32 %v1298, 7
    %v1300 = vsub.s32 3, %v1299
    %v1301 = vrot.slane %v1138, %v1300
    %v1302 = vmul.f32 %v1281, %v1301
    %v1303 = vmul.f32 %v1286, %v1301
    %v1304 = vmul.f32 %v1291, %v1301
    %v1305 = vmul.f32 %v1296, %v1301
    %v1306 = vadd.f32 %v1274, %v1302
    %v1307 = vadd.f32 %v1275, %v1303
    %v1308 = vadd.f32 %v1276, %v1304
    %v1309 = vadd.f32 %v1277, %v1305
    %v1310 = vmul.f32 %v1306, 0.25
    %v1311 = vmul.f32 %v1307, 0.25
    %v1312 = vmul.f32 %v1308, 0.25
    %v1313 = vmul.f32 %v1309, 0.25
    %v1314 = vlaneseq
    %v1315 = vshrl.u32 %v1314, 7
    %vm1316 = vcmp.eq.s32.totalorder %v1315, 0
    %vm1317 = vcmp.eq.s32.totalorder %v1315, 1
    %vm1318 = vcmp.eq.s32.totalorder %v1315, 2
    %vm1319 = vcmp.eq.s32.totalorder %v1315, 3
    %v1320 = vsel %vm1316, 1, 0
    %v1321 = vsel %vm1317, 1, 0
    %v1322 = vsel %vm1318, 1, 0
    %v1323 = vsel %vm1319, 1, 0
    %v1324 = vcvt.s32.f32 %v1320
    %v1325 = vcvt.s32.f32 %v1321
    %v1326 = vcvt.s32.f32 %v1322
    %v1327 = vcvt.s32.f32 %v1323
    %v1328 = vlaneseq
    %v1329 = vshrl.u32 %v1328, 7
    %v1330 = vsub.s32 0, %v1329
    %v1331 = vrot.slane %v1310, %v1330
    %v1332 = vlaneseq
    %v1333 = vshrl.u32 %v1332, 7
    %v1334 = vsub.s32 0, %v1333
    %v1335 = vrot.slane %v1311, %v1334
    %v1336 = vlaneseq
    %v1337 = vshrl.u32 %v1336, 7
    %v1338 = vsub.s32 0, %v1337
    %v1339 = vrot.slane %v1312, %v1338
    %v1340 = vlaneseq
    %v1341 = vshrl.u32 %v1340, 7
    %v1342 = vsub.s32 0, %v1341
    %v1343 = vrot.slane %v1313, %v1342
    %v1344 = vmul.f32 %v1331, %v1310
    %v1345 = vmul.f32 %v1335, %v1310
    %v1346 = vmul.f32 %v1339, %v1310
    %v1347 = vmul.f32 %v1343, %v1310
    %v1348 = vlaneseq
    %v1349 = vshrl.u32 %v1348, 7
    %v1350 = vsub.s32 1, %v1349
    %v1351 = vrot.slane %v1310, %v1350
    %v1352 = vlaneseq
    %v1353 = vshrl.u32 %v1352, 7
    %v1354 = vsub.s32 1, %v1353
    %v1355 = vrot.slane %v1311, %v1354
    %v1356 = vlaneseq
    %v1357 = vshrl.u32 %v1356, 7
    %v1358 = vsub.s32 1, %v1357
    %v1359 = vrot.slane %v1312, %v1358
    %v1360 = vlaneseq
    %v1361 = vshrl.u32 %v1360, 7
    %v1362 = vsub.s32 1, %v1361
    %v1363 = vrot.slane %v1313, %v1362
    %v1364 = vmul.f32 %v1351, %v1311
    %v1365 = vmul.f32 %v1355, %v1311
    %v1366 = vmul.f32 %v1359, %v1311
    %v1367 = vmul.f32 %v1363, %v1311
    %v1368 = vadd.f32 %v1344, %v1364
    %v1369 = vadd.f32 %v1345, %v1365
    %v1370 = vadd.f32 %v1346, %v1366
    %v1371 = vadd.f32 %v1347, %v1367
    %v1372 = vlaneseq
    %v1373 = vshrl.u32 %v1372, 7
    %v1374 = vsub.s32 2, %v1373
    %v1375 = vrot.slane %v1310, %v1374
    %v1376 = vlaneseq
    %v1377 = vshrl.u32 %v1376, 7
    %v1378 = vsub.s32 2, %v1377
    %v1379 = vrot.slane %v1311, %v1378
    %v1380 = vlaneseq
    %v1381 = vshrl.u32 %v1380, 7
    %v1382 = vsub.s32 2, %v1381
    %v1383 = vrot.slane %v1312, %v1382
    %v1384 = vlaneseq
    %v1385 = vshrl.u32 %v1384, 7
    %v1386 = vsub.s32 2, %v1385
    %v1387 = vrot.slane %v1313, %v1386
    %v1388 = vmul.f32 %v1375, %v1312
    %v1389 = vmul.f32 %v1379, %v1312
    %v1390 = vmul.f32 %v1383, %v1312
    %v1391 = vmul.f32 %v1387, %v1312
    %v1392 = vadd.f32 %v1368, %v1388
    %v1393 = vadd.f32 %v1369, %v1389
    %v1394 = vadd.f32 %v1370, %v1390
    %v1395 = vadd.f32 %v1371, %v1391
    %v1396 = vlaneseq
    %v1397 = vshrl.u32 %v1396, 7
    %v1398 = vsub.s32 3, %v1397
    %v1399 = vrot.slane %v1310, %v1398
    %v1400 = vlaneseq
    %v1401 = vshrl.u32 %v1400, 7
    %v1402 = vsub.s32 3, %v1401
    %v1403 = vrot.slane %v1311, %v1402
    %v1404 = vlaneseq
    %v1405 = vshrl.u32 %v1404, 7
    %v1406 = vsub.s32 3, %v1405
    %v1407 = vrot.slane %v1312, %v1406
    %v1408 = vlaneseq
    %v1409 = vshrl.u32 %v1408, 7
    %v1410 = vsub.s32 3, %v1409
    %v1411 = vrot.slane %v1313, %v1410
    %v1412 = vmul.f32 %v1399, %v1313
    %v1413 = vmul.f32 %v1403, %v1313
    %v1414 = vmul.f32 %v1407, %v1313
    %v1415 = vmul.f32 %v1411, %v1313
    %v1416 = vadd.f32 %v1392, %v1412
    %v1417 = vadd.f32 %v1393, %v1413
    %v1418 = vadd.f32 %v1394, %v1414
    %v1419 = vadd.f32 %v1395, %v1415
    %v1420 = vlaneseq
    %v1421 = vshrl.u32 %v1420, 7
    %v1422 = vsub.s32 0, %v1421
    %v1423 = vrot.slane %v1416, %v1422
    %v1424 = vlaneseq
    %v1425 = vshrl.u32 %v1424, 7
    %v1426 = vsub.s32 0, %v1425
    %v1427 = vrot.slane %v1417, %v1426
    %v1428 = vlaneseq
    %v1429 = vshrl.u32 %v1428, 7
    %v1430 = vsub.s32 0, %v1429
    %v1431 = vrot.slane %v1418, %v1430
    %v1432 = vlaneseq
    %v1433 = vshrl.u32 %v1432, 7
    %v1434 = vsub.s32 0, %v1433
    %v1435 = vrot.slane %v1419, %v1434
    %v1436 = vmul.f32 %v1423, %v1310
    %v1437 = vmul.f32 %v1427, %v1310
    %v1438 = vmul.f32 %v1431, %v1310
    %v1439 = vmul.f32 %v1435, %v1310
    %v1440 = vlaneseq
    %v1441 = vshrl.u32 %v1440, 7
    %v1442 = vsub.s32 1, %v1441
    %v1443 = vrot.slane %v1416, %v1442
    %v1444 = vlaneseq
    %v1445 = vshrl.u32 %v1444, 7
    %v1446 = vsub.s32 1, %v1445
    %v1447 = vrot.slane %v1417, %v1446
    %v1448 = vlaneseq
    %v1449 = vshrl.u32 %v1448, 7
    %v1450 = vsub.s32 1, %v1449
    %v1451 = vrot.slane %v1418, %v1450
    %v1452 = vlaneseq
    %v1453 = vshrl.u32 %v1452, 7
    %v1454 = vsub.s32 1, %v1453
    %v1455 = vrot.slane %v1419, %v1454
    %v1456 = vmul.f32 %v1443, %v1311
    %v1457 = vmul.f32 %v1447, %v1311
    %v1458 = vmul.f32 %v1451, %v1311
    %v1459 = vmul.f32 %v1455, %v1311
    %v1460 = vadd.f32 %v1436, %v1456
    %v1461 = vadd.f32 %v1437, %v1457
    %v1462 = vadd.f32 %v1438, %v1458
    %v1463 = vadd.f32 %v1439, %v1459
    %v1464 = vlaneseq
    %v1465 = vshrl.u32 %v1464, 7
    %v1466 = vsub.s32 2, %v1465
    %v1467 = vrot.slane %v1416, %v1466
    %v1468 = vlaneseq
    %v1469 = vshrl.u32 %v1468, 7
    %v1470 = vsub.s32 2, %v1469
    %v1471 = vrot.slane %v1417, %v1470
    %v1472 = vlaneseq
    %v1473 = vshrl.u32 %v1472, 7
    %v1474 = vsub.s32 2, %v1473
    %v1475 = vrot.slane %v1418, %v1474
    %v1476 = vlaneseq
    %v1477 = vshrl.u32 %v1476, 7
    %v1478 = vsub.s32 2, %v1477
    %v1479 = vrot.slane %v1419, %v1478
    %v1480 = vmul.f32 %v1467, %v1312
    %v1481 = vmul.f32 %v1471, %v1312
    %v1482 = vmul.f32 %v1475, %v1312
    %v1483 = vmul.f32 %v1479, %v1312
    %v1484 = vadd.f32 %v1460, %v1480
    %v1485 = vadd.f32 %v1461, %v1481
    %v1486 = vadd.f32 %v1462, %v1482
    %v1487 = vadd.f32 %v1463, %v1483
    %v1488 = vlaneseq
    %v1489 = vshrl.u32 %v1488, 7
    %v1490 = vsub.s32 3, %v1489
    %v1491 = vrot.slane %v1416, %v1490
    %v1492 = vlaneseq
    %v1493 = vshrl.u32 %v1492, 7
    %v1494 = vsub.s32 3, %v1493
    %v1495 = vrot.slane %v1417, %v1494
    %v1496 = vlaneseq
    %v1497 = vshrl.u32 %v1496, 7
    %v1498 = vsub.s32 3, %v1497
    %v1499 = vrot.slane %v1418, %v1498
    %v1500 = vlaneseq
    %v1501 = vshrl.u32 %v1500, 7
    %v1502 = vsub.s32 3, %v1501
    %v1503 = vrot.slane %v1419, %v1502
    %v1504 = vmul.f32 %v1491, %v1313
    %v1505 = vmul.f32 %v1495, %v1313
    %v1506 = vmul.f32 %v1499, %v1313
    %v1507 = vmul.f32 %v1503, %v1313
    %v1508 = vadd.f32 %v1484, %v1504
    %v1509 = vadd.f32 %v1485, %v1505
    %v1510 = vadd.f32 %v1486, %v1506
    %v1511 = vadd.f32 %v1487, %v1507
    %v1512 = vmul.f32 %v1423, %v1416
    %v1513 = vmul.f32 %v1427, %v1416
    %v1514 = vmul.f32 %v1431, %v1416
    %v1515 = vmul.f32 %v1435, %v1416
    %v1516 = vmul.f32 %v1443, %v1417
    %v1517 = vmul.f32 %v1447, %v1417
    %v1518 = vmul.f32 %v1451, %v1417
    %v1519 = vmul.f32 %v1455, %v1417
    %v1520 = vadd.f32 %v1512, %v1516
    %v1521 = vadd.f32 %v1513, %v1517
    %v1522 = vadd.f32 %v1514, %v1518
    %v1523 = vadd.f32 %v1515, %v1519
    %v1524 = vmul.f32 %v1467, %v1418
    %v1525 = vmul.f32 %v1471, %v1418
    %v1526 = vmul.f32 %v1475, %v1418
    %v1527 = vmul.f32 %v1479, %v1418
    %v1528 = vadd.f32 %v1520, %v1524
    %v1529 = vadd.f32 %v1521, %v1525
    %v1530 = vadd.f32 %v1522, %v1526
    %v1531 = vadd.f32 %v1523, %v1527
    %v1532 = vmul.f32 %v1491, %v1419
    %v1533 = vmul.f32 %v1495, %v1419
    %v1534 = vmul.f32 %v1499, %v1419
    %v1535 = vmul.f32 %v1503, %v1419
    %v1536 = vadd.f32 %v1528, %v1532
    %v1537 = vadd.f32 %v1529, %v1533
    %v1538 = vadd.f32 %v1530, %v1534
    %v1539 = vadd.f32 %v1531, %v1535
    %v1540 = vadd.f32 %v1324, %v1310
    %v1541 = vadd.f32 %v1325, %v1311
    %v1542 = vadd.f32 %v1326, %v1312
    %v1543 = vadd.f32 %v1327, %v1313
    %v1544 = vmul.f32 %v1416, 0.5
    %v1545 = vmul.f32 %v1417, 0.5
    %v1546 = vmul.f32 %v1418, 0.5
    %v1547 = vmul.f32 %v1419, 0.5
    %v1548 = vadd.f32 %v1540, %v1544
    %v1549 = vadd.f32 %v1541, %v1545
    %v1550 = vadd.f32 %v1542, %v1546
    %v1551 = vadd.f32 %v1543, %v1547
    %v1552 = vmul.f32 %v1508, 0.16666667
    %v1553 = vmul.f32 %v1509, 0.16666667
    %v1554 = vmul.f32 %v1510, 0.16666667
    %v1555 = vmul.f32 %v1511, 0.16666667
    %v1556 = vadd.f32 %v1548, %v1552
    %v1557 = vadd.f32 %v1549, %v1553
    %v1558 = vadd.f32 %v1550, %v1554
    %v1559 = vadd.f32 %v1551, %v1555
    %v1560 = vmul.f32 %v1536, 0.041666668
    %v1561 = vmul.f32 %v1537, 0.041666668
    %v1562 = vmul.f32 %v1538, 0.041666668
    %v1563 = vmul.f32 %v1539, 0.041666668
    %v1564 = vadd.f32 %v1556, %v1560
    %v1565 = vadd.f32 %v1557, %v1561
    %v1566 = vadd.f32 %v1558, %v1562
    %v1567 = vadd.f32 %v1559, %v1563
    %v1568 = vlaneseq
    %v1569 = vshrl.u32 %v1568, 7
    %v1570 = vsub.s32 0, %v1569
    %v1571 = vrot.slane %v1564, %v1570
    %v1572 = vlaneseq
    %v1573 = vshrl.u32 %v1572, 7
    %v1574 = vsub.s32 0, %v1573
    %v1575 = vrot.slane %v1565, %v1574
    %v1576 = vlaneseq
    %v1577 = vshrl.u32 %v1576, 7
    %v1578 = vsub.s32 0, %v1577
    %v1579 = vrot.slane %v1566, %v1578
    %v1580 = vlaneseq
    %v1581 = vshrl.u32 %v1580, 7
    %v1582 = vsub.s32 0, %v1581
    %v1583 = vrot.slane %v1567, %v1582
    %v1584 = vmul.f32 %v1571, %v1564
    %v1585 = vmul.f32 %v1575, %v1564
    %v1586 = vmul.f32 %v1579, %v1564
    %v1587 = vmul.f32 %v1583, %v1564
    %v1588 = vlaneseq
    %v1589 = vshrl.u32 %v1588, 7
    %v1590 = vsub.s32 1, %v1589
    %v1591 = vrot.slane %v1564, %v1590
    %v1592 = vlaneseq
    %v1593 = vshrl.u32 %v1592, 7
    %v1594 = vsub.s32 1, %v1593
    %v1595 = vrot.slane %v1565, %v1594
    %v1596 = vlaneseq
    %v1597 = vshrl.u32 %v1596, 7
    %v1598 = vsub.s32 1, %v1597
    %v1599 = vrot.slane %v1566, %v1598
    %v1600 = vlaneseq
    %v1601 = vshrl.u32 %v1600, 7
    %v1602 = vsub.s32 1, %v1601
    %v1603 = vrot.slane %v1567, %v1602
    %v1604 = vmul.f32 %v1591, %v1565
    %v1605 = vmul.f32 %v1595, %v1565
    %v1606 = vmul.f32 %v1599, %v1565
    %v1607 = vmul.f32 %v1603, %v1565
    %v1608 = vadd.f32 %v1584, %v1604
    %v1609 = vadd.f32 %v1585, %v1605
    %v1610 = vadd.f32 %v1586, %v1606
    %v1611 = vadd.f32 %v1587, %v1607
    %v1612 = vlaneseq
    %v1613 = vshrl.u32 %v1612, 7
    %v1614 = vsub.s32 2, %v1613
    %v1615 = vrot.slane %v1564, %v1614
    %v1616 = vlaneseq
    %v1617 = vshrl.u32 %v1616, 7
    %v1618 = vsub.s32 2, %v1617
    %v1619 = vrot.slane %v1565, %v1618
    %v1620 = vlaneseq
    %v1621 = vshrl.u32 %v1620, 7
    %v1622 = vsub.s32 2, %v1621
    %v1623 = vrot.slane %v1566, %v1622
    %v1624 = vlaneseq
    %v1625 = vshrl.u32 %v1624, 7
    %v1626 = vsub.s32 2, %v1625
    %v1627 = vrot.slane %v1567, %v1626
    %v1628 = vmul.f32 %v1615, %v1566
    %v1629 = vmul.f32 %v1619, %v1566
    %v1630 = vmul.f32 %v1623, %v1566
    %v1631 = vmul.f32 %v1627, %v1566
    %v1632 = vadd.f32 %v1608, %v1628
    %v1633 = vadd.f32 %v1609, %v1629
    %v1634 = vadd.f32 %v1610, %v1630
    %v1635 = vadd.f32 %v1611, %v1631
    %v1636 = vlaneseq
    %v1637 = vshrl.u32 %v1636, 7
    %v1638 = vsub.s32 3, %v1637
    %v1639 = vrot.slane %v1564, %v1638
    %v1640 = vlaneseq
    %v1641 = vshrl.u32 %v1640, 7
    %v1642 = vsub.s32 3, %v1641
    %v1643 = vrot.slane %v1565, %v1642
    %v1644 = vlaneseq
    %v1645 = vshrl.u32 %v1644, 7
    %v1646 = vsub.s32 3, %v1645
    %v1647 = vrot.slane %v1566, %v1646
    %v1648 = vlaneseq
    %v1649 = vshrl.u32 %v1648, 7
    %v1650 = vsub.s32 3, %v1649
    %v1651 = vrot.slane %v1567, %v1650
    %v1652 = vmul.f32 %v1639, %v1567
    %v1653 = vmul.f32 %v1643, %v1567
    %v1654 = vmul.f32 %v1647, %v1567
    %v1655 = vmul.f32 %v1651, %v1567
    %v1656 = vadd.f32 %v1632, %v1652
    %v1657 = vadd.f32 %v1633, %v1653
    %v1658 = vadd.f32 %v1634, %v1654
    %v1659 = vadd.f32 %v1635, %v1655
    %v1660 = vlaneseq
    %v1661 = vshrl.u32 %v1660, 7
    %v1662 = vsub.s32 0, %v1661
    %v1663 = vrot.slane %v1656, %v1662
    %v1664 = vlaneseq
    %v1665 = vshrl.u32 %v1664, 7
    %v1666 = vsub.s32 0, %v1665
    %v1667 = vrot.slane %v1657, %v1666
    %v1668 = vlaneseq
    %v1669 = vshrl.u32 %v1668, 7
    %v1670 = vsub.s32 0, %v1669
    %v1671 = vrot.slane %v1658, %v1670
    %v1672 = vlaneseq
    %v1673 = vshrl.u32 %v1672, 7
    %v1674 = vsub.s32 0, %v1673
    %v1675 = vrot.slane %v1659, %v1674
    %v1676 = vmul.f32 %v1663, %v1656
    %v1677 = vmul.f32 %v1667, %v1656
    %v1678 = vmul.f32 %v1671, %v1656
    %v1679 = vmul.f32 %v1675, %v1656
    %v1680 = vlaneseq
    %v1681 = vshrl.u32 %v1680, 7
    %v1682 = vsub.s32 1, %v1681
    %v1683 = vrot.slane %v1656, %v1682
    %v1684 = vlaneseq
    %v1685 = vshrl.u32 %v1684, 7
    %v1686 = vsub.s32 1, %v1685
    %v1687 = vrot.slane %v1657, %v1686
    %v1688 = vlaneseq
    %v1689 = vshrl.u32 %v1688, 7
    %v1690 = vsub.s32 1, %v1689
    %v1691 = vrot.slane %v1658, %v1690
    %v1692 = vlaneseq
    %v1693 = vshrl.u32 %v1692, 7
    %v1694 = vsub.s32 1, %v1693
    %v1695 = vrot.slane %v1659, %v1694
    %v1696 = vmul.f32 %v1683, %v1657
    %v1697 = vmul.f32 %v1687, %v1657
    %v1698 = vmul.f32 %v1691, %v1657
    %v1699 = vmul.f32 %v1695, %v1657
    %v1700 = vadd.f32 %v1676, %v1696
    %v1701 = vadd.f32 %v1677, %v1697
    %v1702 = vadd.f32 %v1678, %v1698
    %v1703 = vadd.f32 %v1679, %v1699
    %v1704 = vlaneseq
    %v1705 = vshrl.u32 %v1704, 7
    %v1706 = vsub.s32 2, %v1705
    %v1707 = vrot.slane %v1656, %v1706
    %v1708 = vlaneseq
    %v1709 = vshrl.u32 %v1708, 7
    %v1710 = vsub.s32 2, %v1709
    %v1711 = vrot.slane %v1657, %v1710
    %v1712 = vlaneseq
    %v1713 = vshrl.u32 %v1712, 7
    %v1714 = vsub.s32 2, %v1713
    %v1715 = vrot.slane %v1658, %v1714
    %v1716 = vlaneseq
    %v1717 = vshrl.u32 %v1716, 7
    %v1718 = vsub.s32 2, %v1717
    %v1719 = vrot.slane %v1659, %v1718
    %v1720 = vmul.f32 %v1707, %v1658
    %v1721 = vmul.f32 %v1711, %v1658
    %v1722 = vmul.f32 %v1715, %v1658
    %v1723 = vmul.f32 %v1719, %v1658
    %v1724 = vadd.f32 %v1700, %v1720
    %v1725 = vadd.f32 %v1701, %v1721
    %v1726 = vadd.f32 %v1702, %v1722
    %v1727 = vadd.f32 %v1703, %v1723
    %v1728 = vlaneseq
    %v1729 = vshrl.u32 %v1728, 7
    %v1730 = vsub.s32 3, %v1729
    %v1731 = vrot.slane %v1656, %v1730
    %v1732 = vlaneseq
    %v1733 = vshrl.u32 %v1732, 7
    %v1734 = vsub.s32 3, %v1733
    %v1735 = vrot.slane %v1657, %v1734
    %v1736 = vlaneseq
    %v1737 = vshrl.u32 %v1736, 7
    %v1738 = vsub.s32 3, %v1737
    %v1739 = vrot.slane %v1658, %v1738
    %v1740 = vlaneseq
    %v1741 = vshrl.u32 %v1740, 7
    %v1742 = vsub.s32 3, %v1741
    %v1743 = vrot.slane %v1659, %v1742
    %v1744 = vmul.f32 %v1731, %v1659
    %v1745 = vmul.f32 %v1735, %v1659
    %v1746 = vmul.f32 %v1739, %v1659
    %v1747 = vmul.f32 %v1743, %v1659
    %v1748 = vadd.f32 %v1724, %v1744
    %v1749 = vadd.f32 %v1725, %v1745
    %v1750 = vadd.f32 %v1726, %v1746
    %v1751 = vadd.f32 %v1727, %v1747
    %vm1752 = vcmask 125952
    %1753 = vst.msk [vmem:[#allocation2] sm:$0xf] %vm1752, %v1748
    %1754 = vst.msk [vmem:[#allocation2 + $0x4] sm:$0xf] %vm1752, %v1749
    %1755 = vst.msk [vmem:[#allocation2 + $0x8] sm:$0xf] %vm1752, %v1750
    %1756 = vst.msk [vmem:[#allocation2 + $0xc] sm:$0xf] %vm1752, %v1751
    %1758 = vset.pattern.permute.xlu0 0
    %1759 = vperm.xlu0 %1758, %v1170
    %v1760 = vpop.permute.xlu0 %1759
    %1763 = vset.pattern.permute.xlu0 0
    %1764 = vperm.xlu0 %1763, %v1171
    %v1765 = vpop.permute.xlu0 %1764
    %1768 = vset.pattern.permute.xlu0 0
    %1769 = vperm.xlu0 %1768, %v1172
    %v1770 = vpop.permute.xlu0 %1769
    %1773 = vset.pattern.permute.xlu0 0
    %1774 = vperm.xlu0 %1773, %v1173
    %v1775 = vpop.permute.xlu0 %1774
    %v1777 = vlaneseq
    %v1778 = vshrl.u32 %v1777, 7
    %v1779 = vsub.s32 4, %v1778
    %v1780 = vrot.slane %v1138, %v1779
    %v1781 = vmul.f32 %v1760, %v1780
    %v1782 = vmul.f32 %v1765, %v1780
    %v1783 = vmul.f32 %v1770, %v1780
    %v1784 = vmul.f32 %v1775, %v1780
    %1786 = vset.pattern.permute.xlu0 0
    %1787 = vperm.xlu0 %1786, %v1174
    %v1788 = vpop.permute.xlu0 %1787
    %1791 = vset.pattern.permute.xlu0 0
    %1792 = vperm.xlu0 %1791, %v1175
    %v1793 = vpop.permute.xlu0 %1792
    %1796 = vset.pattern.permute.xlu0 0
    %1797 = vperm.xlu0 %1796, %v1176
    %v1798 = vpop.permute.xlu0 %1797
    %1801 = vset.pattern.permute.xlu0 0
    %1802 = vperm.xlu0 %1801, %v1177
    %v1803 = vpop.permute.xlu0 %1802
    %v1805 = vlaneseq
    %v1806 = vshrl.u32 %v1805, 7
    %v1807 = vsub.s32 5, %v1806
    %v1808 = vrot.slane %v1138, %v1807
    %v1809 = vmul.f32 %v1788, %v1808
    %v1810 = vmul.f32 %v1793, %v1808
    %v1811 = vmul.f32 %v1798, %v1808
    %v1812 = vmul.f32 %v1803, %v1808
    %v1813 = vadd.f32 %v1781, %v1809
    %v1814 = vadd.f32 %v1782, %v1810
    %v1815 = vadd.f32 %v1783, %v1811
    %v1816 = vadd.f32 %v1784, %v1812
    %1818 = vset.pattern.permute.xlu0 0
    %1819 = vperm.xlu0 %1818, %v1178
    %v1820 = vpop.permute.xlu0 %1819
    %1823 = vset.pattern.permute.xlu0 0
    %1824 = vperm.xlu0 %1823, %v1179
    %v1825 = vpop.permute.xlu0 %1824
    %1828 = vset.pattern.permute.xlu0 0
    %1829 = vperm.xlu0 %1828, %v1180
    %v1830 = vpop.permute.xlu0 %1829
    %1833 = vset.pattern.permute.xlu0 0
    %1834 = vperm.xlu0 %1833, %v1181
    %v1835 = vpop.permute.xlu0 %1834
    %v1837 = vlaneseq
    %v1838 = vshrl.u32 %v1837, 7
    %v1839 = vsub.s32 6, %v1838
    %v1840 = vrot.slane %v1138, %v1839
    %v1841 = vmul.f32 %v1820, %v1840
    %v1842 = vmul.f32 %v1825, %v1840
    %v1843 = vmul.f32 %v1830, %v1840
    %v1844 = vmul.f32 %v1835, %v1840
    %v1845 = vadd.f32 %v1813, %v1841
    %v1846 = vadd.f32 %v1814, %v1842
    %v1847 = vadd.f32 %v1815, %v1843
    %v1848 = vadd.f32 %v1816, %v1844
    %1850 = vset.pattern.permute.xlu0 0
    %1851 = vperm.xlu0 %1850, %v1182
    %v1852 = vpop.permute.xlu0 %1851
    %1855 = vset.pattern.permute.xlu0 0
    %1856 = vperm.xlu0 %1855, %v1183
    %v1857 = vpop.permute.xlu0 %1856
    %1860 = vset.pattern.permute.xlu0 0
    %1861 = vperm.xlu0 %1860, %v1184
    %v1862 = vpop.permute.xlu0 %1861
    %1865 = vset.pattern.permute.xlu0 0
    %1866 = vperm.xlu0 %1865, %v1185
    %v1867 = vpop.permute.xlu0 %1866
    %v1869 = vlaneseq
    %v1870 = vshrl.u32 %v1869, 7
    %v1871 = vsub.s32 7, %v1870
    %v1872 = vrot.slane %v1138, %v1871
    %v1873 = vmul.f32 %v1852, %v1872
    %v1874 = vmul.f32 %v1857, %v1872
    %v1875 = vmul.f32 %v1862, %v1872
    %v1876 = vmul.f32 %v1867, %v1872
    %v1877 = vadd.f32 %v1845, %v1873
    %v1878 = vadd.f32 %v1846, %v1874
    %v1879 = vadd.f32 %v1847, %v1875
    %v1880 = vadd.f32 %v1848, %v1876
    %v1881 = vmul.f32 %v1877, 0.25
    %v1882 = vmul.f32 %v1878, 0.25
    %v1883 = vmul.f32 %v1879, 0.25
    %v1884 = vmul.f32 %v1880, 0.25
    %v1885 = vlaneseq
    %v1886 = vshrl.u32 %v1885, 7
    %v1887 = vsub.s32 0, %v1886
    %v1888 = vrot.slane %v1881, %v1887
    %v1889 = vlaneseq
    %v1890 = vshrl.u32 %v1889, 7
    %v1891 = vsub.s32 0, %v1890
    %v1892 = vrot.slane %v1882, %v1891
    %v1893 = vlaneseq
    %v1894 = vshrl.u32 %v1893, 7
    %v1895 = vsub.s32 0, %v1894
    %v1896 = vrot.slane %v1883, %v1895
    %v1897 = vlaneseq
    %v1898 = vshrl.u32 %v1897, 7
    %v1899 = vsub.s32 0, %v1898
    %v1900 = vrot.slane %v1884, %v1899
    %v1901 = vmul.f32 %v1888, %v1881
    %v1902 = vmul.f32 %v1892, %v1881
    %v1903 = vmul.f32 %v1896, %v1881
    %v1904 = vmul.f32 %v1900, %v1881
    %v1905 = vlaneseq
    %v1906 = vshrl.u32 %v1905, 7
    %v1907 = vsub.s32 1, %v1906
    %v1908 = vrot.slane %v1881, %v1907
    %v1909 = vlaneseq
    %v1910 = vshrl.u32 %v1909, 7
    %v1911 = vsub.s32 1, %v1910
    %v1912 = vrot.slane %v1882, %v1911
    %v1913 = vlaneseq
    %v1914 = vshrl.u32 %v1913, 7
    %v1915 = vsub.s32 1, %v1914
    %v1916 = vrot.slane %v1883, %v1915
    %v1917 = vlaneseq
    %v1918 = vshrl.u32 %v1917, 7
    %v1919 = vsub.s32 1, %v1918
    %v1920 = vrot.slane %v1884, %v1919
    %v1921 = vmul.f32 %v1908, %v1882
    %v1922 = vmul.f32 %v1912, %v1882
    %v1923 = vmul.f32 %v1916, %v1882
    %v1924 = vmul.f32 %v1920, %v1882
    %v1925 = vadd.f32 %v1901, %v1921
    %v1926 = vadd.f32 %v1902, %v1922
    %v1927 = vadd.f32 %v1903, %v1923
    %v1928 = vadd.f32 %v1904, %v1924
    %v1929 = vlaneseq
    %v1930 = vshrl.u32 %v1929, 7
    %v1931 = vsub.s32 2, %v1930
    %v1932 = vrot.slane %v1881, %v1931
    %v1933 = vlaneseq
    %v1934 = vshrl.u32 %v1933, 7
    %v1935 = vsub.s32 2, %v1934
    %v1936 = vrot.slane %v1882, %v1935
    %v1937 = vlaneseq
    %v1938 = vshrl.u32 %v1937, 7
    %v1939 = vsub.s32 2, %v1938
    %v1940 = vrot.slane %v1883, %v1939
    %v1941 = vlaneseq
    %v1942 = vshrl.u32 %v1941, 7
    %v1943 = vsub.s32 2, %v1942
    %v1944 = vrot.slane %v1884, %v1943
    %v1945 = vmul.f32 %v1932, %v1883
    %v1946 = vmul.f32 %v1936, %v1883
    %v1947 = vmul.f32 %v1940, %v1883
    %v1948 = vmul.f32 %v1944, %v1883
    %v1949 = vadd.f32 %v1925, %v1945
    %v1950 = vadd.f32 %v1926, %v1946
    %v1951 = vadd.f32 %v1927, %v1947
    %v1952 = vadd.f32 %v1928, %v1948
    %v1953 = vlaneseq
    %v1954 = vshrl.u32 %v1953, 7
    %v1955 = vsub.s32 3, %v1954
    %v1956 = vrot.slane %v1881, %v1955
    %v1957 = vlaneseq
    %v1958 = vshrl.u32 %v1957, 7
    %v1959 = vsub.s32 3, %v1958
    %v1960 = vrot.slane %v1882, %v1959
    %v1961 = vlaneseq
    %v1962 = vshrl.u32 %v1961, 7
    %v1963 = vsub.s32 3, %v1962
    %v1964 = vrot.slane %v1883, %v1963
    %v1965 = vlaneseq
    %v1966 = vshrl.u32 %v1965, 7
    %v1967 = vsub.s32 3, %v1966
    %v1968 = vrot.slane %v1884, %v1967
    %v1969 = vmul.f32 %v1956, %v1884
    %v1970 = vmul.f32 %v1960, %v1884
    %v1971 = vmul.f32 %v1964, %v1884
    %v1972 = vmul.f32 %v1968, %v1884
    %v1973 = vadd.f32 %v1949, %v1969
    %v1974 = vadd.f32 %v1950, %v1970
    %v1975 = vadd.f32 %v1951, %v1971
    %v1976 = vadd.f32 %v1952, %v1972
    %v1977 = vlaneseq
    %v1978 = vshrl.u32 %v1977, 7
    %v1979 = vsub.s32 0, %v1978
    %v1980 = vrot.slane %v1973, %v1979
    %v1981 = vlaneseq
    %v1982 = vshrl.u32 %v1981, 7
    %v1983 = vsub.s32 0, %v1982
    %v1984 = vrot.slane %v1974, %v1983
    %v1985 = vlaneseq
    %v1986 = vshrl.u32 %v1985, 7
    %v1987 = vsub.s32 0, %v1986
    %v1988 = vrot.slane %v1975, %v1987
    %v1989 = vlaneseq
    %v1990 = vshrl.u32 %v1989, 7
    %v1991 = vsub.s32 0, %v1990
    %v1992 = vrot.slane %v1976, %v1991
    %v1993 = vmul.f32 %v1980, %v1881
    %v1994 = vmul.f32 %v1984, %v1881
    %v1995 = vmul.f32 %v1988, %v1881
    %v1996 = vmul.f32 %v1992, %v1881
    %v1997 = vlaneseq
    %v1998 = vshrl.u32 %v1997, 7
    %v1999 = vsub.s32 1, %v1998
    %v2000 = vrot.slane %v1973, %v1999
    %v2001 = vlaneseq
    %v2002 = vshrl.u32 %v2001, 7
    %v2003 = vsub.s32 1, %v2002
    %v2004 = vrot.slane %v1974, %v2003
    %v2005 = vlaneseq
    %v2006 = vshrl.u32 %v2005, 7
    %v2007 = vsub.s32 1, %v2006
    %v2008 = vrot.slane %v1975, %v2007
    %v2009 = vlaneseq
    %v2010 = vshrl.u32 %v2009, 7
    %v2011 = vsub.s32 1, %v2010
    %v2012 = vrot.slane %v1976, %v2011
    %v2013 = vmul.f32 %v2000, %v1882
    %v2014 = vmul.f32 %v2004, %v1882
    %v2015 = vmul.f32 %v2008, %v1882
    %v2016 = vmul.f32 %v2012, %v1882
    %v2017 = vadd.f32 %v1993, %v2013
    %v2018 = vadd.f32 %v1994, %v2014
    %v2019 = vadd.f32 %v1995, %v2015
    %v2020 = vadd.f32 %v1996, %v2016
    %v2021 = vlaneseq
    %v2022 = vshrl.u32 %v2021, 7
    %v2023 = vsub.s32 2, %v2022
    %v2024 = vrot.slane %v1973, %v2023
    %v2025 = vlaneseq
    %v2026 = vshrl.u32 %v2025, 7
    %v2027 = vsub.s32 2, %v2026
    %v2028 = vrot.slane %v1974, %v2027
    %v2029 = vlaneseq
    %v2030 = vshrl.u32 %v2029, 7
    %v2031 = vsub.s32 2, %v2030
    %v2032 = vrot.slane %v1975, %v2031
    %v2033 = vlaneseq
    %v2034 = vshrl.u32 %v2033, 7
    %v2035 = vsub.s32 2, %v2034
    %v2036 = vrot.slane %v1976, %v2035
    %v2037 = vmul.f32 %v2024, %v1883
    %v2038 = vmul.f32 %v2028, %v1883
    %v2039 = vmul.f32 %v2032, %v1883
    %v2040 = vmul.f32 %v2036, %v1883
    %v2041 = vadd.f32 %v2017, %v2037
    %v2042 = vadd.f32 %v2018, %v2038
    %v2043 = vadd.f32 %v2019, %v2039
    %v2044 = vadd.f32 %v2020, %v2040
    %v2045 = vlaneseq
    %v2046 = vshrl.u32 %v2045, 7
    %v2047 = vsub.s32 3, %v2046
    %v2048 = vrot.slane %v1973, %v2047
    %v2049 = vlaneseq
    %v2050 = vshrl.u32 %v2049, 7
    %v2051 = vsub.s32 3, %v2050
    %v2052 = vrot.slane %v1974, %v2051
    %v2053 = vlaneseq
    %v2054 = vshrl.u32 %v2053, 7
    %v2055 = vsub.s32 3, %v2054
    %v2056 = vrot.slane %v1975, %v2055
    %v2057 = vlaneseq
    %v2058 = vshrl.u32 %v2057, 7
    %v2059 = vsub.s32 3, %v2058
    %v2060 = vrot.slane %v1976, %v2059
    %v2061 = vmul.f32 %v2048, %v1884
    %v2062 = vmul.f32 %v2052, %v1884
    %v2063 = vmul.f32 %v2056, %v1884
    %v2064 = vmul.f32 %v2060, %v1884
    %v2065 = vadd.f32 %v2041, %v2061
    %v2066 = vadd.f32 %v2042, %v2062
    %v2067 = vadd.f32 %v2043, %v2063
    %v2068 = vadd.f32 %v2044, %v2064
    %v2069 = vmul.f32 %v1980, %v1973
    %v2070 = vmul.f32 %v1984, %v1973
    %v2071 = vmul.f32 %v1988, %v1973
    %v2072 = vmul.f32 %v1992, %v1973
    %v2073 = vmul.f32 %v2000, %v1974
    %v2074 = vmul.f32 %v2004, %v1974
    %v2075 = vmul.f32 %v2008, %v1974
    %v2076 = vmul.f32 %v2012, %v1974
    %v2077 = vadd.f32 %v2069, %v2073
    %v2078 = vadd.f32 %v2070, %v2074
    %v2079 = vadd.f32 %v2071, %v2075
    %v2080 = vadd.f32 %v2072, %v2076
    %v2081 = vmul.f32 %v2024, %v1975
    %v2082 = vmul.f32 %v2028, %v1975
    %v2083 = vmul.f32 %v2032, %v1975
    %v2084 = vmul.f32 %v2036, %v1975
    %v2085 = vadd.f32 %v2077, %v2081
    %v2086 = vadd.f32 %v2078, %v2082
    %v2087 = vadd.f32 %v2079, %v2083
    %v2088 = vadd.f32 %v2080, %v2084
    %v2089 = vmul.f32 %v2048, %v1976
    %v2090 = vmul.f32 %v2052, %v1976
    %v2091 = vmul.f32 %v2056, %v1976
    %v2092 = vmul.f32 %v2060, %v1976
    %v2093 = vadd.f32 %v2085, %v2089
    %v2094 = vadd.f32 %v2086, %v2090
    %v2095 = vadd.f32 %v2087, %v2091
    %v2096 = vadd.f32 %v2088, %v2092
    %v2097 = vadd.f32 %v1324, %v1881
    %v2098 = vadd.f32 %v1325, %v1882
    %v2099 = vadd.f32 %v1326, %v1883
    %v2100 = vadd.f32 %v1327, %v1884
    %v2101 = vmul.f32 %v1973, 0.5
    %v2102 = vmul.f32 %v1974, 0.5
    %v2103 = vmul.f32 %v1975, 0.5
    %v2104 = vmul.f32 %v1976, 0.5
    %v2105 = vadd.f32 %v2097, %v2101
    %v2106 = vadd.f32 %v2098, %v2102
    %v2107 = vadd.f32 %v2099, %v2103
    %v2108 = vadd.f32 %v2100, %v2104
    %v2109 = vmul.f32 %v2065, 0.16666667
    %v2110 = vmul.f32 %v2066, 0.16666667
    %v2111 = vmul.f32 %v2067, 0.16666667
    %v2112 = vmul.f32 %v2068, 0.16666667
    %v2113 = vadd.f32 %v2105, %v2109
    %v2114 = vadd.f32 %v2106, %v2110
    %v2115 = vadd.f32 %v2107, %v2111
    %v2116 = vadd.f32 %v2108, %v2112
    %v2117 = vmul.f32 %v2093, 0.041666668
    %v2118 = vmul.f32 %v2094, 0.041666668
    %v2119 = vmul.f32 %v2095, 0.041666668
    %v2120 = vmul.f32 %v2096, 0.041666668
    %v2121 = vadd.f32 %v2113, %v2117
    %v2122 = vadd.f32 %v2114, %v2118
    %v2123 = vadd.f32 %v2115, %v2119
    %v2124 = vadd.f32 %v2116, %v2120
    %v2125 = vlaneseq
    %v2126 = vshrl.u32 %v2125, 7
    %v2127 = vsub.s32 0, %v2126
    %v2128 = vrot.slane %v2121, %v2127
    %v2129 = vlaneseq
    %v2130 = vshrl.u32 %v2129, 7
    %v2131 = vsub.s32 0, %v2130
    %v2132 = vrot.slane %v2122, %v2131
    %v2133 = vlaneseq
    %v2134 = vshrl.u32 %v2133, 7
    %v2135 = vsub.s32 0, %v2134
    %v2136 = vrot.slane %v2123, %v2135
    %v2137 = vlaneseq
    %v2138 = vshrl.u32 %v2137, 7
    %v2139 = vsub.s32 0, %v2138
    %v2140 = vrot.slane %v2124, %v2139
    %v2141 = vmul.f32 %v2128, %v2121
    %v2142 = vmul.f32 %v2132, %v2121
    %v2143 = vmul.f32 %v2136, %v2121
    %v2144 = vmul.f32 %v2140, %v2121
    %v2145 = vlaneseq
    %v2146 = vshrl.u32 %v2145, 7
    %v2147 = vsub.s32 1, %v2146
    %v2148 = vrot.slane %v2121, %v2147
    %v2149 = vlaneseq
    %v2150 = vshrl.u32 %v2149, 7
    %v2151 = vsub.s32 1, %v2150
    %v2152 = vrot.slane %v2122, %v2151
    %v2153 = vlaneseq
    %v2154 = vshrl.u32 %v2153, 7
    %v2155 = vsub.s32 1, %v2154
    %v2156 = vrot.slane %v2123, %v2155
    %v2157 = vlaneseq
    %v2158 = vshrl.u32 %v2157, 7
    %v2159 = vsub.s32 1, %v2158
    %v2160 = vrot.slane %v2124, %v2159
    %v2161 = vmul.f32 %v2148, %v2122
    %v2162 = vmul.f32 %v2152, %v2122
    %v2163 = vmul.f32 %v2156, %v2122
    %v2164 = vmul.f32 %v2160, %v2122
    %v2165 = vadd.f32 %v2141, %v2161
    %v2166 = vadd.f32 %v2142, %v2162
    %v2167 = vadd.f32 %v2143, %v2163
    %v2168 = vadd.f32 %v2144, %v2164
    %v2169 = vlaneseq
    %v2170 = vshrl.u32 %v2169, 7
    %v2171 = vsub.s32 2, %v2170
    %v2172 = vrot.slane %v2121, %v2171
    %v2173 = vlaneseq
    %v2174 = vshrl.u32 %v2173, 7
    %v2175 = vsub.s32 2, %v2174
    %v2176 = vrot.slane %v2122, %v2175
    %v2177 = vlaneseq
    %v2178 = vshrl.u32 %v2177, 7
    %v2179 = vsub.s32 2, %v2178
    %v2180 = vrot.slane %v2123, %v2179
    %v2181 = vlaneseq
    %v2182 = vshrl.u32 %v2181, 7
    %v2183 = vsub.s32 2, %v2182
    %v2184 = vrot.slane %v2124, %v2183
    %v2185 = vmul.f32 %v2172, %v2123
    %v2186 = vmul.f32 %v2176, %v2123
    %v2187 = vmul.f32 %v2180, %v2123
    %v2188 = vmul.f32 %v2184, %v2123
    %v2189 = vadd.f32 %v2165, %v2185
    %v2190 = vadd.f32 %v2166, %v2186
    %v2191 = vadd.f32 %v2167, %v2187
    %v2192 = vadd.f32 %v2168, %v2188
    %v2193 = vlaneseq
    %v2194 = vshrl.u32 %v2193, 7
    %v2195 = vsub.s32 3, %v2194
    %v2196 = vrot.slane %v2121, %v2195
    %v2197 = vlaneseq
    %v2198 = vshrl.u32 %v2197, 7
    %v2199 = vsub.s32 3, %v2198
    %v2200 = vrot.slane %v2122, %v2199
    %v2201 = vlaneseq
    %v2202 = vshrl.u32 %v2201, 7
    %v2203 = vsub.s32 3, %v2202
    %v2204 = vrot.slane %v2123, %v2203
    %v2205 = vlaneseq
    %v2206 = vshrl.u32 %v2205, 7
    %v2207 = vsub.s32 3, %v2206
    %v2208 = vrot.slane %v2124, %v2207
    %v2209 = vmul.f32 %v2196, %v2124
    %v2210 = vmul.f32 %v2200, %v2124
    %v2211 = vmul.f32 %v2204, %v2124
    %v2212 = vmul.f32 %v2208, %v2124
    %v2213 = vadd.f32 %v2189, %v2209
    %v2214 = vadd.f32 %v2190, %v2210
    %v2215 = vadd.f32 %v2191, %v2211
    %v2216 = vadd.f32 %v2192, %v2212
    %v2217 = vlaneseq
    %v2218 = vshrl.u32 %v2217, 7
    %v2219 = vsub.s32 0, %v2218
    %v2220 = vrot.slane %v2213, %v2219
    %v2221 = vlaneseq
    %v2222 = vshrl.u32 %v2221, 7
    %v2223 = vsub.s32 0, %v2222
    %v2224 = vrot.slane %v2214, %v2223
    %v2225 = vlaneseq
    %v2226 = vshrl.u32 %v2225, 7
    %v2227 = vsub.s32 0, %v2226
    %v2228 = vrot.slane %v2215, %v2227
    %v2229 = vlaneseq
    %v2230 = vshrl.u32 %v2229, 7
    %v2231 = vsub.s32 0, %v2230
    %v2232 = vrot.slane %v2216, %v2231
    %v2233 = vmul.f32 %v2220, %v2213
    %v2234 = vmul.f32 %v2224, %v2213
    %v2235 = vmul.f32 %v2228, %v2213
    %v2236 = vmul.f32 %v2232, %v2213
    %v2237 = vlaneseq
    %v2238 = vshrl.u32 %v2237, 7
    %v2239 = vsub.s32 1, %v2238
    %v2240 = vrot.slane %v2213, %v2239
    %v2241 = vlaneseq
    %v2242 = vshrl.u32 %v2241, 7
    %v2243 = vsub.s32 1, %v2242
    %v2244 = vrot.slane %v2214, %v2243
    %v2245 = vlaneseq
    %v2246 = vshrl.u32 %v2245, 7
    %v2247 = vsub.s32 1, %v2246
    %v2248 = vrot.slane %v2215, %v2247
    %v2249 = vlaneseq
    %v2250 = vshrl.u32 %v2249, 7
    %v2251 = vsub.s32 1, %v2250
    %v2252 = vrot.slane %v2216, %v2251
    %v2253 = vmul.f32 %v2240, %v2214
    %v2254 = vmul.f32 %v2244, %v2214
    %v2255 = vmul.f32 %v2248, %v2214
    %v2256 = vmul.f32 %v2252, %v2214
    %v2257 = vadd.f32 %v2233, %v2253
    %v2258 = vadd.f32 %v2234, %v2254
    %v2259 = vadd.f32 %v2235, %v2255
    %v2260 = vadd.f32 %v2236, %v2256
    %v2261 = vlaneseq
    %v2262 = vshrl.u32 %v2261, 7
    %v2263 = vsub.s32 2, %v2262
    %v2264 = vrot.slane %v2213, %v2263
    %v2265 = vlaneseq
    %v2266 = vshrl.u32 %v2265, 7
    %v2267 = vsub.s32 2, %v2266
    %v2268 = vrot.slane %v2214, %v2267
    %v2269 = vlaneseq
    %v2270 = vshrl.u32 %v2269, 7
    %v2271 = vsub.s32 2, %v2270
    %v2272 = vrot.slane %v2215, %v2271
    %v2273 = vlaneseq
    %v2274 = vshrl.u32 %v2273, 7
    %v2275 = vsub.s32 2, %v2274
    %v2276 = vrot.slane %v2216, %v2275
    %v2277 = vmul.f32 %v2264, %v2215
    %v2278 = vmul.f32 %v2268, %v2215
    %v2279 = vmul.f32 %v2272, %v2215
    %v2280 = vmul.f32 %v2276, %v2215
    %v2281 = vadd.f32 %v2257, %v2277
    %v2282 = vadd.f32 %v2258, %v2278
    %v2283 = vadd.f32 %v2259, %v2279
    %v2284 = vadd.f32 %v2260, %v2280
    %v2285 = vlaneseq
    %v2286 = vshrl.u32 %v2285, 7
    %v2287 = vsub.s32 3, %v2286
    %v2288 = vrot.slane %v2213, %v2287
    %v2289 = vlaneseq
    %v2290 = vshrl.u32 %v2289, 7
    %v2291 = vsub.s32 3, %v2290
    %v2292 = vrot.slane %v2214, %v2291
    %v2293 = vlaneseq
    %v2294 = vshrl.u32 %v2293, 7
    %v2295 = vsub.s32 3, %v2294
    %v2296 = vrot.slane %v2215, %v2295
    %v2297 = vlaneseq
    %v2298 = vshrl.u32 %v2297, 7
    %v2299 = vsub.s32 3, %v2298
    %v2300 = vrot.slane %v2216, %v2299
    %v2301 = vmul.f32 %v2288, %v2216
    %v2302 = vmul.f32 %v2292, %v2216
    %v2303 = vmul.f32 %v2296, %v2216
    %v2304 = vmul.f32 %v2300, %v2216
    %v2305 = vadd.f32 %v2281, %v2301
    %v2306 = vadd.f32 %v2282, %v2302
    %v2307 = vadd.f32 %v2283, %v2303
    %v2308 = vadd.f32 %v2284, %v2304
    %2309 = vst.msk [vmem:[#allocation2 + $0x10] sm:$0xf] %vm1752, %v2305
    %2310 = vst.msk [vmem:[#allocation2 + $0x14] sm:$0xf] %vm1752, %v2306
    %2311 = vst.msk [vmem:[#allocation2 + $0x18] sm:$0xf] %vm1752, %v2307
    %2312 = vst.msk [vmem:[#allocation2 + $0x1c] sm:$0xf] %vm1752, %v2308
    %v2313 = vld [vmem:[#allocation2] sm:$0xff]
    %v2314 = vld [vmem:[#allocation2 + $0x8] sm:$0xff]
    %v2315 = vld [vmem:[#allocation2 + $0x10] sm:$0xff]
    %v2316 = vld [vmem:[#allocation2 + $0x18] sm:$0xff]
    %2317 = vxpose.xlu0.b32.start [1/16] %v2313, 128
    %2318 = vxpose.xlu0.b32.cont [2/16] %v2314, 128
    %2319 = vxpose.xlu0.b32.cont [3/16] %v2315, 128
    %2320 = vxpose.xlu0.b32.cont [4/16] %v2316, 128
    %2321 = vxpose.xlu0.b32.cont [5/16] 0.0, 128
    %2322 = vxpose.xlu0.b32.cont [6/16] 0.0, 128
    %2323 = vxpose.xlu0.b32.cont [7/16] 0.0, 128
    %2324 = vxpose.xlu0.b32.cont [8/16] 0.0, 128
    %2325 = vxpose.xlu0.b32.cont [9/16] 0.0, 128
    %2326 = vxpose.xlu0.b32.cont [10/16] 0.0, 128
    %2327 = vxpose.xlu0.b32.cont [11/16] 0.0, 128
    %2328 = vxpose.xlu0.b32.cont [12/16] 0.0, 128
    %2329 = vxpose.xlu0.b32.cont [13/16] 0.0, 128
    %2330 = vxpose.xlu0.b32.cont [14/16] 0.0, 128
    %2331 = vxpose.xlu0.b32.cont [15/16] 0.0, 128
    %2332 = vxpose.xlu0.b32.end [16/16] 0.0, 128
    %v2333 = vpop.trf.xlu0
    %v2334 = vpop.trf.xlu0
    %v2335 = vpop.trf.xlu0
    %v2336 = vpop.trf.xlu0
    %v2337 = vpop.trf.xlu0
    %v2338 = vpop.trf.xlu0
    %v2339 = vpop.trf.xlu0
    %v2340 = vpop.trf.xlu0
    %v2341 = vpop.trf.xlu0
    %v2342 = vpop.trf.xlu0
    %v2343 = vpop.trf.xlu0
    %v2344 = vpop.trf.xlu0
    %v2345 = vpop.trf.xlu0
    %v2346 = vpop.trf.xlu0
    %v2347 = vpop.trf.xlu0
    %v2348 = vpop.trf.xlu0
    %v2349 = vpack.c.bf16 %v2334, %v2333
    %v2350 = vld [vmem:[#allocation12] sm:$0xff]
    %v2351 = vld [vmem:[#allocation12 + $0x8] sm:$0xff]
    %v2352 = vld [vmem:[#allocation12 + $0x10] sm:$0xff]
    %v2353 = vld [vmem:[#allocation12 + $0x18] sm:$0xff]
    %v2354 = vld [vmem:[#allocation12 + $0x20] sm:$0xff]
    %v2355 = vld [vmem:[#allocation12 + $0x28] sm:$0xff]
    %v2356 = vld [vmem:[#allocation12 + $0x30] sm:$0xff]
    %v2357 = vld [vmem:[#allocation12 + $0x38] sm:$0xff]
    %v2358 = vld [vmem:[#allocation12 + $0x40] sm:$0xff]
    %v2359 = vld [vmem:[#allocation12 + $0x48] sm:$0xff]
    %v2360 = vld [vmem:[#allocation12 + $0x50] sm:$0xff]
    %v2361 = vld [vmem:[#allocation12 + $0x58] sm:$0xff]
    %v2362 = vld [vmem:[#allocation12 + $0x60] sm:$0xff]
    %v2363 = vld [vmem:[#allocation12 + $0x68] sm:$0xff]
    %v2364 = vld [vmem:[#allocation12 + $0x70] sm:$0xff]
    %v2365 = vld [vmem:[#allocation12 + $0x78] sm:$0xff]
    %v2367 = vlaneseq
    %v2368 = vshrl.u32 %v2367, 7
    %v2369 = vsub.s32 0, %v2368
    %v2370 = vrot.slane %v127, %v2369
    %v2371 = vlaneseq
    %v2372 = vshrl.u32 %v2371, 7
    %v2373 = vsub.s32 1, %v2372
    %v2374 = vrot.slane %v127, %v2373
    %v2375 = vlaneseq
    %v2376 = vshrl.u32 %v2375, 7
    %v2377 = vsub.s32 2, %v2376
    %v2378 = vrot.slane %v127, %v2377
    %v2379 = vlaneseq
    %v2380 = vshrl.u32 %v2379, 7
    %v2381 = vsub.s32 3, %v2380
    %v2382 = vrot.slane %v127, %v2381
    %v2383 = vlaneseq
    %v2384 = vshrl.u32 %v2383, 7
    %v2385 = vsub.s32 4, %v2384
    %v2386 = vrot.slane %v127, %v2385
    %v2387 = vlaneseq
    %v2388 = vshrl.u32 %v2387, 7
    %v2389 = vsub.s32 5, %v2388
    %v2390 = vrot.slane %v127, %v2389
    %v2391 = vlaneseq
    %v2392 = vshrl.u32 %v2391, 7
    %v2393 = vsub.s32 6, %v2392
    %v2394 = vrot.slane %v127, %v2393
    %v2395 = vlaneseq
    %v2396 = vshrl.u32 %v2395, 7
    %v2397 = vsub.s32 7, %v2396
    %v2398 = vrot.slane %v127, %v2397
    %v2423 = vunpack.c.l.b16 %v2350
    %v2424 = vunpack.c.h.b16 %v2350
    %v2425 = vunpack.c.l.b16 %v2351
    %v2426 = vunpack.c.h.b16 %v2351
    %v2427 = vunpack.c.l.b16 %v2352
    %v2428 = vunpack.c.h.b16 %v2352
    %v2429 = vunpack.c.l.b16 %v2353
    %v2430 = vunpack.c.h.b16 %v2353
    %v2431 = vunpack.c.l.b16 %v2354
    %v2432 = vunpack.c.h.b16 %v2354
    %v2433 = vunpack.c.l.b16 %v2355
    %v2434 = vunpack.c.h.b16 %v2355
    %v2435 = vunpack.c.l.b16 %v2356
    %v2436 = vunpack.c.h.b16 %v2356
    %v2437 = vunpack.c.l.b16 %v2357
    %v2438 = vunpack.c.h.b16 %v2357
    %v2439 = vunpack.c.l.b16 %v2358
    %v2440 = vunpack.c.h.b16 %v2358
    %v2441 = vunpack.c.l.b16 %v2359
    %v2442 = vunpack.c.h.b16 %v2359
    %v2443 = vunpack.c.l.b16 %v2360
    %v2444 = vunpack.c.h.b16 %v2360
    %v2445 = vunpack.c.l.b16 %v2361
    %v2446 = vunpack.c.h.b16 %v2361
    %v2447 = vunpack.c.l.b16 %v2362
    %v2448 = vunpack.c.h.b16 %v2362
    %v2449 = vunpack.c.l.b16 %v2363
    %v2450 = vunpack.c.h.b16 %v2363
    %v2451 = vunpack.c.l.b16 %v2364
    %v2452 = vunpack.c.h.b16 %v2364
    %v2453 = vunpack.c.l.b16 %v2365
    %v2454 = vunpack.c.h.b16 %v2365
    %v2455 = vpack.c.b16 %v2431, %v2423
    %v2456 = vpack.c.b16 %v2432, %v2424
    %v2457 = vpack.c.b16 %v2433, %v2425
    %v2458 = vpack.c.b16 %v2434, %v2426
    %v2459 = vpack.c.b16 %v2435, %v2427
    %v2460 = vpack.c.b16 %v2436, %v2428
    %v2461 = vpack.c.b16 %v2437, %v2429
    %v2462 = vpack.c.b16 %v2438, %v2430
    %v2463 = vpack.c.b16 %v2447, %v2439
    %v2464 = vpack.c.b16 %v2448, %v2440
    %v2465 = vpack.c.b16 %v2449, %v2441
    %v2466 = vpack.c.b16 %v2450, %v2442
    %v2467 = vpack.c.b16 %v2451, %v2443
    %v2468 = vpack.c.b16 %v2452, %v2444
    %v2469 = vpack.c.b16 %v2453, %v2445
    %v2470 = vpack.c.b16 %v2454, %v2446
    %v2488 = vsel %vm894, %v2349, 0
    %2490 = vmatprep.subr.bf16.mxu0 %v2456
    %2491 = vmatpush1.bf16.msra.mxu0 %v2455
    %2492 = vmatprep.subr.bf16.mxu0 %v2464
    %2493 = vmatpush1.bf16.msra.mxu0 %v2463
    %2494 = vmatprep.subr.bf16.mxu0 0
    %2495 = vmatpush1.bf16.msra.mxu0 0
    %2496 = vmatprep.subr.bf16.mxu0 0
    %2497 = vmatpush1.bf16.msra.mxu0 0
    %2498 = vmatprep.subr.bf16.mxu0 0
    %2499 = vmatpush1.bf16.msra.mxu0 0
    %2500 = vmatprep.subr.bf16.mxu0 0
    %2501 = vmatpush1.bf16.msra.mxu0 0
    %2502 = vmatprep.subr.bf16.mxu0 0
    %2503 = vmatpush1.bf16.msra.mxu0 0
    %2504 = vmatprep.subr.bf16.mxu0 0
    %2505 = vmatpush1.bf16.msra.mxu0 0
    %2506 = vmatprep.subr.bf16.mxu0 0
    %2507 = vmatpush1.bf16.msra.mxu0 0
    %2508 = vmatprep.subr.bf16.mxu0 0
    %2509 = vmatpush1.bf16.msra.mxu0 0
    %2510 = vmatprep.subr.bf16.mxu0 0
    %2511 = vmatpush1.bf16.msra.mxu0 0
    %2512 = vmatprep.subr.bf16.mxu0 0
    %2513 = vmatpush1.bf16.msra.mxu0 0
    %2514 = vmatprep.subr.bf16.mxu0 0
    %2515 = vmatpush1.bf16.msra.mxu0 0
    %2516 = vmatprep.subr.bf16.mxu0 0
    %2517 = vmatpush1.bf16.msra.mxu0 0
    %2518 = vmatprep.subr.bf16.mxu0 0
    %2519 = vmatpush1.bf16.msra.mxu0 0
    %2520 = vmatprep.subr.bf16.mxu0 0
    %2521 = vmatpush1.bf16.msra.mxu0 0
    %2522 = vmatprep.mubr.bf16.mxu0 0
    %2523 = vmatmul.mubr.bf16.gmra.mrb[0].mxu0 %v2488
    %v2524 = vpop.f32.mrb[0].mxu0
    %v2525 = vadd.f32 %v2370, %v2524
    %v2526 = vpop.f32.mrb[0].mxu0
    %v2527 = vadd.f32 %v2374, %v2526
    %v2528 = vpop.f32.mrb[0].mxu0
    %v2529 = vadd.f32 %v2370, %v2528
    %v2530 = vpop.f32.mrb[0].mxu0
    %v2531 = vadd.f32 %v2374, %v2530
    %2532 = vdwg.mxu0
    %2533 = vmatprep.subr.bf16.mxu0 %v2458
    %2534 = vmatpush1.bf16.msra.mxu0 %v2457
    %2535 = vmatprep.subr.bf16.mxu0 %v2466
    %2536 = vmatpush1.bf16.msra.mxu0 %v2465
    %2537 = vmatprep.subr.bf16.mxu0 0
    %2538 = vmatpush1.bf16.msra.mxu0 0
    %2539 = vmatprep.subr.bf16.mxu0 0
    %2540 = vmatpush1.bf16.msra.mxu0 0
    %2541 = vmatprep.subr.bf16.mxu0 0
    %2542 = vmatpush1.bf16.msra.mxu0 0
    %2543 = vmatprep.subr.bf16.mxu0 0
    %2544 = vmatpush1.bf16.msra.mxu0 0
    %2545 = vmatprep.subr.bf16.mxu0 0
    %2546 = vmatpush1.bf16.msra.mxu0 0
    %2547 = vmatprep.subr.bf16.mxu0 0
    %2548 = vmatpush1.bf16.msra.mxu0 0
    %2549 = vmatprep.subr.bf16.mxu0 0
    %2550 = vmatpush1.bf16.msra.mxu0 0
    %2551 = vmatprep.subr.bf16.mxu0 0
    %2552 = vmatpush1.bf16.msra.mxu0 0
    %2553 = vmatprep.subr.bf16.mxu0 0
    %2554 = vmatpush1.bf16.msra.mxu0 0
    %2555 = vmatprep.subr.bf16.mxu0 0
    %2556 = vmatpush1.bf16.msra.mxu0 0
    %2557 = vmatprep.subr.bf16.mxu0 0
    %2558 = vmatpush1.bf16.msra.mxu0 0
    %2559 = vmatprep.subr.bf16.mxu0 0
    %2560 = vmatpush1.bf16.msra.mxu0 0
    %2561 = vmatprep.subr.bf16.mxu0 0
    %2562 = vmatpush1.bf16.msra.mxu0 0
    %2563 = vmatprep.subr.bf16.mxu0 0
    %2564 = vmatpush1.bf16.msra.mxu0 0
    %2565 = vmatprep.mubr.bf16.mxu0 0
    %2566 = vmatmul.mubr.bf16.gmra.mrb[0].mxu0 %v2488
    %v2567 = vpop.f32.mrb[0].mxu0
    %v2568 = vadd.f32 %v2378, %v2567
    %v2569 = vpop.f32.mrb[0].mxu0
    %v2570 = vadd.f32 %v2382, %v2569
    %v2571 = vpop.f32.mrb[0].mxu0
    %v2572 = vadd.f32 %v2378, %v2571
    %v2573 = vpop.f32.mrb[0].mxu0
    %v2574 = vadd.f32 %v2382, %v2573
    %2575 = vdwg.mxu0
    %2576 = vmatprep.subr.bf16.mxu0 %v2460
    %2577 = vmatpush1.bf16.msra.mxu0 %v2459
    %2578 = vmatprep.subr.bf16.mxu0 %v2468
    %2579 = vmatpush1.bf16.msra.mxu0 %v2467
    %2580 = vmatprep.subr.bf16.mxu0 0
    %2581 = vmatpush1.bf16.msra.mxu0 0
    %2582 = vmatprep.subr.bf16.mxu0 0
    %2583 = vmatpush1.bf16.msra.mxu0 0
    %2584 = vmatprep.subr.bf16.mxu0 0
    %2585 = vmatpush1.bf16.msra.mxu0 0
    %2586 = vmatprep.subr.bf16.mxu0 0
    %2587 = vmatpush1.bf16.msra.mxu0 0
    %2588 = vmatprep.subr.bf16.mxu0 0
    %2589 = vmatpush1.bf16.msra.mxu0 0
    %2590 = vmatprep.subr.bf16.mxu0 0
    %2591 = vmatpush1.bf16.msra.mxu0 0
    %2592 = vmatprep.subr.bf16.mxu0 0
    %2593 = vmatpush1.bf16.msra.mxu0 0
    %2594 = vmatprep.subr.bf16.mxu0 0
    %2595 = vmatpush1.bf16.msra.mxu0 0
    %2596 = vmatprep.subr.bf16.mxu0 0
    %2597 = vmatpush1.bf16.msra.mxu0 0
    %2598 = vmatprep.subr.bf16.mxu0 0
    %2599 = vmatpush1.bf16.msra.mxu0 0
    %2600 = vmatprep.subr.bf16.mxu0 0
    %2601 = vmatpush1.bf16.msra.mxu0 0
    %2602 = vmatprep.subr.bf16.mxu0 0
    %2603 = vmatpush1.bf16.msra.mxu0 0
    %2604 = vmatprep.subr.bf16.mxu0 0
    %2605 = vmatpush1.bf16.msra.mxu0 0
    %2606 = vmatprep.subr.bf16.mxu0 0
    %2607 = vmatpush1.bf16.msra.mxu0 0
    %2608 = vmatprep.mubr.bf16.mxu0 0
    %2609 = vmatmul.mubr.bf16.gmra.mrb[0].mxu0 %v2488
    %v2610 = vpop.f32.mrb[0].mxu0
    %v2611 = vadd.f32 %v2386, %v2610
    %v2612 = vpop.f32.mrb[0].mxu0
    %v2613 = vadd.f32 %v2390, %v2612
    %v2614 = vpop.f32.mrb[0].mxu0
    %v2615 = vadd.f32 %v2386, %v2614
    %v2616 = vpop.f32.mrb[0].mxu0
    %v2617 = vadd.f32 %v2390, %v2616
    %2618 = vdwg.mxu0
    %2619 = vmatprep.subr.bf16.mxu0 %v2462
    %2620 = vmatpush1.bf16.msra.mxu0 %v2461
    %2621 = vmatprep.subr.bf16.mxu0 %v2470
    %2622 = vmatpush1.bf16.msra.mxu0 %v2469
    %2623 = vmatprep.subr.bf16.mxu0 0
    %2624 = vmatpush1.bf16.msra.mxu0 0
    %2625 = vmatprep.subr.bf16.mxu0 0
    %2626 = vmatpush1.bf16.msra.mxu0 0
    %2627 = vmatprep.subr.bf16.mxu0 0
    %2628 = vmatpush1.bf16.msra.mxu0 0
    %2629 = vmatprep.subr.bf16.mxu0 0
    %2630 = vmatpush1.bf16.msra.mxu0 0
    %2631 = vmatprep.subr.bf16.mxu0 0
    %2632 = vmatpush1.bf16.msra.mxu0 0
    %2633 = vmatprep.subr.bf16.mxu0 0
    %2634 = vmatpush1.bf16.msra.mxu0 0
    %2635 = vmatprep.subr.bf16.mxu0 0
    %2636 = vmatpush1.bf16.msra.mxu0 0
    %2637 = vmatprep.subr.bf16.mxu0 0
    %2638 = vmatpush1.bf16.msra.mxu0 0
    %2639 = vmatprep.subr.bf16.mxu0 0
    %2640 = vmatpush1.bf16.msra.mxu0 0
    %2641 = vmatprep.subr.bf16.mxu0 0
    %2642 = vmatpush1.bf16.msra.mxu0 0
    %2643 = vmatprep.subr.bf16.mxu0 0
    %2644 = vmatpush1.bf16.msra.mxu0 0
    %2645 = vmatprep.subr.bf16.mxu0 0
    %2646 = vmatpush1.bf16.msra.mxu0 0
    %2647 = vmatprep.subr.bf16.mxu0 0
    %2648 = vmatpush1.bf16.msra.mxu0 0
    %2649 = vmatprep.subr.bf16.mxu0 0
    %2650 = vmatpush1.bf16.msra.mxu0 0
    %2651 = vmatprep.mubr.bf16.mxu0 0
    %2652 = vmatmul.mubr.bf16.gmra.mrb[0].mxu0 %v2488
    %v2653 = vpop.f32.mrb[0].mxu0
    %v2654 = vadd.f32 %v2394, %v2653
    %v2655 = vpop.f32.mrb[0].mxu0
    %v2656 = vadd.f32 %v2398, %v2655
    %v2657 = vpop.f32.mrb[0].mxu0
    %v2658 = vadd.f32 %v2394, %v2657
    %v2659 = vpop.f32.mrb[0].mxu0
    %v2660 = vadd.f32 %v2398, %v2659
    %2661 = vdwg.mxu0
    %2662 = vst.msk [vmem:[#allocation15] sm:$0xff] %vm894, %v852
    %2663 = vst.msk [vmem:[#allocation15 + $0x8] sm:$0xff] %vm894, %v855
    %2666 = vrot.lane.b32.xlu0 %v1116, 32
    %v2667 = vpop.permute.xlu0 %2666
    %2668 = vrot.lane.b32.xlu0 %v1119, 32
    %v2669 = vpop.permute.xlu0 %2668
    %vm2672 = vcmask 326912
    %2673 = vst.msk [vmem:[#allocation15] sm:$0xff] %vm2672, %v2667
    %2674 = vst.msk [vmem:[#allocation15 + $0x8] sm:$0xff] %vm2672, %v2669
    %vm2675 = vcmask 392512
    %2676 = vst.msk [vmem:[#allocation15] sm:$0xff] %vm2675, %v2667
    %2677 = vst.msk [vmem:[#allocation15 + $0x8] sm:$0xff] %vm2675, %v2669
    %2680 = vrot.lane.b32.xlu0 %v2333, 48
    %v2681 = vpop.permute.xlu0 %2680
    %2682 = vrot.lane.b32.xlu0 %v2334, 48
    %v2683 = vpop.permute.xlu0 %2682
    %vm2686 = vcmask 654720
    %2687 = vst.msk [vmem:[#allocation15] sm:$0xff] %vm2686, %v2681
    %2688 = vst.msk [vmem:[#allocation15 + $0x8] sm:$0xff] %vm2686, %v2683
    %v2689 = vpack.c.bf16 %v2529, %v2525
    %v2690 = vpack.c.bf16 %v2531, %v2527
    %v2691 = vpack.c.bf16 %v2572, %v2568
    %v2692 = vpack.c.bf16 %v2574, %v2570
    %v2693 = vpack.c.bf16 %v2615, %v2611
    %v2694 = vpack.c.bf16 %v2617, %v2613
    %v2695 = vpack.c.bf16 %v2658, %v2654
    %v2696 = vpack.c.bf16 %v2660, %v2656
    %v2705 = vunpack.c.l.b16 %v2689
    %v2706 = vunpack.c.l.b16 %v2690
    %v2707 = vunpack.c.l.b16 %v2691
    %v2708 = vunpack.c.l.b16 %v2692
    %v2709 = vunpack.c.l.b16 %v2693
    %v2710 = vunpack.c.l.b16 %v2694
    %v2711 = vunpack.c.l.b16 %v2695
    %v2712 = vunpack.c.l.b16 %v2696
    %v2713 = vunpack.c.h.b16 %v2689
    %v2714 = vunpack.c.h.b16 %v2690
    %v2715 = vunpack.c.h.b16 %v2691
    %v2716 = vunpack.c.h.b16 %v2692
    %v2717 = vunpack.c.h.b16 %v2693
    %v2718 = vunpack.c.h.b16 %v2694
    %v2719 = vunpack.c.h.b16 %v2695
    %v2720 = vunpack.c.h.b16 %v2696
    %v2721 = vpack.c.b16 %v2706, %v2705
    %v2722 = vpack.c.b16 %v2708, %v2707
    %v2723 = vpack.c.b16 %v2710, %v2709
    %v2724 = vpack.c.b16 %v2712, %v2711
    %v2725 = vpack.c.b16 %v2714, %v2713
    %v2726 = vpack.c.b16 %v2716, %v2715
    %v2727 = vpack.c.b16 %v2718, %v2717
    %v2728 = vpack.c.b16 %v2720, %v2719
    %2737 = vst [vmem:[#allocation16] sm:$0xff] %v2721
    %2738 = vst [vmem:[#allocation16 + $0x8] sm:$0xff] %v2722
    %2739 = vst [vmem:[#allocation16 + $0x10] sm:$0xff] %v2723
    %2740 = vst [vmem:[#allocation16 + $0x18] sm:$0xff] %v2724
    %2741 = vst [vmem:[#allocation16 + $0x20] sm:$0xff] %v2725
    %2742 = vst [vmem:[#allocation16 + $0x28] sm:$0xff] %v2726
    %2743 = vst [vmem:[#allocation16 + $0x30] sm:$0xff] %v2727
    %2744 = vst [vmem:[#allocation16 + $0x38] sm:$0xff] %v2728
    // Predicated region
    $region58: #{tpu_custom_call.1} parent=1 // pred_check
      _
    $region59: #{tpu_custom_call.1} parent=1 // pred_check_branch
      %2746 = sbr.rel (0) target = $region61
    $region60: #{tpu_custom_call.1} parent=1 // pred_region
      %s2748 = ssub.s32 256, 256
      %2749 = vsyncadd [#allocation5], %s2748
      %s2750 = sshll.u32 [#allocation15], 4
      %s2751 = int_to_ptr.vmem [resolvable:$true] %s2750
      %2756 = dma.vmem_to_hbm [thread:$0]  %s2751, 256, %s7, [#allocation5], 128, 128, 8
    $region61: #{tpu_custom_call.1} parent=1 // pred_fallthru
      _
    // Predicated region
    $region62: #{tpu_custom_call.1} parent=1 // pred_check
      _
    $region63: #{tpu_custom_call.1} parent=1 // pred_check_branch
      %2758 = sbr.rel (0) target = $region65
    $region64: #{tpu_custom_call.1} parent=1 // pred_region
      %s2760 = ssub.s32 1024, 1024
      %2761 = vsyncadd [#allocation17], %s2760
      %s2762 = sshll.u32 [#allocation16], 4
      %s2763 = int_to_ptr.vmem [resolvable:$true] %s2762
      %2768 = dma.vmem_to_hbm [thread:$0]  %s2763, 1024, %s8, [#allocation17], 512, 512, 32
    $region65: #{tpu_custom_call.1} parent=1 // pred_fallthru
      _
    // Predicated region
    $region66: #{tpu_custom_call.1} parent=1 // pred_check
      _
    $region67: #{tpu_custom_call.1} parent=1 // pred_check_branch
      %2770 = sbr.rel (0) target = $region69
    $region68: #{tpu_custom_call.1} parent=1 // pred_region
      %2771 = dma.done [#allocation5], 256
    $region69: #{tpu_custom_call.1} parent=1 // pred_fallthru
      _
    // Predicated region
    $region70: #{tpu_custom_call.1} parent=1 // pred_check
      _
    $region71: #{tpu_custom_call.1} parent=1 // pred_check_branch
      %2773 = sbr.rel (0) target = $region73
    $region72: #{tpu_custom_call.1} parent=1 // pred_region
      %2774 = dma.done [#allocation17], 1024
    $region73: #{tpu_custom_call.1} parent=1 // pred_fallthru
      _
    %2775 = vsyncpa [#allocation4], 1
    %2776 = vsyncpa [#allocation7], 1
    %2777 = vsyncpa [#allocation10], 1
    %2778 = vsyncpa [#allocation13], 1
    %2779 = vsyncpa [#allocation5], 1
    %2780 = vsyncpa [#allocation17], 1

</llo_original>
